<compile_context>
chip_gen: v7x
topology: tpu7x:2x2x1
jax: 0.10.0
libtpu: 0.0.40
codegen_flags: <defaults>
</compile_context>

<pallas_src>
import functools

import jax
import jax.numpy as jnp
import numpy as np
from jax import lax
from jax.experimental import pallas as pl
from jax.experimental.pallas import tpu as pltpu

# ---- quantization config (args.fixed / args.iwidth / args.aprec) -----------
FIXED = 0      # args.fixed  (0 -> no quantization, matching the default path)
IWIDTH = 3     # args.iwidth
APREC = 8      # args.aprec

# bf16 MXU operands only when there is no fixed-point quantization to preserve.
MXU_DTYPE = jnp.bfloat16 if FIXED == 0 else jnp.float32

LANE = 128     # TPU lane width


def _round_up(x, m):
    return ((x + m - 1) // m) * m


def _quant(x, intbit, fracbit):
    s = 2.0 ** fracbit
    x = jnp.round(x * s) / s
    return jnp.clip(x, -2.0 ** intbit, 2.0 ** intbit - 2.0 ** (-fracbit))


def _bn_act(y, scale, shift, *, relu):
    """Post-conv epilogue used by the kernel and the matched reference.

    FIXED == 1 : quant -> y*scale + shift -> quant   (QConv2d / QBatchNorm2d)
    FIXED == 0 : y + shift   (BN scale folded into the conv weights, exact)
    """
    if FIXED == 1:
        y = _quant(y, IWIDTH, APREC)
        y = y * scale + shift
        y = _quant(y, IWIDTH, APREC)
    else:
        y = y + shift
    if relu:
        y = jnp.maximum(y, 0.0)
    return y


def _bn_unfolded(y, scale, shift, *, relu=False):
    """Unfused BN epilogue mirroring the PyTorch module exactly (f32 ref)."""
    if FIXED == 1:
        y = _quant(y, IWIDTH, APREC)
    y = y * scale + shift
    if FIXED == 1:
        y = _quant(y, IWIDTH, APREC)
    if relu:
        y = jnp.maximum(y, 0.0)
    return y


# ============================ fused Pallas kernel ============================

def fused_block_kernel(*refs, has_residual, has_sc_conv):
    """expand 1x1 -> BN1 -> ReLU -> dw3x3 (dense) -> BN2 -> ReLU ->
    project 1x1 -> BN3 (+ shortcut), on nb images resident in VMEM."""
    if has_sc_conv:
        (x_ref, w1_ref, w2_ref, w3_ref, wsc_ref,
         s1_ref, b1_ref, s2_ref, b2_ref, s3_ref, b3_ref,
         ssc_ref, bsc_ref, o_ref) = refs
    else:
        (x_ref, w1_ref, w2_ref, w3_ref,
         s1_ref, b1_ref, s2_ref, b2_ref, s3_ref, b3_ref, o_ref) = refs

    nb, H, W, cin = x_ref.shape
    planes = w1_ref.shape[1]
    cp = w3_ref.shape[1]              # output channels padded to 128 lanes
    M = nb * H * W

    # ---------------- expand: 1x1 conv (MXU, bf16 -> f32 acc) + BN1 + ReLU --
    x = x_ref[...]                                   # (nb, H, W, cin) f32
    x2d = x.reshape(M, cin)
    xb = x2d.astype(MXU_DTYPE)
    y1 = jnp.dot(xb, w1_ref[...], preferred_element_type=jnp.float32)
    out1 = _bn_act(y1, s1_ref[...], b1_ref[...], relu=True)
    out1 = out1.reshape(nb, H, W, planes)

    # ---------------- depthwise 3x3 (VPU), computed densely (stride 1) ------
    # Halo built on the value: 1 zero row above/below (major-dim concat, free)
    # and 8 zero columns left/right (sublane-tile-aligned concat).  No VMEM
    # scratch, no full-buffer zeroing, no misaligned stores; each tap is a
    # static slice of the padded value.
    zrow = jnp.zeros((nb, 1, W, planes), jnp.float32)
    xpad = jnp.concatenate([zrow, out1, zrow], axis=1)        # (nb, H+2, W,   p)
    zcol = jnp.zeros((nb, H + 2, 8, planes), jnp.float32)
    xpad = jnp.concatenate([zcol, xpad, zcol], axis=2)        # (nb, H+2, W+16, p)

    acc = jnp.zeros((nb, H, W, planes), jnp.float32)
    for kh in range(3):
        for kw in range(3):
            # real column j of the input sits at padded column j + 8
            tap = xpad[:, kh:kh + H, kw + 7:kw + 7 + W, :]
            wk = w2_ref[kh * 3 + kw:kh * 3 + kw + 1, :].reshape(1, 1, 1, planes)
            acc = acc + tap * wk
    out2 = _bn_act(acc,
                   s2_ref[...].reshape(1, 1, 1, planes),
                   b2_ref[...].reshape(1, 1, 1, planes), relu=True)

    # ---------------- project: 1x1 conv (MXU) + BN3 [+ shortcut] ------------
    out2b = out2.reshape(M, planes).astype(MXU_DTYPE)
    y3 = jnp.dot(out2b, w3_ref[...], preferred_element_type=jnp.float32)
    y3 = _bn_act(y3, s3_ref[...], b3_ref[...], relu=False)     # (M, cp)

    if has_residual:                       # stride == 1
        if has_sc_conv:                    # in_planes != out_planes
            r = jnp.dot(xb, wsc_ref[...], preferred_element_type=jnp.float32)
            r = _bn_act(r, ssc_ref[...], bsc_ref[...], relu=False)
        else:
            # Identity shortcut: the wrapper zero-pads x / w1 channels to cp,
            # so this is an exact f32 add with no lane restructuring.
            r = x2d
        y3 = y3 + r

    # Lane-dense store: last dim is a multiple of 128 -> unmasked full vst.
    o_ref[...] = y3.reshape(nb, H, W, cp).astype(o_ref.dtype)


# ============================ pallas_call wrapper ============================

def _vmem_limit_bytes():
    try:
        cap = pltpu.get_tpu_info().vmem_capacity_bytes
    except Exception:
        cap = 64 * 1024 * 1024        # conservative fallback (v7x-sized)
    return int(min(100 * 1024 * 1024, 0.75 * cap))


def _pick_batch_block(n, h, w, cin, planes, cp, vmem_limit):
    """Largest batch block that (a) divides N, (b) keeps >= 2 grid steps so
    both v7x TensorCores get work, and (c) fits ~half the VMEM budget."""
    per_img = 4 * h * w * (2 * cin + 2 * cp + 6 * planes)   # rough working set
    nb = 1
    for cand in range(1, n + 1):
        if n % cand:
            continue
        if n >= 2 and n // cand < 2:
            continue
        if cand * per_img <= vmem_limit // 2:
            nb = cand
    return nb


def fused_block(x_nhwc, eff, *, stride):
    n, h, w, cin = x_nhwc.shape
    planes = eff["w1"].shape[1]
    cp = eff["w3"].shape[1]
    cout = eff["cout"]
    has_residual = (stride == 1)
    has_sc_conv = has_residual and ("wsc" in eff)

    w1 = eff["w1"]
    if has_residual and not has_sc_conv and cin < cp:
        # Identity shortcut: zero-pad input channels + w1 rows to the padded
        # output width (exact; padded w1 rows are zero), so the in-kernel
        # residual add is lane-dense with no concat.
        # TODO(synk): at large Cin this trades extra HBM input bytes for the
        #             dense add; switch to an in-kernel lane concat there.
        x_nhwc = jnp.pad(x_nhwc, ((0, 0), (0, 0), (0, 0), (0, cp - cin)))
        w1 = jnp.pad(w1, ((0, cp - cin), (0, 0)))
        cin = cp

    vmem_limit = _vmem_limit_bytes()
    nb = _pick_batch_block(n, h, w, cin, planes, cp, vmem_limit)

    kern = functools.partial(fused_block_kernel,
                             has_residual=has_residual,
                             has_sc_conv=has_sc_conv)

    # NOTE: weights / BN vectors are revisited every step; pl.Buffered(1)
    # would halve their VMEM footprint but they are only a few KB here.
    resident = lambda i: (0, 0)
    ins = [x_nhwc, w1, eff["w2"], eff["w3"]]
    in_specs = [
        pl.BlockSpec((nb, h, w, cin), lambda i: (i, 0, 0, 0)),
        pl.BlockSpec(w1.shape, resident),
        pl.BlockSpec(eff["w2"].shape, resident),
        pl.BlockSpec(eff["w3"].shape, resident),
    ]
    if has_sc_conv:
        ins.append(eff["wsc"])
        in_specs.append(pl.BlockSpec(eff["wsc"].shape, resident))
    for name in ("bn1", "bn2", "bn3"):
        s, b = eff[name]
        ins += [s, b]
        in_specs += [pl.BlockSpec(s.shape, resident),
                     pl.BlockSpec(b.shape, resident)]
    if has_sc_conv:
        s, b = eff["bnsc"]
        ins += [s, b]
        in_specs += [pl.BlockSpec(s.shape, resident),
                     pl.BlockSpec(b.shape, resident)]

    dense = pl.pallas_call(
        kern,
        out_shape=jax.ShapeDtypeStruct((n, h, w, cp), jnp.float32),
        grid_spec=pltpu.PrefetchScalarGridSpec(
            num_scalar_prefetch=0,
            grid=(n // nb,),
            in_specs=in_specs,
            out_specs=pl.BlockSpec((nb, h, w, cp), lambda i: (i, 0, 0, 0))),
        compiler_params=pltpu.CompilerParams(
            dimension_semantics=("parallel",),
            vmem_limit_bytes=vmem_limit),
    )(*ins)

    # Stride subsampling + channel un-padding: pure layout plumbing in XLA.
    # TODO(synk): for real stride-2 MobileNet layers, subsample (parity split)
    #             before the pointwise conv instead of computing it densely.
    return dense[:, ::stride, ::stride, :cout]


def block_forward_nhwc(eff, x_nhwc, *, stride):
    """Preferred entry point: NHWC end-to-end, no layout transposes."""
    return fused_block(x_nhwc.astype(jnp.float32), eff, stride=stride)


def block_forward(eff, x_nchw, *, stride):
    """NCHW glue for parity with the PyTorch module (transpose in/out only)."""
    x_nhwc = jnp.transpose(x_nchw, (0, 2, 3, 1))
    out = block_forward_nhwc(eff, x_nhwc, stride=stride)
    return jnp.transpose(out, (0, 3, 1, 2))


# ============================ parameters =====================================

def _bn_scale_shift(key, c, eps=1e-5):
    k1, k2, k3, k4 = jax.random.split(key, 4)
    gamma = 1.0 + 0.1 * jax.random.normal(k1, (c,), jnp.float32)
    beta = 0.1 * jax.random.normal(k2, (c,), jnp.float32)
    mean = 0.1 * jax.random.normal(k3, (c,), jnp.float32)
    var = jax.random.uniform(k4, (c,), jnp.float32, 0.5, 1.5)
    scale = gamma / jnp.sqrt(var + eps)
    shift = beta - mean * scale
    return scale[None, :], shift[None, :]


def init_block_params(key, in_planes, out_planes, expansion, stride):
    planes = expansion * in_planes
    ks = jax.random.split(key, 8)
    p = {}
    # conv1: PyTorch (planes, in_planes, 1, 1) -> matmul layout (in_planes, planes)
    p["w1"] = 0.1 * jax.random.normal(ks[0], (in_planes, planes), jnp.float32)
    p["bn1"] = _bn_scale_shift(ks[1], planes)
    # conv2 (depthwise): PyTorch (planes, 1, 3, 3) -> (3*3, planes)
    p["w2"] = 0.1 * jax.random.normal(ks[2], (9, planes), jnp.float32)
    p["bn2"] = _bn_scale_shift(ks[3], planes)
    # conv3: PyTorch (out_planes, planes, 1, 1) -> (planes, out_planes)
    p["w3"] = 0.1 * jax.random.normal(ks[4], (planes, out_planes), jnp.float32)
    p["bn3"] = _bn_scale_shift(ks[5], out_planes)
    if stride == 1 and in_planes != out_planes:
        p["wsc"] = 0.1 * jax.random.normal(ks[6], (in_planes, out_planes),
                                           jnp.float32)
        p["bnsc"] = _bn_scale_shift(ks[7], out_planes)
    return p


def make_effective_params(params):
    """Fold BN scale into the conv weights when FIXED == 0 (exact: no quant
    between conv and BN in that mode), cast MXU weights to bf16, and zero-pad
    the output-channel dim of w3 / wsc / BN3 / BNsc to a multiple of 128 so
    the kernel's output stores are lane-dense (padding sliced off outside)."""
    def fold(w, bn):
        s, _ = bn
        return w * s if FIXED == 0 else w

    def pad_last(a, cp):
        c = a.shape[-1]
        if c == cp:
            return a
        widths = [(0, 0)] * (a.ndim - 1) + [(0, cp - c)]
        return jnp.pad(a, widths)

    cout = params["w3"].shape[1]
    cp = _round_up(cout, LANE)

    eff = {"cout": cout}
    eff["w1"] = fold(params["w1"], params["bn1"]).astype(MXU_DTYPE)
    eff["w2"] = fold(params["w2"], params["bn2"])            # VPU path: keep f32
    eff["w3"] = pad_last(fold(params["w3"], params["bn3"]), cp).astype(MXU_DTYPE)
    eff["bn1"] = params["bn1"]
    eff["bn2"] = params["bn2"]
    s3, b3 = params["bn3"]
    eff["bn3"] = (pad_last(s3, cp), pad_last(b3, cp))
    if "wsc" in params:
        eff["wsc"] = pad_last(fold(params["wsc"], params["bnsc"]),
                              cp).astype(MXU_DTYPE)
        ssc, bsc = params["bnsc"]
        eff["bnsc"] = (pad_last(ssc, cp), pad_last(bsc, cp))
    return eff


# ============================ pure-JAX references ============================

def ref_forward_matched(params, x_nchw, *, stride):
    """Reference with the kernel's numerics (BN folding + bf16 MXU operands),
    built independently from the raw params and with no channel padding."""
    x = jnp.transpose(x_nchw, (0, 2, 3, 1)).astype(jnp.float32)
    planes = params["w1"].shape[1]

    def fold(wt, bn):
        s, _ = bn
        return wt * s if FIXED == 0 else wt

    w1 = fold(params["w1"], params["bn1"]).astype(MXU_DTYPE)
    w2 = fold(params["w2"], params["bn2"])
    w3 = fold(params["w3"], params["bn3"]).astype(MXU_DTYPE)

    xb = x.astype(MXU_DTYPE)
    out1 = _bn_act(jnp.einsum("nhwc,cd->nhwd", xb, w1,
                              preferred_element_type=jnp.float32),
                   *params["bn1"], relu=True)
    wdw = w2.reshape(3, 3, planes)[:, :, None, :]             # HWIO, I=1
    conv2 = lax.conv_general_dilated(
        out1, wdw, window_strides=(stride, stride), padding=((1, 1), (1, 1)),
        dimension_numbers=("NHWC", "HWIO", "NHWC"),
        feature_group_count=planes, precision=lax.Precision.HIGHEST)
    out2 = _bn_act(conv2, *params["bn2"], relu=True)
    out3 = _bn_act(jnp.einsum("nhwc,cd->nhwd", out2.astype(MXU_DTYPE), w3,
                              preferred_element_type=jnp.float32),
                   *params["bn3"], relu=False)
    if stride == 1:
        if "wsc" in params:
            wsc = fold(params["wsc"], params["bnsc"]).astype(MXU_DTYPE)
            res = _bn_act(jnp.einsum("nhwc,cd->nhwd", xb, wsc,
                                     preferred_element_type=jnp.float32),
                          *params["bnsc"], relu=False)
        else:
            res = x
        out3 = out3 + res
    return jnp.transpose(out3, (0, 3, 1, 2))


def ref_forward_f32(params, x_nchw, *, stride):
    """Unfused full-f32 reference matching the original PyTorch Block
    (no folding, no bf16) -- looser tolerance bounds the kernel's bf16 error
    against the true module semantics."""
    x = jnp.transpose(x_nchw, (0, 2, 3, 1)).astype(jnp.float32)
    planes = params["w1"].shape[1]
    hi = lax.Precision.HIGHEST

    out = _bn_unfolded(jnp.einsum("nhwc,cd->nhwd", x, params["w1"], precision=hi),
                       *params["bn1"], relu=True)
    wdw = params["w2"].reshape(3, 3, planes)[:, :, None, :]
    out = lax.conv_general_dilated(
        out, wdw, window_strides=(stride, stride), padding=((1, 1), (1, 1)),
        dimension_numbers=("NHWC", "HWIO", "NHWC"),
        feature_group_count=planes, precision=hi)
    out = _bn_unfolded(out, *params["bn2"], relu=True)
    out = _bn_unfolded(jnp.einsum("nhwc,cd->nhwd", out, params["w3"], precision=hi),
                       *params["bn3"])
    if stride == 1:
        if "wsc" in params:
            res = _bn_unfolded(jnp.einsum("nhwc,cd->nhwd", x, params["wsc"],
                                          precision=hi),
                               *params["bnsc"])
        else:
            res = x
        out = out + res
    return jnp.transpose(out, (0, 3, 1, 2))


# ============================ main ===========================================

if __name__ == "__main__":
    N, H, W = 4, 16, 16
    configs = [
        # (in_planes, out_planes, expansion, stride)
        (8, 16, 2, 1),     # projection shortcut (1x1 conv + BN)
        (16, 16, 2, 1),    # identity shortcut
        (16, 24, 4, 2),    # stride-2 downsampling block (no shortcut)
    ]

    key = jax.random.PRNGKey(0)
    for in_planes, out_planes, expansion, stride in configs:
        kx, kp, key = jax.random.split(key, 3)
        x = jax.random.normal(kx, (N, in_planes, H, W), jnp.float32)
        raw = init_block_params(kp, in_planes, out_planes, expansion, stride)
        eff = make_effective_params(raw)

        out = jax.block_until_ready(block_forward(eff, x, stride=stride))

        # Tight check vs a reference with identical numerics (bf16 + folding).
        ref = jax.block_until_ready(ref_forward_matched(raw, x, stride=stride))
        np.testing.assert_allclose(np.asarray(out), np.asarray(ref),
                                   rtol=5e-3, atol=5e-3)

        # Loose check vs the unfused full-f32 PyTorch-style forward, bounding
        # the bf16 MXU error against the original module semantics.
        ref32 = jax.block_until_ready(ref_forward_f32(raw, x, stride=stride))
        np.testing.assert_allclose(np.asarray(out), np.asarray(ref32),
                                   rtol=5e-2, atol=5e-2)

    print("KERNEL_OK")
</pallas_src>

<mosaic_0001>
module attributes {stable_mosaic.version = 11 : i64} {
  func.func @fused_block_kernel(%arg0: i32, %arg1: memref<2x16x16x8xf32, #tpu.memory_space<vmem>>, %arg2: memref<8x16xbf16, #tpu.memory_space<vmem>>, %arg3: memref<9x16xf32, #tpu.memory_space<vmem>>, %arg4: memref<16x128xbf16, #tpu.memory_space<vmem>>, %arg5: memref<8x128xbf16, #tpu.memory_space<vmem>>, %arg6: memref<1x16xf32, #tpu.memory_space<vmem>>, %arg7: memref<1x16xf32, #tpu.memory_space<vmem>>, %arg8: memref<1x16xf32, #tpu.memory_space<vmem>>, %arg9: memref<1x16xf32, #tpu.memory_space<vmem>>, %arg10: memref<1x128xf32, #tpu.memory_space<vmem>>, %arg11: memref<1x128xf32, #tpu.memory_space<vmem>>, %arg12: memref<1x128xf32, #tpu.memory_space<vmem>>, %arg13: memref<1x128xf32, #tpu.memory_space<vmem>>, %arg14: memref<2x16x16x128xf32, #tpu.memory_space<vmem>>) attributes {dimension_semantics = [#tpu.dimension_semantics<parallel>], iteration_bounds = array<i64: 2>, scalar_prefetch = 0 : i64, scratch_operands = 0 : i64, tpu.core_type = #tpu.core_type<tc>, window_params = [{transform_indices = @transform_0, window_bounds = array<i64: 2, 16, 16, 8>}, {pipeline_mode = #tpu.pipeline_mode<synchronous>, transform_indices = @transform_1, window_bounds = array<i64: 8, 16>}, {pipeline_mode = #tpu.pipeline_mode<synchronous>, transform_indices = @transform_2, window_bounds = array<i64: 9, 16>}, {pipeline_mode = #tpu.pipeline_mode<synchronous>, transform_indices = @transform_3, window_bounds = array<i64: 16, 128>}, {pipeline_mode = #tpu.pipeline_mode<synchronous>, transform_indices = @transform_4, window_bounds = array<i64: 8, 128>}, {pipeline_mode = #tpu.pipeline_mode<synchronous>, transform_indices = @transform_5, window_bounds = array<i64: 1, 16>}, {pipeline_mode = #tpu.pipeline_mode<synchronous>, transform_indices = @transform_6, window_bounds = array<i64: 1, 16>}, {pipeline_mode = #tpu.pipeline_mode<synchronous>, transform_indices = @transform_7, window_bounds = array<i64: 1, 16>}, {pipeline_mode = #tpu.pipeline_mode<synchronous>, transform_indices = @transform_8, window_bounds = array<i64: 1, 16>}, {pipeline_mode = #tpu.pipeline_mode<synchronous>, transform_indices = @transform_9, window_bounds = array<i64: 1, 128>}, {pipeline_mode = #tpu.pipeline_mode<synchronous>, transform_indices = @transform_10, window_bounds = array<i64: 1, 128>}, {pipeline_mode = #tpu.pipeline_mode<synchronous>, transform_indices = @transform_11, window_bounds = array<i64: 1, 128>}, {pipeline_mode = #tpu.pipeline_mode<synchronous>, transform_indices = @transform_12, window_bounds = array<i64: 1, 128>}, {transform_indices = @transform_13, window_bounds = array<i64: 2, 16, 16, 128>}]} {
    %c0 = arith.constant 0 : index
    %c0_0 = arith.constant 0 : index
    %c0_1 = arith.constant 0 : index
    %c0_2 = arith.constant 0 : index
    %0 = vector.load %arg1[%c0, %c0_0, %c0_1, %c0_2] : memref<2x16x16x8xf32, #tpu.memory_space<vmem>>, vector<2x16x16x8xf32>
    %1 = vector.shape_cast %0 : vector<2x16x16x8xf32> to vector<512x8xf32>
    %2 = arith.truncf %1 : vector<512x8xf32> to vector<512x8xbf16>
    %c0_3 = arith.constant 0 : index
    %c0_4 = arith.constant 0 : index
    %3 = vector.load %arg2[%c0_3, %c0_4] : memref<8x16xbf16, #tpu.memory_space<vmem>>, vector<8x16xbf16>
    %cst = arith.constant dense<0.000000e+00> : vector<512x16xf32>
    %4 = tpu.matmul %2, %3, %cst {dimension_numbers = #tpu.dot_dimension_numbers<[1], [0], [0], [1], [0, 0, 1, 1], [], []>} : vector<512x8xbf16>, vector<8x16xbf16>, vector<512x16xf32> -> vector<512x16xf32>
    %c0_5 = arith.constant 0 : index
    %c0_6 = arith.constant 0 : index
    %5 = vector.load %arg7[%c0_5, %c0_6] : memref<1x16xf32, #tpu.memory_space<vmem>>, vector<1x16xf32>
    %6 = vector.broadcast %5 : vector<1x16xf32> to vector<512x16xf32>
    %7 = arith.addf %4, %6 : vector<512x16xf32>
    %cst_7 = arith.constant 0.000000e+00 : f32
    %8 = vector.broadcast %cst_7 : f32 to vector<512x16xf32>
    %9 = arith.maximumf %7, %8 : vector<512x16xf32>
    %10 = vector.shape_cast %9 : vector<512x16xf32> to vector<2x16x16x16xf32>
    %cst_8 = arith.constant 0.000000e+00 : f32
    %11 = vector.broadcast %cst_8 : f32 to vector<2x1x16x16xf32>
    %12 = tpu.concatenate %11, %10, %11 in 1 : vector<2x1x16x16xf32>, vector<2x16x16x16xf32>, vector<2x1x16x16xf32> -> vector<2x18x16x16xf32>
    %cst_9 = arith.constant 0.000000e+00 : f32
    %13 = vector.broadcast %cst_9 : f32 to vector<2x18x8x16xf32>
    %14 = tpu.concatenate %13, %12, %13 in 2 : vector<2x18x8x16xf32>, vector<2x18x16x16xf32>, vector<2x18x8x16xf32> -> vector<2x18x32x16xf32>
    %cst_10 = arith.constant 0.000000e+00 : f32
    %15 = vector.broadcast %cst_10 : f32 to vector<2x16x16x16xf32>
    %16 = vector.extract_strided_slice %14 {offsets = [0, 0, 7, 0], sizes = [2, 16, 16, 16], strides = [1, 1, 1, 1]} : vector<2x18x32x16xf32> to vector<2x16x16x16xf32>
    %c0_11 = arith.constant 0 : index
    %c0_12 = arith.constant 0 : index
    %17 = vector.load %arg3[%c0_11, %c0_12] : memref<9x16xf32, #tpu.memory_space<vmem>>, vector<1x16xf32>
    %18 = vector.shape_cast %17 : vector<1x16xf32> to vector<1x1x1x16xf32>
    %19 = vector.broadcast %18 : vector<1x1x1x16xf32> to vector<2x16x16x16xf32>
    %20 = arith.mulf %16, %19 : vector<2x16x16x16xf32>
    %21 = arith.addf %15, %20 : vector<2x16x16x16xf32>
    %22 = vector.extract_strided_slice %14 {offsets = [0, 0, 8, 0], sizes = [2, 16, 16, 16], strides = [1, 1, 1, 1]} : vector<2x18x32x16xf32> to vector<2x16x16x16xf32>
    %c1 = arith.constant 1 : index
    %c0_13 = arith.constant 0 : index
    %23 = vector.load %arg3[%c1, %c0_13] : memref<9x16xf32, #tpu.memory_space<vmem>>, vector<1x16xf32>
    %24 = vector.shape_cast %23 : vector<1x16xf32> to vector<1x1x1x16xf32>
    %25 = vector.broadcast %24 : vector<1x1x1x16xf32> to vector<2x16x16x16xf32>
    %26 = arith.mulf %22, %25 : vector<2x16x16x16xf32>
    %27 = arith.addf %21, %26 : vector<2x16x16x16xf32>
    %28 = vector.extract_strided_slice %14 {offsets = [0, 0, 9, 0], sizes = [2, 16, 16, 16], strides = [1, 1, 1, 1]} : vector<2x18x32x16xf32> to vector<2x16x16x16xf32>
    %c2 = arith.constant 2 : index
    %c0_14 = arith.constant 0 : index
    %29 = vector.load %arg3[%c2, %c0_14] : memref<9x16xf32, #tpu.memory_space<vmem>>, vector<1x16xf32>
    %30 = vector.shape_cast %29 : vector<1x16xf32> to vector<1x1x1x16xf32>
    %31 = vector.broadcast %30 : vector<1x1x1x16xf32> to vector<2x16x16x16xf32>
    %32 = arith.mulf %28, %31 : vector<2x16x16x16xf32>
    %33 = arith.addf %27, %32 : vector<2x16x16x16xf32>
    %34 = vector.extract_strided_slice %14 {offsets = [0, 1, 7, 0], sizes = [2, 16, 16, 16], strides = [1, 1, 1, 1]} : vector<2x18x32x16xf32> to vector<2x16x16x16xf32>
    %c3 = arith.constant 3 : index
    %c0_15 = arith.constant 0 : index
    %35 = vector.load %arg3[%c3, %c0_15] : memref<9x16xf32, #tpu.memory_space<vmem>>, vector<1x16xf32>
    %36 = vector.shape_cast %35 : vector<1x16xf32> to vector<1x1x1x16xf32>
    %37 = vector.broadcast %36 : vector<1x1x1x16xf32> to vector<2x16x16x16xf32>
    %38 = arith.mulf %34, %37 : vector<2x16x16x16xf32>
    %39 = arith.addf %33, %38 : vector<2x16x16x16xf32>
    %40 = vector.extract_strided_slice %14 {offsets = [0, 1, 8, 0], sizes = [2, 16, 16, 16], strides = [1, 1, 1, 1]} : vector<2x18x32x16xf32> to vector<2x16x16x16xf32>
    %c4 = arith.constant 4 : index
    %c0_16 = arith.constant 0 : index
    %41 = vector.load %arg3[%c4, %c0_16] : memref<9x16xf32, #tpu.memory_space<vmem>>, vector<1x16xf32>
    %42 = vector.shape_cast %41 : vector<1x16xf32> to vector<1x1x1x16xf32>
    %43 = vector.broadcast %42 : vector<1x1x1x16xf32> to vector<2x16x16x16xf32>
    %44 = arith.mulf %40, %43 : vector<2x16x16x16xf32>
    %45 = arith.addf %39, %44 : vector<2x16x16x16xf32>
    %46 = vector.extract_strided_slice %14 {offsets = [0, 1, 9, 0], sizes = [2, 16, 16, 16], strides = [1, 1, 1, 1]} : vector<2x18x32x16xf32> to vector<2x16x16x16xf32>
    %c5 = arith.constant 5 : index
    %c0_17 = arith.constant 0 : index
    %47 = vector.load %arg3[%c5, %c0_17] : memref<9x16xf32, #tpu.memory_space<vmem>>, vector<1x16xf32>
    %48 = vector.shape_cast %47 : vector<1x16xf32> to vector<1x1x1x16xf32>
    %49 = vector.broadcast %48 : vector<1x1x1x16xf32> to vector<2x16x16x16xf32>
    %50 = arith.mulf %46, %49 : vector<2x16x16x16xf32>
    %51 = arith.addf %45, %50 : vector<2x16x16x16xf32>
    %52 = vector.extract_strided_slice %14 {offsets = [0, 2, 7, 0], sizes = [2, 16, 16, 16], strides = [1, 1, 1, 1]} : vector<2x18x32x16xf32> to vector<2x16x16x16xf32>
    %c6 = arith.constant 6 : index
    %c0_18 = arith.constant 0 : index
    %53 = vector.load %arg3[%c6, %c0_18] : memref<9x16xf32, #tpu.memory_space<vmem>>, vector<1x16xf32>
    %54 = vector.shape_cast %53 : vector<1x16xf32> to vector<1x1x1x16xf32>
    %55 = vector.broadcast %54 : vector<1x1x1x16xf32> to vector<2x16x16x16xf32>
    %56 = arith.mulf %52, %55 : vector<2x16x16x16xf32>
    %57 = arith.addf %51, %56 : vector<2x16x16x16xf32>
    %58 = vector.extract_strided_slice %14 {offsets = [0, 2, 8, 0], sizes = [2, 16, 16, 16], strides = [1, 1, 1, 1]} : vector<2x18x32x16xf32> to vector<2x16x16x16xf32>
    %c7 = arith.constant 7 : index
    %c0_19 = arith.constant 0 : index
    %59 = vector.load %arg3[%c7, %c0_19] : memref<9x16xf32, #tpu.memory_space<vmem>>, vector<1x16xf32>
    %60 = vector.shape_cast %59 : vector<1x16xf32> to vector<1x1x1x16xf32>
    %61 = vector.broadcast %60 : vector<1x1x1x16xf32> to vector<2x16x16x16xf32>
    %62 = arith.mulf %58, %61 : vector<2x16x16x16xf32>
    %63 = arith.addf %57, %62 : vector<2x16x16x16xf32>
    %64 = vector.extract_strided_slice %14 {offsets = [0, 2, 9, 0], sizes = [2, 16, 16, 16], strides = [1, 1, 1, 1]} : vector<2x18x32x16xf32> to vector<2x16x16x16xf32>
    %c8 = arith.constant 8 : index
    %c0_20 = arith.constant 0 : index
    %65 = vector.load %arg3[%c8, %c0_20] : memref<9x16xf32, #tpu.memory_space<vmem>>, vector<1x16xf32>
    %66 = vector.shape_cast %65 : vector<1x16xf32> to vector<1x1x1x16xf32>
    %67 = vector.broadcast %66 : vector<1x1x1x16xf32> to vector<2x16x16x16xf32>
    %68 = arith.mulf %64, %67 : vector<2x16x16x16xf32>
    %69 = arith.addf %63, %68 : vector<2x16x16x16xf32>
    %c0_21 = arith.constant 0 : index
    %c0_22 = arith.constant 0 : index
    %70 = vector.load %arg9[%c0_21, %c0_22] : memref<1x16xf32, #tpu.memory_space<vmem>>, vector<1x16xf32>
    %71 = vector.shape_cast %70 : vector<1x16xf32> to vector<1x1x1x16xf32>
    %72 = vector.broadcast %71 : vector<1x1x1x16xf32> to vector<2x16x16x16xf32>
    %73 = arith.addf %69, %72 : vector<2x16x16x16xf32>
    %cst_23 = arith.constant 0.000000e+00 : f32
    %74 = vector.broadcast %cst_23 : f32 to vector<2x16x16x16xf32>
    %75 = arith.maximumf %73, %74 : vector<2x16x16x16xf32>
    %76 = vector.shape_cast %75 : vector<2x16x16x16xf32> to vector<512x16xf32>
    %77 = arith.truncf %76 : vector<512x16xf32> to vector<512x16xbf16>
    %c0_24 = arith.constant 0 : index
    %c0_25 = arith.constant 0 : index
    %78 = vector.load %arg4[%c0_24, %c0_25] : memref<16x128xbf16, #tpu.memory_space<vmem>>, vector<16x128xbf16>
    %cst_26 = arith.constant dense<0.000000e+00> : vector<512x128xf32>
    %79 = tpu.matmul %77, %78, %cst_26 {dimension_numbers = #tpu.dot_dimension_numbers<[1], [0], [0], [1], [0, 0, 1, 1], [], []>} : vector<512x16xbf16>, vector<16x128xbf16>, vector<512x128xf32> -> vector<512x128xf32>
    %c0_27 = arith.constant 0 : index
    %c0_28 = arith.constant 0 : index
    %80 = vector.load %arg11[%c0_27, %c0_28] : memref<1x128xf32, #tpu.memory_space<vmem>>, vector<1x128xf32>
    %81 = vector.broadcast %80 : vector<1x128xf32> to vector<512x128xf32>
    %82 = arith.addf %79, %81 : vector<512x128xf32>
    %c0_29 = arith.constant 0 : index
    %c0_30 = arith.constant 0 : index
    %83 = vector.load %arg5[%c0_29, %c0_30] : memref<8x128xbf16, #tpu.memory_space<vmem>>, vector<8x128xbf16>
    %cst_31 = arith.constant dense<0.000000e+00> : vector<512x128xf32>
    %84 = tpu.matmul %2, %83, %cst_31 {dimension_numbers = #tpu.dot_dimension_numbers<[1], [0], [0], [1], [0, 0, 1, 1], [], []>} : vector<512x8xbf16>, vector<8x128xbf16>, vector<512x128xf32> -> vector<512x128xf32>
    %c0_32 = arith.constant 0 : index
    %c0_33 = arith.constant 0 : index
    %85 = vector.load %arg13[%c0_32, %c0_33] : memref<1x128xf32, #tpu.memory_space<vmem>>, vector<1x128xf32>
    %86 = vector.broadcast %85 : vector<1x128xf32> to vector<512x128xf32>
    %87 = arith.addf %84, %86 : vector<512x128xf32>
    %88 = arith.addf %82, %87 : vector<512x128xf32>
    %89 = vector.shape_cast %88 : vector<512x128xf32> to vector<2x16x16x128xf32>
    %c0_34 = arith.constant 0 : index
    %c0_35 = arith.constant 0 : index
    %c0_36 = arith.constant 0 : index
    %c0_37 = arith.constant 0 : index
    %90 = vector.load %arg14[%c0_34, %c0_35, %c0_36, %c0_37] : memref<2x16x16x128xf32, #tpu.memory_space<vmem>>, vector<2x16x16x128xf32>
    tpu.vector_store %arg14[%c0_34, %c0_35, %c0_36, %c0_37], %89 {strides = array<i32>} : memref<2x16x16x128xf32, #tpu.memory_space<vmem>>, vector<2x16x16x128xf32>,
    return
  }
  func.func @transform_0(%arg0: i32) -> (i32, i32, i32, i32) {
    %c0_i32 = arith.constant 0 : i32
    %c0_i32_0 = arith.constant 0 : i32
    %c0_i32_1 = arith.constant 0 : i32
    %c0_i32_2 = arith.constant 0 : i32
    return %arg0, %c0_i32, %c0_i32_0, %c0_i32_1 : i32, i32, i32, i32
  }
  func.func @transform_1(%arg0: i32) -> (i32, i32) {
    %c0_i32 = arith.constant 0 : i32
    %c0_i32_0 = arith.constant 0 : i32
    %c0_i32_1 = arith.constant 0 : i32
    return %c0_i32, %c0_i32_0 : i32, i32
  }
  func.func @transform_2(%arg0: i32) -> (i32, i32) {
    %c0_i32 = arith.constant 0 : i32
    %c0_i32_0 = arith.constant 0 : i32
    %c0_i32_1 = arith.constant 0 : i32
    return %c0_i32, %c0_i32_0 : i32, i32
  }
  func.func @transform_3(%arg0: i32) -> (i32, i32) {
    %c0_i32 = arith.constant 0 : i32
    %c0_i32_0 = arith.constant 0 : i32
    %c0_i32_1 = arith.constant 0 : i32
    return %c0_i32, %c0_i32_0 : i32, i32
  }
  func.func @transform_4(%arg0: i32) -> (i32, i32) {
    %c0_i32 = arith.constant 0 : i32
    %c0_i32_0 = arith.constant 0 : i32
    %c0_i32_1 = arith.constant 0 : i32
    return %c0_i32, %c0_i32_0 : i32, i32
  }
  func.func @transform_5(%arg0: i32) -> (i32, i32) {
    %c0_i32 = arith.constant 0 : i32
    %c0_i32_0 = arith.constant 0 : i32
    %c0_i32_1 = arith.constant 0 : i32
    return %c0_i32, %c0_i32_0 : i32, i32
  }
  func.func @transform_6(%arg0: i32) -> (i32, i32) {
    %c0_i32 = arith.constant 0 : i32
    %c0_i32_0 = arith.constant 0 : i32
    %c0_i32_1 = arith.constant 0 : i32
    return %c0_i32, %c0_i32_0 : i32, i32
  }
  func.func @transform_7(%arg0: i32) -> (i32, i32) {
    %c0_i32 = arith.constant 0 : i32
    %c0_i32_0 = arith.constant 0 : i32
    %c0_i32_1 = arith.constant 0 : i32
    return %c0_i32, %c0_i32_0 : i32, i32
  }
  func.func @transform_8(%arg0: i32) -> (i32, i32) {
    %c0_i32 = arith.constant 0 : i32
    %c0_i32_0 = arith.constant 0 : i32
    %c0_i32_1 = arith.constant 0 : i32
    return %c0_i32, %c0_i32_0 : i32, i32
  }
  func.func @transform_9(%arg0: i32) -> (i32, i32) {
    %c0_i32 = arith.constant 0 : i32
    %c0_i32_0 = arith.constant 0 : i32
    %c0_i32_1 = arith.constant 0 : i32
    return %c0_i32, %c0_i32_0 : i32, i32
  }
  func.func @transform_10(%arg0: i32) -> (i32, i32) {
    %c0_i32 = arith.constant 0 : i32
    %c0_i32_0 = arith.constant 0 : i32
    %c0_i32_1 = arith.constant 0 : i32
    return %c0_i32, %c0_i32_0 : i32, i32
  }
  func.func @transform_11(%arg0: i32) -> (i32, i32) {
    %c0_i32 = arith.constant 0 : i32
    %c0_i32_0 = arith.constant 0 : i32
    %c0_i32_1 = arith.constant 0 : i32
    return %c0_i32, %c0_i32_0 : i32, i32
  }
  func.func @transform_12(%arg0: i32) -> (i32, i32) {
    %c0_i32 = arith.constant 0 : i32
    %c0_i32_0 = arith.constant 0 : i32
    %c0_i32_1 = arith.constant 0 : i32
    return %c0_i32, %c0_i32_0 : i32, i32
  }
  func.func @transform_13(%arg0: i32) -> (i32, i32, i32, i32) {
    %c0_i32 = arith.constant 0 : i32
    %c0_i32_0 = arith.constant 0 : i32
    %c0_i32_1 = arith.constant 0 : i32
    %c0_i32_2 = arith.constant 0 : i32
    return %arg0, %c0_i32, %c0_i32_0, %c0_i32_1 : i32, i32, i32, i32
  }
}

</mosaic_0001>

<llo_original>
// kernel: tpu_custom_call.1
$region0: #{tpu_custom_call.1}
  #allocation0 [shape = 'u32[]', space=smem, size = 0x4, offset = 0x4, fixed_abs, tag = 'smem constant byte address 0x4 - core index']
  #allocation1 [shape = 'u32[144,128]{1,0:T(1,128)}', space=vmem, size = 0x12000, scoped, tag = 'internal scratch']
  %s0 = inlined_call_operand.vmem [shape: f32[4,16,16,8], index: 0, kind: input, shape index: {}]
  %s1 = inlined_call_operand.vmem [shape: bf16[8,16], index: 1, kind: input, shape index: {}]
  %s2 = inlined_call_operand.vmem [shape: f32[9,16], index: 2, kind: input, shape index: {}]
  %s3 = inlined_call_operand.vmem [shape: bf16[16,128], index: 3, kind: input, shape index: {}]
  %s4 = inlined_call_operand.vmem [shape: bf16[8,128], index: 4, kind: input, shape index: {}]
  %s5 = inlined_call_operand.vmem [shape: f32[1,16], index: 5, kind: input, shape index: {}]
  %s6 = inlined_call_operand.vmem [shape: f32[1,16], index: 6, kind: input, shape index: {}]
  %s7 = inlined_call_operand.vmem [shape: f32[1,16], index: 7, kind: input, shape index: {}]
  %s8 = inlined_call_operand.vmem [shape: f32[1,16], index: 8, kind: input, shape index: {}]
  %s9 = inlined_call_operand.vmem [shape: f32[1,128], index: 9, kind: input, shape index: {}]
  %s10 = inlined_call_operand.vmem [shape: f32[1,128], index: 10, kind: input, shape index: {}]
  %s11 = inlined_call_operand.vmem [shape: f32[1,128], index: 11, kind: input, shape index: {}]
  %s12 = inlined_call_operand.vmem [shape: f32[1,128], index: 12, kind: input, shape index: {}]
  %s13 = inlined_call_operand.hbm [shape: f32[4,16,16,128], index: 13, kind: output, shape index: {}]
  %s14 = sld [smem:[#allocation0]]
  $region85: #{tpu_custom_call.1} parent=0
    _
  %s16 = ssub.s32 1, %s14
  %s17 = scalar_select 0, %s16, %s14
  $region1: #{tpu_custom_call.1} parent=0
    #allocation2 [shape = 'u8[524288]{0}', space=vmem, size = 0x80000, scoped, tag = 'output window, operand 0']
    #allocation3 [shape = 's32[2]{0}', space=sflag, size = 0x8, scoped, tag = 'scoped memory for tpu_custom_call.1']
    %18 = vsyncpa [#allocation3], 0
    %s19 = scalar_lea.sflag [#allocation3], 1
    %20 = vsyncpa %s19, 0
    loop: start=0, step=1, limit=4
    $region2: #{tpu_custom_call.1} parent=1 // loop_pre_header
      _
    $region3: #{tpu_custom_call.1} parent=1 // loop_header
      %s22 = sphi 0, %s26
      %p23 = scmp.ge.s32.totalorder %s22, 4
      %s32 = sphi 0, %s34
      %s35 = sphi 0, %s32
      %s36 = sphi 0, %s35
      %s52 = sphi 0, %s36
      %s56 = sphi 0, %s56
      %s58 = sphi 0, %s56
      %s59 = sphi 0, %s58
      %s73 = sphi 0, %s59
      %s77 = sphi 0, %s77
      %s79 = sphi 0, %s77
      %s80 = sphi 0, %s79
      %s94 = sphi 0, %s80
      %s98 = sphi 0, %s98
      %s100 = sphi 0, %s98
      %s101 = sphi 0, %s100
      %s115 = sphi 0, %s101
      %s119 = sphi 0, %s119
      %s121 = sphi 0, %s119
      %s122 = sphi 0, %s121
      %s136 = sphi 0, %s122
      %s140 = sphi 0, %s140
      %s142 = sphi 0, %s140
      %s143 = sphi 0, %s142
      %s157 = sphi 0, %s143
      %s161 = sphi 0, %s161
      %s163 = sphi 0, %s161
      %s164 = sphi 0, %s163
      %s178 = sphi 0, %s164
      %s182 = sphi 0, %s182
      %s184 = sphi 0, %s182
      %s185 = sphi 0, %s184
      %s199 = sphi 0, %s185
      %s203 = sphi 0, %s203
      %s205 = sphi 0, %s203
      %s206 = sphi 0, %s205
      %s220 = sphi 0, %s206
      %s224 = sphi 0, %s224
      %s226 = sphi 0, %s224
      %s227 = sphi 0, %s226
      %s241 = sphi 0, %s227
      %s245 = sphi 0, %s245
      %s247 = sphi 0, %s245
      %s248 = sphi 0, %s247
      %s262 = sphi 0, %s248
      %s266 = sphi 0, %s266
      %s268 = sphi 0, %s266
      %s269 = sphi 0, %s268
      %s283 = sphi 0, %s269
      %s287 = sphi 0, %s287
      %s289 = sphi 0, %s287
      %s290 = sphi 0, %s289
      %s304 = sphi 0, %s290
      %s310 = sphi 0, %s312
      %s313 = sphi 0, %s310
      %s314 = sphi 0, %s313
      %s330 = sphi 0, %s314
    $region4: #{tpu_custom_call.1} parent=1 // loop_header_branch
      %25 = sbr.rel (%p23) target = $region8
    $region5: #{tpu_custom_call.1} parent=1 // loop_body
      %s27 = ssub.s32 %s22, 1
      %s28 = ssub.s32 %s22, 2
      %s29 = sadd.s32 %s22, 1
      %s30 = ssub.s32 %s22, %s29
      %p31 = scmp.eq.s32.totalorder %s30, 0
      %s33 = sadd.s32 %s32, 1
      %s34 = scalar_select %p31, %s32, %s33
      %p37 = pneg %p31
      %p38 = scmp.eq.s32.totalorder %s22, 1
      %p39 = por %p37, %p38
      %p40 = scmp.ne.s32.totalorder %s32, %s35
      %p41 = scmp.eq.s32.totalorder %s22, 0
      %p42 = por %p40, %p41
      %p43 = scmp.ne.s32.totalorder %s32, %s35
      %p44 = scmp.eq.s32.totalorder %s27, 1
      %p45 = por %p43, %p44
      %p46 = scmp.ne.s32.totalorder %s35, %s36
      %p47 = scmp.eq.s32.totalorder %s27, 0
      %p48 = por %p46, %p47
      %p49 = scmp.ne.s32.totalorder %s35, %s36
      %p50 = scmp.eq.s32.totalorder %s28, 1
      %p51 = por %p49, %p50
      %p53 = scmp.ne.s32.totalorder %s36, %s52
      %p54 = scmp.eq.s32.totalorder %s28, 0
      %p55 = por %p53, %p54
      %s57 = sadd.s32 %s56, 1
      %p60 = scmp.eq.s32.totalorder %s22, 1
      %p61 = scmp.ne.s32.totalorder %s56, %s58
      %p62 = scmp.eq.s32.totalorder %s22, 0
      %p63 = por %p61, %p62
      %p64 = scmp.ne.s32.totalorder %s56, %s58
      %p65 = scmp.eq.s32.totalorder %s27, 1
      %p66 = por %p64, %p65
      %p67 = scmp.ne.s32.totalorder %s58, %s59
      %p68 = scmp.eq.s32.totalorder %s27, 0
      %p69 = por %p67, %p68
      %p70 = scmp.ne.s32.totalorder %s58, %s59
      %p71 = scmp.eq.s32.totalorder %s28, 1
      %p72 = por %p70, %p71
      %p74 = scmp.ne.s32.totalorder %s59, %s73
      %p75 = scmp.eq.s32.totalorder %s28, 0
      %p76 = por %p74, %p75
      %s78 = sadd.s32 %s77, 1
      %p81 = scmp.eq.s32.totalorder %s22, 1
      %p82 = scmp.ne.s32.totalorder %s77, %s79
      %p83 = scmp.eq.s32.totalorder %s22, 0
      %p84 = por %p82, %p83
      %p85 = scmp.ne.s32.totalorder %s77, %s79
      %p86 = scmp.eq.s32.totalorder %s27, 1
      %p87 = por %p85, %p86
      %p88 = scmp.ne.s32.totalorder %s79, %s80
      %p89 = scmp.eq.s32.totalorder %s27, 0
      %p90 = por %p88, %p89
      %p91 = scmp.ne.s32.totalorder %s79, %s80
      %p92 = scmp.eq.s32.totalorder %s28, 1
      %p93 = por %p91, %p92
      %p95 = scmp.ne.s32.totalorder %s80, %s94
      %p96 = scmp.eq.s32.totalorder %s28, 0
      %p97 = por %p95, %p96
      %s99 = sadd.s32 %s98, 1
      %p102 = scmp.eq.s32.totalorder %s22, 1
      %p103 = scmp.ne.s32.totalorder %s98, %s100
      %p104 = scmp.eq.s32.totalorder %s22, 0
      %p105 = por %p103, %p104
      %p106 = scmp.ne.s32.totalorder %s98, %s100
      %p107 = scmp.eq.s32.totalorder %s27, 1
      %p108 = por %p106, %p107
      %p109 = scmp.ne.s32.totalorder %s100, %s101
      %p110 = scmp.eq.s32.totalorder %s27, 0
      %p111 = por %p109, %p110
      %p112 = scmp.ne.s32.totalorder %s100, %s101
      %p113 = scmp.eq.s32.totalorder %s28, 1
      %p114 = por %p112, %p113
      %p116 = scmp.ne.s32.totalorder %s101, %s115
      %p117 = scmp.eq.s32.totalorder %s28, 0
      %p118 = por %p116, %p117
      %s120 = sadd.s32 %s119, 1
      %p123 = scmp.eq.s32.totalorder %s22, 1
      %p124 = scmp.ne.s32.totalorder %s119, %s121
      %p125 = scmp.eq.s32.totalorder %s22, 0
      %p126 = por %p124, %p125
      %p127 = scmp.ne.s32.totalorder %s119, %s121
      %p128 = scmp.eq.s32.totalorder %s27, 1
      %p129 = por %p127, %p128
      %p130 = scmp.ne.s32.totalorder %s121, %s122
      %p131 = scmp.eq.s32.totalorder %s27, 0
      %p132 = por %p130, %p131
      %p133 = scmp.ne.s32.totalorder %s121, %s122
      %p134 = scmp.eq.s32.totalorder %s28, 1
      %p135 = por %p133, %p134
      %p137 = scmp.ne.s32.totalorder %s122, %s136
      %p138 = scmp.eq.s32.totalorder %s28, 0
      %p139 = por %p137, %p138
      %s141 = sadd.s32 %s140, 1
      %p144 = scmp.eq.s32.totalorder %s22, 1
      %p145 = scmp.ne.s32.totalorder %s140, %s142
      %p146 = scmp.eq.s32.totalorder %s22, 0
      %p147 = por %p145, %p146
      %p148 = scmp.ne.s32.totalorder %s140, %s142
      %p149 = scmp.eq.s32.totalorder %s27, 1
      %p150 = por %p148, %p149
      %p151 = scmp.ne.s32.totalorder %s142, %s143
      %p152 = scmp.eq.s32.totalorder %s27, 0
      %p153 = por %p151, %p152
      %p154 = scmp.ne.s32.totalorder %s142, %s143
      %p155 = scmp.eq.s32.totalorder %s28, 1
      %p156 = por %p154, %p155
      %p158 = scmp.ne.s32.totalorder %s143, %s157
      %p159 = scmp.eq.s32.totalorder %s28, 0
      %p160 = por %p158, %p159
      %s162 = sadd.s32 %s161, 1
      %p165 = scmp.eq.s32.totalorder %s22, 1
      %p166 = scmp.ne.s32.totalorder %s161, %s163
      %p167 = scmp.eq.s32.totalorder %s22, 0
      %p168 = por %p166, %p167
      %p169 = scmp.ne.s32.totalorder %s161, %s163
      %p170 = scmp.eq.s32.totalorder %s27, 1
      %p171 = por %p169, %p170
      %p172 = scmp.ne.s32.totalorder %s163, %s164
      %p173 = scmp.eq.s32.totalorder %s27, 0
      %p174 = por %p172, %p173
      %p175 = scmp.ne.s32.totalorder %s163, %s164
      %p176 = scmp.eq.s32.totalorder %s28, 1
      %p177 = por %p175, %p176
      %p179 = scmp.ne.s32.totalorder %s164, %s178
      %p180 = scmp.eq.s32.totalorder %s28, 0
      %p181 = por %p179, %p180
      %s183 = sadd.s32 %s182, 1
      %p186 = scmp.eq.s32.totalorder %s22, 1
      %p187 = scmp.ne.s32.totalorder %s182, %s184
      %p188 = scmp.eq.s32.totalorder %s22, 0
      %p189 = por %p187, %p188
      %p190 = scmp.ne.s32.totalorder %s182, %s184
      %p191 = scmp.eq.s32.totalorder %s27, 1
      %p192 = por %p190, %p191
      %p193 = scmp.ne.s32.totalorder %s184, %s185
      %p194 = scmp.eq.s32.totalorder %s27, 0
      %p195 = por %p193, %p194
      %p196 = scmp.ne.s32.totalorder %s184, %s185
      %p197 = scmp.eq.s32.totalorder %s28, 1
      %p198 = por %p196, %p197
      %p200 = scmp.ne.s32.totalorder %s185, %s199
      %p201 = scmp.eq.s32.totalorder %s28, 0
      %p202 = por %p200, %p201
      %s204 = sadd.s32 %s203, 1
      %p207 = scmp.eq.s32.totalorder %s22, 1
      %p208 = scmp.ne.s32.totalorder %s203, %s205
      %p209 = scmp.eq.s32.totalorder %s22, 0
      %p210 = por %p208, %p209
      %p211 = scmp.ne.s32.totalorder %s203, %s205
      %p212 = scmp.eq.s32.totalorder %s27, 1
      %p213 = por %p211, %p212
      %p214 = scmp.ne.s32.totalorder %s205, %s206
      %p215 = scmp.eq.s32.totalorder %s27, 0
      %p216 = por %p214, %p215
      %p217 = scmp.ne.s32.totalorder %s205, %s206
      %p218 = scmp.eq.s32.totalorder %s28, 1
      %p219 = por %p217, %p218
      %p221 = scmp.ne.s32.totalorder %s206, %s220
      %p222 = scmp.eq.s32.totalorder %s28, 0
      %p223 = por %p221, %p222
      %s225 = sadd.s32 %s224, 1
      %p228 = scmp.eq.s32.totalorder %s22, 1
      %p229 = scmp.ne.s32.totalorder %s224, %s226
      %p230 = scmp.eq.s32.totalorder %s22, 0
      %p231 = por %p229, %p230
      %p232 = scmp.ne.s32.totalorder %s224, %s226
      %p233 = scmp.eq.s32.totalorder %s27, 1
      %p234 = por %p232, %p233
      %p235 = scmp.ne.s32.totalorder %s226, %s227
      %p236 = scmp.eq.s32.totalorder %s27, 0
      %p237 = por %p235, %p236
      %p238 = scmp.ne.s32.totalorder %s226, %s227
      %p239 = scmp.eq.s32.totalorder %s28, 1
      %p240 = por %p238, %p239
      %p242 = scmp.ne.s32.totalorder %s227, %s241
      %p243 = scmp.eq.s32.totalorder %s28, 0
      %p244 = por %p242, %p243
      %s246 = sadd.s32 %s245, 1
      %p249 = scmp.eq.s32.totalorder %s22, 1
      %p250 = scmp.ne.s32.totalorder %s245, %s247
      %p251 = scmp.eq.s32.totalorder %s22, 0
      %p252 = por %p250, %p251
      %p253 = scmp.ne.s32.totalorder %s245, %s247
      %p254 = scmp.eq.s32.totalorder %s27, 1
      %p255 = por %p253, %p254
      %p256 = scmp.ne.s32.totalorder %s247, %s248
      %p257 = scmp.eq.s32.totalorder %s27, 0
      %p258 = por %p256, %p257
      %p259 = scmp.ne.s32.totalorder %s247, %s248
      %p260 = scmp.eq.s32.totalorder %s28, 1
      %p261 = por %p259, %p260
      %p263 = scmp.ne.s32.totalorder %s248, %s262
      %p264 = scmp.eq.s32.totalorder %s28, 0
      %p265 = por %p263, %p264
      %s267 = sadd.s32 %s266, 1
      %p270 = scmp.eq.s32.totalorder %s22, 1
      %p271 = scmp.ne.s32.totalorder %s266, %s268
      %p272 = scmp.eq.s32.totalorder %s22, 0
      %p273 = por %p271, %p272
      %p274 = scmp.ne.s32.totalorder %s266, %s268
      %p275 = scmp.eq.s32.totalorder %s27, 1
      %p276 = por %p274, %p275
      %p277 = scmp.ne.s32.totalorder %s268, %s269
      %p278 = scmp.eq.s32.totalorder %s27, 0
      %p279 = por %p277, %p278
      %p280 = scmp.ne.s32.totalorder %s268, %s269
      %p281 = scmp.eq.s32.totalorder %s28, 1
      %p282 = por %p280, %p281
      %p284 = scmp.ne.s32.totalorder %s269, %s283
      %p285 = scmp.eq.s32.totalorder %s28, 0
      %p286 = por %p284, %p285
      %s288 = sadd.s32 %s287, 1
      %p291 = scmp.eq.s32.totalorder %s22, 1
      %p292 = scmp.ne.s32.totalorder %s287, %s289
      %p293 = scmp.eq.s32.totalorder %s22, 0
      %p294 = por %p292, %p293
      %p295 = scmp.ne.s32.totalorder %s287, %s289
      %p296 = scmp.eq.s32.totalorder %s27, 1
      %p297 = por %p295, %p296
      %p298 = scmp.ne.s32.totalorder %s289, %s290
      %p299 = scmp.eq.s32.totalorder %s27, 0
      %p300 = por %p298, %p299
      %p301 = scmp.ne.s32.totalorder %s289, %s290
      %p302 = scmp.eq.s32.totalorder %s28, 1
      %p303 = por %p301, %p302
      %p305 = scmp.ne.s32.totalorder %s290, %s304
      %p306 = scmp.eq.s32.totalorder %s28, 0
      %p307 = por %p305, %p306
      %s308 = ssub.s32 %s22, %s29
      %p309 = scmp.eq.s32.totalorder %s308, 0
      %s311 = sadd.s32 %s310, 1
      %s312 = scalar_select %p309, %s310, %s311
      %p315 = pneg %p309
      %p316 = scmp.eq.s32.totalorder %s22, 1
      %p317 = por %p315, %p316
      %p318 = scmp.ne.s32.totalorder %s310, %s313
      %p319 = scmp.eq.s32.totalorder %s22, 0
      %p320 = por %p318, %p319
      %p321 = scmp.ne.s32.totalorder %s310, %s313
      %p322 = scmp.eq.s32.totalorder %s27, 1
      %p323 = por %p321, %p322
      %p324 = scmp.ne.s32.totalorder %s313, %s314
      %p325 = scmp.eq.s32.totalorder %s27, 0
      %p326 = por %p324, %p325
      %p327 = scmp.ne.s32.totalorder %s313, %s314
      %p328 = scmp.eq.s32.totalorder %s28, 1
      %p329 = por %p327, %p328
      %p331 = scmp.ne.s32.totalorder %s314, %s330
      %p332 = scmp.eq.s32.totalorder %s28, 0
      %p333 = por %p331, %p332
      %p334 = scmp.le.s32.totalorder 1, %s22
      %p335 = scmp.lt.s32.totalorder %s22, 3
      %p336 = pnand %p334, %p335
      %p337 = pneg %p336
      // Predicated region
      $region9: #{tpu_custom_call.1} parent=5 // pred_check
        _
      $region10: #{tpu_custom_call.1} parent=5 // pred_check_branch
        %339 = sbr.rel (%p336) target = $region12
      $region11: #{tpu_custom_call.1} parent=5 // pred_region
        %s340 = ssub.s32 %s22, 1
        // Predicated region
        $region13: #{tpu_custom_call.1} parent=11 // pred_check
          %p341 = pneg %p69
        $region14: #{tpu_custom_call.1} parent=11 // pred_check_branch
          %343 = sbr.rel (%p341) target = $region16
        $region15: #{tpu_custom_call.1} parent=11 // pred_region
          _
        $region16: #{tpu_custom_call.1} parent=11 // pred_fallthru
          _
        // Predicated region
        $region17: #{tpu_custom_call.1} parent=11 // pred_check
          %p344 = pneg %p90
        $region18: #{tpu_custom_call.1} parent=11 // pred_check_branch
          %346 = sbr.rel (%p344) target = $region20
        $region19: #{tpu_custom_call.1} parent=11 // pred_region
          _
        $region20: #{tpu_custom_call.1} parent=11 // pred_fallthru
          _
        // Predicated region
        $region21: #{tpu_custom_call.1} parent=11 // pred_check
          %p347 = pneg %p111
        $region22: #{tpu_custom_call.1} parent=11 // pred_check_branch
          %349 = sbr.rel (%p347) target = $region24
        $region23: #{tpu_custom_call.1} parent=11 // pred_region
          _
        $region24: #{tpu_custom_call.1} parent=11 // pred_fallthru
          _
        // Predicated region
        $region25: #{tpu_custom_call.1} parent=11 // pred_check
          %p350 = pneg %p132
        $region26: #{tpu_custom_call.1} parent=11 // pred_check_branch
          %352 = sbr.rel (%p350) target = $region28
        $region27: #{tpu_custom_call.1} parent=11 // pred_region
          _
        $region28: #{tpu_custom_call.1} parent=11 // pred_fallthru
          _
        // Predicated region
        $region29: #{tpu_custom_call.1} parent=11 // pred_check
          %p353 = pneg %p153
        $region30: #{tpu_custom_call.1} parent=11 // pred_check_branch
          %355 = sbr.rel (%p353) target = $region32
        $region31: #{tpu_custom_call.1} parent=11 // pred_region
          _
        $region32: #{tpu_custom_call.1} parent=11 // pred_fallthru
          _
        // Predicated region
        $region33: #{tpu_custom_call.1} parent=11 // pred_check
          %p356 = pneg %p174
        $region34: #{tpu_custom_call.1} parent=11 // pred_check_branch
          %358 = sbr.rel (%p356) target = $region36
        $region35: #{tpu_custom_call.1} parent=11 // pred_region
          _
        $region36: #{tpu_custom_call.1} parent=11 // pred_fallthru
          _
        // Predicated region
        $region37: #{tpu_custom_call.1} parent=11 // pred_check
          %p359 = pneg %p195
        $region38: #{tpu_custom_call.1} parent=11 // pred_check_branch
          %361 = sbr.rel (%p359) target = $region40
        $region39: #{tpu_custom_call.1} parent=11 // pred_region
          _
        $region40: #{tpu_custom_call.1} parent=11 // pred_fallthru
          _
        // Predicated region
        $region41: #{tpu_custom_call.1} parent=11 // pred_check
          %p362 = pneg %p216
        $region42: #{tpu_custom_call.1} parent=11 // pred_check_branch
          %364 = sbr.rel (%p362) target = $region44
        $region43: #{tpu_custom_call.1} parent=11 // pred_region
          _
        $region44: #{tpu_custom_call.1} parent=11 // pred_fallthru
          _
        // Predicated region
        $region45: #{tpu_custom_call.1} parent=11 // pred_check
          %p365 = pneg %p237
        $region46: #{tpu_custom_call.1} parent=11 // pred_check_branch
          %367 = sbr.rel (%p365) target = $region48
        $region47: #{tpu_custom_call.1} parent=11 // pred_region
          _
        $region48: #{tpu_custom_call.1} parent=11 // pred_fallthru
          _
        // Predicated region
        $region49: #{tpu_custom_call.1} parent=11 // pred_check
          %p368 = pneg %p258
        $region50: #{tpu_custom_call.1} parent=11 // pred_check_branch
          %370 = sbr.rel (%p368) target = $region52
        $region51: #{tpu_custom_call.1} parent=11 // pred_region
          _
        $region52: #{tpu_custom_call.1} parent=11 // pred_fallthru
          _
        // Predicated region
        $region53: #{tpu_custom_call.1} parent=11 // pred_check
          %p371 = pneg %p279
        $region54: #{tpu_custom_call.1} parent=11 // pred_check_branch
          %373 = sbr.rel (%p371) target = $region56
        $region55: #{tpu_custom_call.1} parent=11 // pred_region
          _
        $region56: #{tpu_custom_call.1} parent=11 // pred_fallthru
          _
        // Predicated region
        $region57: #{tpu_custom_call.1} parent=11 // pred_check
          %p374 = pneg %p300
        $region58: #{tpu_custom_call.1} parent=11 // pred_check_branch
          %376 = sbr.rel (%p374) target = $region60
        $region59: #{tpu_custom_call.1} parent=11 // pred_region
          _
        $region60: #{tpu_custom_call.1} parent=11 // pred_fallthru
          _
      $region12: #{tpu_custom_call.1} parent=5 // pred_fallthru
        _
      %p377 = scmp.lt.s32.totalorder %s22, 2
      // Predicated region
      $region61: #{tpu_custom_call.1} parent=5 // pred_check
        %p378 = pneg %p377
      $region62: #{tpu_custom_call.1} parent=5 // pred_check_branch
        %380 = sbr.rel (%p378) target = $region64
      $region63: #{tpu_custom_call.1} parent=5 // pred_region
        // Predicated region
        $region65: #{tpu_custom_call.1} parent=63 // pred_check
          %p381 = pneg %p42
        $region66: #{tpu_custom_call.1} parent=63 // pred_check_branch
          %383 = sbr.rel (%p381) target = $region68
        $region67: #{tpu_custom_call.1} parent=63 // pred_region
          %s384 = smul.u32 2, %s22
          %p385 = scmp.lt.s32.totalorder %s384, 3
          %s386 = scalar_select %p385, %s384, 3
          %s387 = smul.addr %s386, 32
          %s388 = smul.addr %s387, 8
          %s389 = scalar_lea.vmem %s0, %s388
          %s390 = smul.u32 2, %s22
        $region68: #{tpu_custom_call.1} parent=63 // pred_fallthru
          _
      $region64: #{tpu_custom_call.1} parent=5 // pred_fallthru
        _
      %p391 = scmp.le.s32.totalorder 1, %s22
      %p392 = scmp.lt.s32.totalorder %s22, 3
      %p393 = pnand %p391, %p392
      %p394 = pneg %p393
      // Predicated region
      $region69: #{tpu_custom_call.1} parent=5 // pred_check
        _
      $region70: #{tpu_custom_call.1} parent=5 // pred_check_branch
        %396 = sbr.rel (%p393) target = $region72
      $region71: #{tpu_custom_call.1} parent=5 // pred_region
        %s397 = ssub.s32 %s22, 1
        %s398 = smul.u32 2, %s27
        %p399 = scmp.lt.s32.totalorder %s398, 3
        %s400 = scalar_select %p399, %s398, 3
        %s401 = smul.addr %s400, 32
        %s402 = smul.addr %s401, 8
        %s403 = scalar_lea.vmem %s0, %s402
        %p404 = pneg %p48
        %p405 = pneg %p45
        %p406 = pneg %p69
        %p407 = pneg %p66
        %p408 = pneg %p90
        %p409 = pneg %p87
        %p410 = pneg %p111
        %p411 = pneg %p108
        %p412 = pneg %p132
        %p413 = pneg %p129
        %p414 = pneg %p153
        %p415 = pneg %p150
        %p416 = pneg %p174
        %p417 = pneg %p171
        %p418 = pneg %p195
        %p419 = pneg %p192
        %p420 = pneg %p216
        %p421 = pneg %p213
        %p422 = pneg %p237
        %p423 = pneg %p234
        %p424 = pneg %p258
        %p425 = pneg %p255
        %p426 = pneg %p279
        %p427 = pneg %p276
        %p428 = pneg %p300
        %p429 = pneg %p297
        %p430 = pneg %p326
        %p431 = pneg %p323
        %s432 = sand.u32 %s313, 1
        %s433 = scalar_lea.sflag [#allocation3], %s432
        %s434 = sand.u32 %s313, 1
        %s435 = smul.addr %s434, 512
        %s436 = scalar_lea.vmem [#allocation2], %s435
        %s437 = smul.u32 2, %s27
        %p438 = scmp.lt.s32.totalorder %s437, 3
        %s439 = scalar_select %p438, %s437, 3
        %s440 = smul.addr %s439, 32
        %s441 = smul.addr %s440, 8
        %s442 = scalar_lea.vmem %s0, %s441
        %s443 = smul.u32 2, %s27
        %s444 = smul.u32 2, %s27
        %v446 = vld [vmem:[%s442] sm:$0xff]
        %v447 = vld [vmem:[%s442 + $0x8] sm:$0xff]
        %v448 = vld [vmem:[%s442 + $0x10] sm:$0xff]
        %v449 = vld [vmem:[%s442 + $0x18] sm:$0xff]
        %v450 = vld [vmem:[%s442 + $0x20] sm:$0xff]
        %v451 = vld [vmem:[%s442 + $0x28] sm:$0xff]
        %v452 = vld [vmem:[%s442 + $0x30] sm:$0xff]
        %v453 = vld [vmem:[%s442 + $0x38] sm:$0xff]
        %v454 = vld [vmem:[%s442 + $0x40] sm:$0xff]
        %v455 = vld [vmem:[%s442 + $0x48] sm:$0xff]
        %v456 = vld [vmem:[%s442 + $0x50] sm:$0xff]
        %v457 = vld [vmem:[%s442 + $0x58] sm:$0xff]
        %v458 = vld [vmem:[%s442 + $0x60] sm:$0xff]
        %v459 = vld [vmem:[%s442 + $0x68] sm:$0xff]
        %v460 = vld [vmem:[%s442 + $0x70] sm:$0xff]
        %v461 = vld [vmem:[%s442 + $0x78] sm:$0xff]
        %v462 = vld [vmem:[%s442 + $0x80] sm:$0xff]
        %v463 = vld [vmem:[%s442 + $0x88] sm:$0xff]
        %v464 = vld [vmem:[%s442 + $0x90] sm:$0xff]
        %v465 = vld [vmem:[%s442 + $0x98] sm:$0xff]
        %v466 = vld [vmem:[%s442 + $0xa0] sm:$0xff]
        %v467 = vld [vmem:[%s442 + $0xa8] sm:$0xff]
        %v468 = vld [vmem:[%s442 + $0xb0] sm:$0xff]
        %v469 = vld [vmem:[%s442 + $0xb8] sm:$0xff]
        %v470 = vld [vmem:[%s442 + $0xc0] sm:$0xff]
        %v471 = vld [vmem:[%s442 + $0xc8] sm:$0xff]
        %v472 = vld [vmem:[%s442 + $0xd0] sm:$0xff]
        %v473 = vld [vmem:[%s442 + $0xd8] sm:$0xff]
        %v474 = vld [vmem:[%s442 + $0xe0] sm:$0xff]
        %v475 = vld [vmem:[%s442 + $0xe8] sm:$0xff]
        %v476 = vld [vmem:[%s442 + $0xf0] sm:$0xff]
        %v477 = vld [vmem:[%s442 + $0xf8] sm:$0xff]
        %v478 = vld [vmem:[%s442 + $0x100] sm:$0xff]
        %v479 = vld [vmem:[%s442 + $0x108] sm:$0xff]
        %v480 = vld [vmem:[%s442 + $0x110] sm:$0xff]
        %v481 = vld [vmem:[%s442 + $0x118] sm:$0xff]
        %v482 = vld [vmem:[%s442 + $0x120] sm:$0xff]
        %v483 = vld [vmem:[%s442 + $0x128] sm:$0xff]
        %v484 = vld [vmem:[%s442 + $0x130] sm:$0xff]
        %v485 = vld [vmem:[%s442 + $0x138] sm:$0xff]
        %v486 = vld [vmem:[%s442 + $0x140] sm:$0xff]
        %v487 = vld [vmem:[%s442 + $0x148] sm:$0xff]
        %v488 = vld [vmem:[%s442 + $0x150] sm:$0xff]
        %v489 = vld [vmem:[%s442 + $0x158] sm:$0xff]
        %v490 = vld [vmem:[%s442 + $0x160] sm:$0xff]
        %v491 = vld [vmem:[%s442 + $0x168] sm:$0xff]
        %v492 = vld [vmem:[%s442 + $0x170] sm:$0xff]
        %v493 = vld [vmem:[%s442 + $0x178] sm:$0xff]
        %v494 = vld [vmem:[%s442 + $0x180] sm:$0xff]
        %v495 = vld [vmem:[%s442 + $0x188] sm:$0xff]
        %v496 = vld [vmem:[%s442 + $0x190] sm:$0xff]
        %v497 = vld [vmem:[%s442 + $0x198] sm:$0xff]
        %v498 = vld [vmem:[%s442 + $0x1a0] sm:$0xff]
        %v499 = vld [vmem:[%s442 + $0x1a8] sm:$0xff]
        %v500 = vld [vmem:[%s442 + $0x1b0] sm:$0xff]
        %v501 = vld [vmem:[%s442 + $0x1b8] sm:$0xff]
        %v502 = vld [vmem:[%s442 + $0x1c0] sm:$0xff]
        %v503 = vld [vmem:[%s442 + $0x1c8] sm:$0xff]
        %v504 = vld [vmem:[%s442 + $0x1d0] sm:$0xff]
        %v505 = vld [vmem:[%s442 + $0x1d8] sm:$0xff]
        %v506 = vld [vmem:[%s442 + $0x1e0] sm:$0xff]
        %v507 = vld [vmem:[%s442 + $0x1e8] sm:$0xff]
        %v508 = vld [vmem:[%s442 + $0x1f0] sm:$0xff]
        %v509 = vld [vmem:[%s442 + $0x1f8] sm:$0xff]
        %v510 = vpack.c.bf16 %v447, %v446
        %v511 = vpack.c.bf16 %v449, %v448
        %v512 = vpack.c.bf16 %v451, %v450
        %v513 = vpack.c.bf16 %v453, %v452
        %v514 = vpack.c.bf16 %v455, %v454
        %v515 = vpack.c.bf16 %v457, %v456
        %v516 = vpack.c.bf16 %v459, %v458
        %v517 = vpack.c.bf16 %v461, %v460
        %v518 = vpack.c.bf16 %v463, %v462
        %v519 = vpack.c.bf16 %v465, %v464
        %v520 = vpack.c.bf16 %v467, %v466
        %v521 = vpack.c.bf16 %v469, %v468
        %v522 = vpack.c.bf16 %v471, %v470
        %v523 = vpack.c.bf16 %v473, %v472
        %v524 = vpack.c.bf16 %v475, %v474
        %v525 = vpack.c.bf16 %v477, %v476
        %v526 = vpack.c.bf16 %v479, %v478
        %v527 = vpack.c.bf16 %v481, %v480
        %v528 = vpack.c.bf16 %v483, %v482
        %v529 = vpack.c.bf16 %v485, %v484
        %v530 = vpack.c.bf16 %v487, %v486
        %v531 = vpack.c.bf16 %v489, %v488
        %v532 = vpack.c.bf16 %v491, %v490
        %v533 = vpack.c.bf16 %v493, %v492
        %v534 = vpack.c.bf16 %v495, %v494
        %v535 = vpack.c.bf16 %v497, %v496
        %v536 = vpack.c.bf16 %v499, %v498
        %v537 = vpack.c.bf16 %v501, %v500
        %v538 = vpack.c.bf16 %v503, %v502
        %v539 = vpack.c.bf16 %v505, %v504
        %v540 = vpack.c.bf16 %v507, %v506
        %v541 = vpack.c.bf16 %v509, %v508
        %v542 = vld [vmem:[%s1] sm:$0xf]
        %v543 = vld [vmem:[%s6] sm:$0x1]
        %v545 = vlaneseq
        %v546 = vshrl.u32 %v545, 7
        %v547 = vsub.s32 0, %v546
        %v548 = vrot.slane %v543, %v547
        %vm550 = vcmask 64512
        %v552 = vsel %vm550, %v510, 0
        %v555 = vsel %vm550, %v511, 0
        %v558 = vsel %vm550, %v512, 0
        %v561 = vsel %vm550, %v513, 0
        %v564 = vsel %vm550, %v514, 0
        %v567 = vsel %vm550, %v515, 0
        %v570 = vsel %vm550, %v516, 0
        %v573 = vsel %vm550, %v517, 0
        %v576 = vsel %vm550, %v518, 0
        %v579 = vsel %vm550, %v519, 0
        %v582 = vsel %vm550, %v520, 0
        %v585 = vsel %vm550, %v521, 0
        %v588 = vsel %vm550, %v522, 0
        %v591 = vsel %vm550, %v523, 0
        %v594 = vsel %vm550, %v524, 0
        %v597 = vsel %vm550, %v525, 0
        %v600 = vsel %vm550, %v526, 0
        %v603 = vsel %vm550, %v527, 0
        %v606 = vsel %vm550, %v528, 0
        %v609 = vsel %vm550, %v529, 0
        %v612 = vsel %vm550, %v530, 0
        %v615 = vsel %vm550, %v531, 0
        %v618 = vsel %vm550, %v532, 0
        %v621 = vsel %vm550, %v533, 0
        %v624 = vsel %vm550, %v534, 0
        %v627 = vsel %vm550, %v535, 0
        %v630 = vsel %vm550, %v536, 0
        %v633 = vsel %vm550, %v537, 0
        %v636 = vsel %vm550, %v538, 0
        %v639 = vsel %vm550, %v539, 0
        %v642 = vsel %vm550, %v540, 0
        %v645 = vsel %vm550, %v541, 0
        %vm647 = vcmask 1043456
        %v649 = vsel %vm647, %v542, 0
        %651 = vmatprep.subr.bf16.mxu0 0
        %652 = vmatpush1.bf16.msra.mxu0 %v649
        %653 = vmatprep.subr.bf16.mxu0 0
        %654 = vmatpush1.bf16.msra.mxu0 0
        %655 = vmatprep.subr.bf16.mxu0 0
        %656 = vmatpush1.bf16.msra.mxu0 0
        %657 = vmatprep.subr.bf16.mxu0 0
        %658 = vmatpush1.bf16.msra.mxu0 0
        %659 = vmatprep.subr.bf16.mxu0 0
        %660 = vmatpush1.bf16.msra.mxu0 0
        %661 = vmatprep.subr.bf16.mxu0 0
        %662 = vmatpush1.bf16.msra.mxu0 0
        %663 = vmatprep.subr.bf16.mxu0 0
        %664 = vmatpush1.bf16.msra.mxu0 0
        %665 = vmatprep.subr.bf16.mxu0 0
        %666 = vmatpush1.bf16.msra.mxu0 0
        %667 = vmatprep.subr.bf16.mxu0 0
        %668 = vmatpush1.bf16.msra.mxu0 0
        %669 = vmatprep.subr.bf16.mxu0 0
        %670 = vmatpush1.bf16.msra.mxu0 0
        %671 = vmatprep.subr.bf16.mxu0 0
        %672 = vmatpush1.bf16.msra.mxu0 0
        %673 = vmatprep.subr.bf16.mxu0 0
        %674 = vmatpush1.bf16.msra.mxu0 0
        %675 = vmatprep.subr.bf16.mxu0 0
        %676 = vmatpush1.bf16.msra.mxu0 0
        %677 = vmatprep.subr.bf16.mxu0 0
        %678 = vmatpush1.bf16.msra.mxu0 0
        %679 = vmatprep.subr.bf16.mxu0 0
        %680 = vmatpush1.bf16.msra.mxu0 0
        %681 = vmatprep.subr.bf16.mxu0 0
        %682 = vmatpush1.bf16.msra.mxu0 0
        %683 = vmatprep.mubr.bf16.mxu0 0
        %684 = vmatmul.mubr.bf16.gmra.mrb[0].mxu0 %v552
        %v685 = vpop.f32.mrb[0].mxu0
        %v686 = vadd.f32 %v548, %v685
        %v687 = vpop.f32.mrb[0].mxu0
        %v688 = vpop.f32.mrb[0].mxu0
        %v689 = vadd.f32 %v548, %v688
        %v690 = vpop.f32.mrb[0].mxu0
        %691 = vmatprep.mubr.bf16.mxu0 0
        %692 = vmatmul.mubr.bf16.gmra.mrb[0].mxu0 %v555
        %v693 = vpop.f32.mrb[0].mxu0
        %v694 = vadd.f32 %v548, %v693
        %v695 = vpop.f32.mrb[0].mxu0
        %v696 = vpop.f32.mrb[0].mxu0
        %v697 = vadd.f32 %v548, %v696
        %v698 = vpop.f32.mrb[0].mxu0
        %699 = vmatprep.mubr.bf16.mxu0 0
        %700 = vmatmul.mubr.bf16.gmra.mrb[0].mxu0 %v558
        %v701 = vpop.f32.mrb[0].mxu0
        %v702 = vadd.f32 %v548, %v701
        %v703 = vpop.f32.mrb[0].mxu0
        %v704 = vpop.f32.mrb[0].mxu0
        %v705 = vadd.f32 %v548, %v704
        %v706 = vpop.f32.mrb[0].mxu0
        %707 = vmatprep.mubr.bf16.mxu0 0
        %708 = vmatmul.mubr.bf16.gmra.mrb[0].mxu0 %v561
        %v709 = vpop.f32.mrb[0].mxu0
        %v710 = vadd.f32 %v548, %v709
        %v711 = vpop.f32.mrb[0].mxu0
        %v712 = vpop.f32.mrb[0].mxu0
        %v713 = vadd.f32 %v548, %v712
        %v714 = vpop.f32.mrb[0].mxu0
        %715 = vmatprep.mubr.bf16.mxu0 0
        %716 = vmatmul.mubr.bf16.gmra.mrb[0].mxu0 %v564
        %v717 = vpop.f32.mrb[0].mxu0
        %v718 = vadd.f32 %v548, %v717
        %v719 = vpop.f32.mrb[0].mxu0
        %v720 = vpop.f32.mrb[0].mxu0
        %v721 = vadd.f32 %v548, %v720
        %v722 = vpop.f32.mrb[0].mxu0
        %723 = vmatprep.mubr.bf16.mxu0 0
        %724 = vmatmul.mubr.bf16.gmra.mrb[0].mxu0 %v567
        %v725 = vpop.f32.mrb[0].mxu0
        %v726 = vadd.f32 %v548, %v725
        %v727 = vpop.f32.mrb[0].mxu0
        %v728 = vpop.f32.mrb[0].mxu0
        %v729 = vadd.f32 %v548, %v728
        %v730 = vpop.f32.mrb[0].mxu0
        %731 = vmatprep.mubr.bf16.mxu0 0
        %732 = vmatmul.mubr.bf16.gmra.mrb[0].mxu0 %v570
        %v733 = vpop.f32.mrb[0].mxu0
        %v734 = vadd.f32 %v548, %v733
        %v735 = vpop.f32.mrb[0].mxu0
        %v736 = vpop.f32.mrb[0].mxu0
        %v737 = vadd.f32 %v548, %v736
        %v738 = vpop.f32.mrb[0].mxu0
        %739 = vmatprep.mubr.bf16.mxu0 0
        %740 = vmatmul.mubr.bf16.gmra.mrb[0].mxu0 %v573
        %v741 = vpop.f32.mrb[0].mxu0
        %v742 = vadd.f32 %v548, %v741
        %v743 = vpop.f32.mrb[0].mxu0
        %v744 = vpop.f32.mrb[0].mxu0
        %v745 = vadd.f32 %v548, %v744
        %v746 = vpop.f32.mrb[0].mxu0
        %747 = vmatprep.mubr.bf16.mxu0 0
        %748 = vmatmul.mubr.bf16.gmra.mrb[0].mxu0 %v576
        %v749 = vpop.f32.mrb[0].mxu0
        %v750 = vadd.f32 %v548, %v749
        %v751 = vpop.f32.mrb[0].mxu0
        %v752 = vpop.f32.mrb[0].mxu0
        %v753 = vadd.f32 %v548, %v752
        %v754 = vpop.f32.mrb[0].mxu0
        %755 = vmatprep.mubr.bf16.mxu0 0
        %756 = vmatmul.mubr.bf16.gmra.mrb[0].mxu0 %v579
        %v757 = vpop.f32.mrb[0].mxu0
        %v758 = vadd.f32 %v548, %v757
        %v759 = vpop.f32.mrb[0].mxu0
        %v760 = vpop.f32.mrb[0].mxu0
        %v761 = vadd.f32 %v548, %v760
        %v762 = vpop.f32.mrb[0].mxu0
        %763 = vmatprep.mubr.bf16.mxu0 0
        %764 = vmatmul.mubr.bf16.gmra.mrb[0].mxu0 %v582
        %v765 = vpop.f32.mrb[0].mxu0
        %v766 = vadd.f32 %v548, %v765
        %v767 = vpop.f32.mrb[0].mxu0
        %v768 = vpop.f32.mrb[0].mxu0
        %v769 = vadd.f32 %v548, %v768
        %v770 = vpop.f32.mrb[0].mxu0
        %771 = vmatprep.mubr.bf16.mxu0 0
        %772 = vmatmul.mubr.bf16.gmra.mrb[0].mxu0 %v585
        %v773 = vpop.f32.mrb[0].mxu0
        %v774 = vadd.f32 %v548, %v773
        %v775 = vpop.f32.mrb[0].mxu0
        %v776 = vpop.f32.mrb[0].mxu0
        %v777 = vadd.f32 %v548, %v776
        %v778 = vpop.f32.mrb[0].mxu0
        %779 = vmatprep.mubr.bf16.mxu0 0
        %780 = vmatmul.mubr.bf16.gmra.mrb[0].mxu0 %v588
        %v781 = vpop.f32.mrb[0].mxu0
        %v782 = vadd.f32 %v548, %v781
        %v783 = vpop.f32.mrb[0].mxu0
        %v784 = vpop.f32.mrb[0].mxu0
        %v785 = vadd.f32 %v548, %v784
        %v786 = vpop.f32.mrb[0].mxu0
        %787 = vmatprep.mubr.bf16.mxu0 0
        %788 = vmatmul.mubr.bf16.gmra.mrb[0].mxu0 %v591
        %v789 = vpop.f32.mrb[0].mxu0
        %v790 = vadd.f32 %v548, %v789
        %v791 = vpop.f32.mrb[0].mxu0
        %v792 = vpop.f32.mrb[0].mxu0
        %v793 = vadd.f32 %v548, %v792
        %v794 = vpop.f32.mrb[0].mxu0
        %795 = vmatprep.mubr.bf16.mxu0 0
        %796 = vmatmul.mubr.bf16.gmra.mrb[0].mxu0 %v594
        %v797 = vpop.f32.mrb[0].mxu0
        %v798 = vadd.f32 %v548, %v797
        %v799 = vpop.f32.mrb[0].mxu0
        %v800 = vpop.f32.mrb[0].mxu0
        %v801 = vadd.f32 %v548, %v800
        %v802 = vpop.f32.mrb[0].mxu0
        %803 = vmatprep.mubr.bf16.mxu0 0
        %804 = vmatmul.mubr.bf16.gmra.mrb[0].mxu0 %v597
        %v805 = vpop.f32.mrb[0].mxu0
        %v806 = vadd.f32 %v548, %v805
        %v807 = vpop.f32.mrb[0].mxu0
        %v808 = vpop.f32.mrb[0].mxu0
        %v809 = vadd.f32 %v548, %v808
        %v810 = vpop.f32.mrb[0].mxu0
        %811 = vmatprep.mubr.bf16.mxu0 0
        %812 = vmatmul.mubr.bf16.gmra.mrb[0].mxu0 %v600
        %v813 = vpop.f32.mrb[0].mxu0
        %v814 = vadd.f32 %v548, %v813
        %v815 = vpop.f32.mrb[0].mxu0
        %v816 = vpop.f32.mrb[0].mxu0
        %v817 = vadd.f32 %v548, %v816
        %v818 = vpop.f32.mrb[0].mxu0
        %819 = vmatprep.mubr.bf16.mxu0 0
        %820 = vmatmul.mubr.bf16.gmra.mrb[0].mxu0 %v603
        %v821 = vpop.f32.mrb[0].mxu0
        %v822 = vadd.f32 %v548, %v821
        %v823 = vpop.f32.mrb[0].mxu0
        %v824 = vpop.f32.mrb[0].mxu0
        %v825 = vadd.f32 %v548, %v824
        %v826 = vpop.f32.mrb[0].mxu0
        %827 = vmatprep.mubr.bf16.mxu0 0
        %828 = vmatmul.mubr.bf16.gmra.mrb[0].mxu0 %v606
        %v829 = vpop.f32.mrb[0].mxu0
        %v830 = vadd.f32 %v548, %v829
        %v831 = vpop.f32.mrb[0].mxu0
        %v832 = vpop.f32.mrb[0].mxu0
        %v833 = vadd.f32 %v548, %v832
        %v834 = vpop.f32.mrb[0].mxu0
        %835 = vmatprep.mubr.bf16.mxu0 0
        %836 = vmatmul.mubr.bf16.gmra.mrb[0].mxu0 %v609
        %v837 = vpop.f32.mrb[0].mxu0
        %v838 = vadd.f32 %v548, %v837
        %v839 = vpop.f32.mrb[0].mxu0
        %v840 = vpop.f32.mrb[0].mxu0
        %v841 = vadd.f32 %v548, %v840
        %v842 = vpop.f32.mrb[0].mxu0
        %843 = vmatprep.mubr.bf16.mxu0 0
        %844 = vmatmul.mubr.bf16.gmra.mrb[0].mxu0 %v612
        %v845 = vpop.f32.mrb[0].mxu0
        %v846 = vadd.f32 %v548, %v845
        %v847 = vpop.f32.mrb[0].mxu0
        %v848 = vpop.f32.mrb[0].mxu0
        %v849 = vadd.f32 %v548, %v848
        %v850 = vpop.f32.mrb[0].mxu0
        %851 = vmatprep.mubr.bf16.mxu0 0
        %852 = vmatmul.mubr.bf16.gmra.mrb[0].mxu0 %v615
        %v853 = vpop.f32.mrb[0].mxu0
        %v854 = vadd.f32 %v548, %v853
        %v855 = vpop.f32.mrb[0].mxu0
        %v856 = vpop.f32.mrb[0].mxu0
        %v857 = vadd.f32 %v548, %v856
        %v858 = vpop.f32.mrb[0].mxu0
        %859 = vmatprep.mubr.bf16.mxu0 0
        %860 = vmatmul.mubr.bf16.gmra.mrb[0].mxu0 %v618
        %v861 = vpop.f32.mrb[0].mxu0
        %v862 = vadd.f32 %v548, %v861
        %v863 = vpop.f32.mrb[0].mxu0
        %v864 = vpop.f32.mrb[0].mxu0
        %v865 = vadd.f32 %v548, %v864
        %v866 = vpop.f32.mrb[0].mxu0
        %867 = vmatprep.mubr.bf16.mxu0 0
        %868 = vmatmul.mubr.bf16.gmra.mrb[0].mxu0 %v621
        %v869 = vpop.f32.mrb[0].mxu0
        %v870 = vadd.f32 %v548, %v869
        %v871 = vpop.f32.mrb[0].mxu0
        %v872 = vpop.f32.mrb[0].mxu0
        %v873 = vadd.f32 %v548, %v872
        %v874 = vpop.f32.mrb[0].mxu0
        %875 = vmatprep.mubr.bf16.mxu0 0
        %876 = vmatmul.mubr.bf16.gmra.mrb[0].mxu0 %v624
        %v877 = vpop.f32.mrb[0].mxu0
        %v878 = vadd.f32 %v548, %v877
        %v879 = vpop.f32.mrb[0].mxu0
        %v880 = vpop.f32.mrb[0].mxu0
        %v881 = vadd.f32 %v548, %v880
        %v882 = vpop.f32.mrb[0].mxu0
        %883 = vmatprep.mubr.bf16.mxu0 0
        %884 = vmatmul.mubr.bf16.gmra.mrb[0].mxu0 %v627
        %v885 = vpop.f32.mrb[0].mxu0
        %v886 = vadd.f32 %v548, %v885
        %v887 = vpop.f32.mrb[0].mxu0
        %v888 = vpop.f32.mrb[0].mxu0
        %v889 = vadd.f32 %v548, %v888
        %v890 = vpop.f32.mrb[0].mxu0
        %891 = vmatprep.mubr.bf16.mxu0 0
        %892 = vmatmul.mubr.bf16.gmra.mrb[0].mxu0 %v630
        %v893 = vpop.f32.mrb[0].mxu0
        %v894 = vadd.f32 %v548, %v893
        %v895 = vpop.f32.mrb[0].mxu0
        %v896 = vpop.f32.mrb[0].mxu0
        %v897 = vadd.f32 %v548, %v896
        %v898 = vpop.f32.mrb[0].mxu0
        %899 = vmatprep.mubr.bf16.mxu0 0
        %900 = vmatmul.mubr.bf16.gmra.mrb[0].mxu0 %v633
        %v901 = vpop.f32.mrb[0].mxu0
        %v902 = vadd.f32 %v548, %v901
        %v903 = vpop.f32.mrb[0].mxu0
        %v904 = vpop.f32.mrb[0].mxu0
        %v905 = vadd.f32 %v548, %v904
        %v906 = vpop.f32.mrb[0].mxu0
        %907 = vmatprep.mubr.bf16.mxu0 0
        %908 = vmatmul.mubr.bf16.gmra.mrb[0].mxu0 %v636
        %v909 = vpop.f32.mrb[0].mxu0
        %v910 = vadd.f32 %v548, %v909
        %v911 = vpop.f32.mrb[0].mxu0
        %v912 = vpop.f32.mrb[0].mxu0
        %v913 = vadd.f32 %v548, %v912
        %v914 = vpop.f32.mrb[0].mxu0
        %915 = vmatprep.mubr.bf16.mxu0 0
        %916 = vmatmul.mubr.bf16.gmra.mrb[0].mxu0 %v639
        %v917 = vpop.f32.mrb[0].mxu0
        %v918 = vadd.f32 %v548, %v917
        %v919 = vpop.f32.mrb[0].mxu0
        %v920 = vpop.f32.mrb[0].mxu0
        %v921 = vadd.f32 %v548, %v920
        %v922 = vpop.f32.mrb[0].mxu0
        %923 = vmatprep.mubr.bf16.mxu0 0
        %924 = vmatmul.mubr.bf16.gmra.mrb[0].mxu0 %v642
        %v925 = vpop.f32.mrb[0].mxu0
        %v926 = vadd.f32 %v548, %v925
        %v927 = vpop.f32.mrb[0].mxu0
        %v928 = vpop.f32.mrb[0].mxu0
        %v929 = vadd.f32 %v548, %v928
        %v930 = vpop.f32.mrb[0].mxu0
        %931 = vmatprep.mubr.bf16.mxu0 0
        %932 = vmatmul.mubr.bf16.gmra.mrb[0].mxu0 %v645
        %v933 = vpop.f32.mrb[0].mxu0
        %v934 = vadd.f32 %v548, %v933
        %v935 = vpop.f32.mrb[0].mxu0
        %v936 = vpop.f32.mrb[0].mxu0
        %v937 = vadd.f32 %v548, %v936
        %v938 = vpop.f32.mrb[0].mxu0
        %939 = vdwg.mxu0
        %v940 = vmax.f32 %v686, 0.0
        %v941 = vmax.f32 %v689, 0.0
        %v942 = vmax.f32 %v694, 0.0
        %v943 = vmax.f32 %v697, 0.0
        %v944 = vmax.f32 %v702, 0.0
        %v945 = vmax.f32 %v705, 0.0
        %v946 = vmax.f32 %v710, 0.0
        %v947 = vmax.f32 %v713, 0.0
        %v948 = vmax.f32 %v718, 0.0
        %v949 = vmax.f32 %v721, 0.0
        %v950 = vmax.f32 %v726, 0.0
        %v951 = vmax.f32 %v729, 0.0
        %v952 = vmax.f32 %v734, 0.0
        %v953 = vmax.f32 %v737, 0.0
        %v954 = vmax.f32 %v742, 0.0
        %v955 = vmax.f32 %v745, 0.0
        %v956 = vmax.f32 %v750, 0.0
        %v957 = vmax.f32 %v753, 0.0
        %v958 = vmax.f32 %v758, 0.0
        %v959 = vmax.f32 %v761, 0.0
        %v960 = vmax.f32 %v766, 0.0
        %v961 = vmax.f32 %v769, 0.0
        %v962 = vmax.f32 %v774, 0.0
        %v963 = vmax.f32 %v777, 0.0
        %v964 = vmax.f32 %v782, 0.0
        %v965 = vmax.f32 %v785, 0.0
        %v966 = vmax.f32 %v790, 0.0
        %v967 = vmax.f32 %v793, 0.0
        %v968 = vmax.f32 %v798, 0.0
        %v969 = vmax.f32 %v801, 0.0
        %v970 = vmax.f32 %v806, 0.0
        %v971 = vmax.f32 %v809, 0.0
        %v972 = vmax.f32 %v814, 0.0
        %v973 = vmax.f32 %v817, 0.0
        %v974 = vmax.f32 %v822, 0.0
        %v975 = vmax.f32 %v825, 0.0
        %v976 = vmax.f32 %v830, 0.0
        %v977 = vmax.f32 %v833, 0.0
        %v978 = vmax.f32 %v838, 0.0
        %v979 = vmax.f32 %v841, 0.0
        %v980 = vmax.f32 %v846, 0.0
        %v981 = vmax.f32 %v849, 0.0
        %v982 = vmax.f32 %v854, 0.0
        %v983 = vmax.f32 %v857, 0.0
        %v984 = vmax.f32 %v862, 0.0
        %v985 = vmax.f32 %v865, 0.0
        %v986 = vmax.f32 %v870, 0.0
        %v987 = vmax.f32 %v873, 0.0
        %v988 = vmax.f32 %v878, 0.0
        %v989 = vmax.f32 %v881, 0.0
        %v990 = vmax.f32 %v886, 0.0
        %v991 = vmax.f32 %v889, 0.0
        %v992 = vmax.f32 %v894, 0.0
        %v993 = vmax.f32 %v897, 0.0
        %v994 = vmax.f32 %v902, 0.0
        %v995 = vmax.f32 %v905, 0.0
        %v996 = vmax.f32 %v910, 0.0
        %v997 = vmax.f32 %v913, 0.0
        %v998 = vmax.f32 %v918, 0.0
        %v999 = vmax.f32 %v921, 0.0
        %v1000 = vmax.f32 %v926, 0.0
        %v1001 = vmax.f32 %v929, 0.0
        %v1002 = vmax.f32 %v934, 0.0
        %v1003 = vmax.f32 %v937, 0.0
        %v1004 = vld [vmem:[%s2] sm:$0x1]
        %v1005 = vlaneseq
        %v1006 = vshrl.u32 %v1005, 7
        %v1007 = vsub.s32 0, %v1006
        %v1008 = vrot.slane %v1004, %v1007
        %v1009 = vmul.f32 %v1008, 0.0
        %v1010 = vmul.f32 %v940, %v1008
        %v1011 = vmul.f32 %v941, %v1008
        %v1012 = vmul.f32 %v942, %v1008
        %v1013 = vmul.f32 %v943, %v1008
        %v1014 = vmul.f32 %v944, %v1008
        %v1015 = vmul.f32 %v945, %v1008
        %v1016 = vmul.f32 %v946, %v1008
        %v1017 = vmul.f32 %v947, %v1008
        %v1018 = vmul.f32 %v948, %v1008
        %v1019 = vmul.f32 %v949, %v1008
        %v1020 = vmul.f32 %v950, %v1008
        %v1021 = vmul.f32 %v951, %v1008
        %v1022 = vmul.f32 %v952, %v1008
        %v1023 = vmul.f32 %v953, %v1008
        %v1024 = vmul.f32 %v954, %v1008
        %v1025 = vmul.f32 %v955, %v1008
        %v1026 = vmul.f32 %v956, %v1008
        %v1027 = vmul.f32 %v957, %v1008
        %v1028 = vmul.f32 %v958, %v1008
        %v1029 = vmul.f32 %v959, %v1008
        %v1030 = vmul.f32 %v960, %v1008
        %v1031 = vmul.f32 %v961, %v1008
        %v1032 = vmul.f32 %v962, %v1008
        %v1033 = vmul.f32 %v963, %v1008
        %v1034 = vmul.f32 %v964, %v1008
        %v1035 = vmul.f32 %v965, %v1008
        %v1036 = vmul.f32 %v966, %v1008
        %v1037 = vmul.f32 %v967, %v1008
        %v1038 = vmul.f32 %v968, %v1008
        %v1039 = vmul.f32 %v969, %v1008
        %v1040 = vmul.f32 %v972, %v1008
        %v1041 = vmul.f32 %v973, %v1008
        %v1042 = vmul.f32 %v974, %v1008
        %v1043 = vmul.f32 %v975, %v1008
        %v1044 = vmul.f32 %v976, %v1008
        %v1045 = vmul.f32 %v977, %v1008
        %v1046 = vmul.f32 %v978, %v1008
        %v1047 = vmul.f32 %v979, %v1008
        %v1048 = vmul.f32 %v980, %v1008
        %v1049 = vmul.f32 %v981, %v1008
        %v1050 = vmul.f32 %v982, %v1008
        %v1051 = vmul.f32 %v983, %v1008
        %v1052 = vmul.f32 %v984, %v1008
        %v1053 = vmul.f32 %v985, %v1008
        %v1054 = vmul.f32 %v986, %v1008
        %v1055 = vmul.f32 %v987, %v1008
        %v1056 = vmul.f32 %v988, %v1008
        %v1057 = vmul.f32 %v989, %v1008
        %v1058 = vmul.f32 %v990, %v1008
        %v1059 = vmul.f32 %v991, %v1008
        %v1060 = vmul.f32 %v992, %v1008
        %v1061 = vmul.f32 %v993, %v1008
        %v1062 = vmul.f32 %v994, %v1008
        %v1063 = vmul.f32 %v995, %v1008
        %v1064 = vmul.f32 %v996, %v1008
        %v1065 = vmul.f32 %v997, %v1008
        %v1066 = vmul.f32 %v998, %v1008
        %v1067 = vmul.f32 %v999, %v1008
        %v1068 = vmul.f32 %v1000, %v1008
        %v1069 = vmul.f32 %v1001, %v1008
        %v1070 = vadd.f32 %v1009, 0.0
        %v1071 = vadd.f32 %v1010, 0.0
        %v1072 = vadd.f32 %v1011, 0.0
        %v1073 = vadd.f32 %v1012, 0.0
        %v1074 = vadd.f32 %v1013, 0.0
        %v1075 = vadd.f32 %v1014, 0.0
        %v1076 = vadd.f32 %v1015, 0.0
        %v1077 = vadd.f32 %v1016, 0.0
        %v1078 = vadd.f32 %v1017, 0.0
        %v1079 = vadd.f32 %v1018, 0.0
        %v1080 = vadd.f32 %v1019, 0.0
        %v1081 = vadd.f32 %v1020, 0.0
        %v1082 = vadd.f32 %v1021, 0.0
        %v1083 = vadd.f32 %v1022, 0.0
        %v1084 = vadd.f32 %v1023, 0.0
        %v1085 = vadd.f32 %v1024, 0.0
        %v1086 = vadd.f32 %v1025, 0.0
        %v1087 = vadd.f32 %v1026, 0.0
        %v1088 = vadd.f32 %v1027, 0.0
        %v1089 = vadd.f32 %v1028, 0.0
        %v1090 = vadd.f32 %v1029, 0.0
        %v1091 = vadd.f32 %v1030, 0.0
        %v1092 = vadd.f32 %v1031, 0.0
        %v1093 = vadd.f32 %v1032, 0.0
        %v1094 = vadd.f32 %v1033, 0.0
        %v1095 = vadd.f32 %v1034, 0.0
        %v1096 = vadd.f32 %v1035, 0.0
        %v1097 = vadd.f32 %v1036, 0.0
        %v1098 = vadd.f32 %v1037, 0.0
        %v1099 = vadd.f32 %v1038, 0.0
        %v1100 = vadd.f32 %v1039, 0.0
        %v1101 = vadd.f32 %v1040, 0.0
        %v1102 = vadd.f32 %v1041, 0.0
        %v1103 = vadd.f32 %v1042, 0.0
        %v1104 = vadd.f32 %v1043, 0.0
        %v1105 = vadd.f32 %v1044, 0.0
        %v1106 = vadd.f32 %v1045, 0.0
        %v1107 = vadd.f32 %v1046, 0.0
        %v1108 = vadd.f32 %v1047, 0.0
        %v1109 = vadd.f32 %v1048, 0.0
        %v1110 = vadd.f32 %v1049, 0.0
        %v1111 = vadd.f32 %v1050, 0.0
        %v1112 = vadd.f32 %v1051, 0.0
        %v1113 = vadd.f32 %v1052, 0.0
        %v1114 = vadd.f32 %v1053, 0.0
        %v1115 = vadd.f32 %v1054, 0.0
        %v1116 = vadd.f32 %v1055, 0.0
        %v1117 = vadd.f32 %v1056, 0.0
        %v1118 = vadd.f32 %v1057, 0.0
        %v1119 = vadd.f32 %v1058, 0.0
        %v1120 = vadd.f32 %v1059, 0.0
        %v1121 = vadd.f32 %v1060, 0.0
        %v1122 = vadd.f32 %v1061, 0.0
        %v1123 = vadd.f32 %v1062, 0.0
        %v1124 = vadd.f32 %v1063, 0.0
        %v1125 = vadd.f32 %v1064, 0.0
        %v1126 = vadd.f32 %v1065, 0.0
        %v1127 = vadd.f32 %v1066, 0.0
        %v1128 = vadd.f32 %v1067, 0.0
        %v1129 = vadd.f32 %v1068, 0.0
        %v1130 = vadd.f32 %v1069, 0.0
        %v1131 = vld [vmem:[%s2 + $0x1] sm:$0x1]
        %v1132 = vlaneseq
        %v1133 = vshrl.u32 %v1132, 7
        %v1134 = vsub.s32 0, %v1133
        %v1135 = vrot.slane %v1131, %v1134
        %v1136 = vmul.f32 %v1135, 0.0
        %v1137 = vmul.f32 %v940, %v1135
        %v1138 = vmul.f32 %v941, %v1135
        %v1139 = vmul.f32 %v942, %v1135
        %v1140 = vmul.f32 %v943, %v1135
        %v1141 = vmul.f32 %v944, %v1135
        %v1142 = vmul.f32 %v945, %v1135
        %v1143 = vmul.f32 %v946, %v1135
        %v1144 = vmul.f32 %v947, %v1135
        %v1145 = vmul.f32 %v948, %v1135
        %v1146 = vmul.f32 %v949, %v1135
        %v1147 = vmul.f32 %v950, %v1135
        %v1148 = vmul.f32 %v951, %v1135
        %v1149 = vmul.f32 %v952, %v1135
        %v1150 = vmul.f32 %v953, %v1135
        %v1151 = vmul.f32 %v954, %v1135
        %v1152 = vmul.f32 %v955, %v1135
        %v1153 = vmul.f32 %v956, %v1135
        %v1154 = vmul.f32 %v957, %v1135
        %v1155 = vmul.f32 %v958, %v1135
        %v1156 = vmul.f32 %v959, %v1135
        %v1157 = vmul.f32 %v960, %v1135
        %v1158 = vmul.f32 %v961, %v1135
        %v1159 = vmul.f32 %v962, %v1135
        %v1160 = vmul.f32 %v963, %v1135
        %v1161 = vmul.f32 %v964, %v1135
        %v1162 = vmul.f32 %v965, %v1135
        %v1163 = vmul.f32 %v966, %v1135
        %v1164 = vmul.f32 %v967, %v1135
        %v1165 = vmul.f32 %v968, %v1135
        %v1166 = vmul.f32 %v969, %v1135
        %v1167 = vmul.f32 %v972, %v1135
        %v1168 = vmul.f32 %v973, %v1135
        %v1169 = vmul.f32 %v974, %v1135
        %v1170 = vmul.f32 %v975, %v1135
        %v1171 = vmul.f32 %v976, %v1135
        %v1172 = vmul.f32 %v977, %v1135
        %v1173 = vmul.f32 %v978, %v1135
        %v1174 = vmul.f32 %v979, %v1135
        %v1175 = vmul.f32 %v980, %v1135
        %v1176 = vmul.f32 %v981, %v1135
        %v1177 = vmul.f32 %v982, %v1135
        %v1178 = vmul.f32 %v983, %v1135
        %v1179 = vmul.f32 %v984, %v1135
        %v1180 = vmul.f32 %v985, %v1135
        %v1181 = vmul.f32 %v986, %v1135
        %v1182 = vmul.f32 %v987, %v1135
        %v1183 = vmul.f32 %v988, %v1135
        %v1184 = vmul.f32 %v989, %v1135
        %v1185 = vmul.f32 %v990, %v1135
        %v1186 = vmul.f32 %v991, %v1135
        %v1187 = vmul.f32 %v992, %v1135
        %v1188 = vmul.f32 %v993, %v1135
        %v1189 = vmul.f32 %v994, %v1135
        %v1190 = vmul.f32 %v995, %v1135
        %v1191 = vmul.f32 %v996, %v1135
        %v1192 = vmul.f32 %v997, %v1135
        %v1193 = vmul.f32 %v998, %v1135
        %v1194 = vmul.f32 %v999, %v1135
        %v1195 = vmul.f32 %v1000, %v1135
        %v1196 = vmul.f32 %v1001, %v1135
        %vm1258 = vcmask 1046528
        %v1259 = vrot.slane %v1136, 1
        %v1260 = vsel %vm1258, %v1259, %v1259
        %v1261 = vrot.slane %v1137, 1
        %v1262 = vrot.slane %v1138, 1
        %v1263 = vsel %vm1258, %v1261, %v1262
        %v1264 = vrot.slane %v1139, 1
        %v1265 = vrot.slane %v1140, 1
        %v1266 = vsel %vm1258, %v1264, %v1265
        %v1267 = vrot.slane %v1141, 1
        %v1268 = vrot.slane %v1142, 1
        %v1269 = vsel %vm1258, %v1267, %v1268
        %v1270 = vrot.slane %v1143, 1
        %v1271 = vrot.slane %v1144, 1
        %v1272 = vsel %vm1258, %v1270, %v1271
        %v1273 = vrot.slane %v1145, 1
        %v1274 = vrot.slane %v1146, 1
        %v1275 = vsel %vm1258, %v1273, %v1274
        %v1276 = vrot.slane %v1147, 1
        %v1277 = vrot.slane %v1148, 1
        %v1278 = vsel %vm1258, %v1276, %v1277
        %v1279 = vrot.slane %v1149, 1
        %v1280 = vrot.slane %v1150, 1
        %v1281 = vsel %vm1258, %v1279, %v1280
        %v1282 = vrot.slane %v1151, 1
        %v1283 = vrot.slane %v1152, 1
        %v1284 = vsel %vm1258, %v1282, %v1283
        %v1285 = vrot.slane %v1153, 1
        %v1286 = vrot.slane %v1154, 1
        %v1287 = vsel %vm1258, %v1285, %v1286
        %v1288 = vrot.slane %v1155, 1
        %v1289 = vrot.slane %v1156, 1
        %v1290 = vsel %vm1258, %v1288, %v1289
        %v1291 = vrot.slane %v1157, 1
        %v1292 = vrot.slane %v1158, 1
        %v1293 = vsel %vm1258, %v1291, %v1292
        %v1294 = vrot.slane %v1159, 1
        %v1295 = vrot.slane %v1160, 1
        %v1296 = vsel %vm1258, %v1294, %v1295
        %v1297 = vrot.slane %v1161, 1
        %v1298 = vrot.slane %v1162, 1
        %v1299 = vsel %vm1258, %v1297, %v1298
        %v1300 = vrot.slane %v1163, 1
        %v1301 = vrot.slane %v1164, 1
        %v1302 = vsel %vm1258, %v1300, %v1301
        %v1303 = vrot.slane %v1165, 1
        %v1304 = vrot.slane %v1166, 1
        %v1305 = vsel %vm1258, %v1303, %v1304
        %v1306 = vrot.slane %v1167, 1
        %v1307 = vrot.slane %v1168, 1
        %v1308 = vsel %vm1258, %v1306, %v1307
        %v1309 = vrot.slane %v1169, 1
        %v1310 = vrot.slane %v1170, 1
        %v1311 = vsel %vm1258, %v1309, %v1310
        %v1312 = vrot.slane %v1171, 1
        %v1313 = vrot.slane %v1172, 1
        %v1314 = vsel %vm1258, %v1312, %v1313
        %v1315 = vrot.slane %v1173, 1
        %v1316 = vrot.slane %v1174, 1
        %v1317 = vsel %vm1258, %v1315, %v1316
        %v1318 = vrot.slane %v1175, 1
        %v1319 = vrot.slane %v1176, 1
        %v1320 = vsel %vm1258, %v1318, %v1319
        %v1321 = vrot.slane %v1177, 1
        %v1322 = vrot.slane %v1178, 1
        %v1323 = vsel %vm1258, %v1321, %v1322
        %v1324 = vrot.slane %v1179, 1
        %v1325 = vrot.slane %v1180, 1
        %v1326 = vsel %vm1258, %v1324, %v1325
        %v1327 = vrot.slane %v1181, 1
        %v1328 = vrot.slane %v1182, 1
        %v1329 = vsel %vm1258, %v1327, %v1328
        %v1330 = vrot.slane %v1183, 1
        %v1331 = vrot.slane %v1184, 1
        %v1332 = vsel %vm1258, %v1330, %v1331
        %v1333 = vrot.slane %v1185, 1
        %v1334 = vrot.slane %v1186, 1
        %v1335 = vsel %vm1258, %v1333, %v1334
        %v1336 = vrot.slane %v1187, 1
        %v1337 = vrot.slane %v1188, 1
        %v1338 = vsel %vm1258, %v1336, %v1337
        %v1339 = vrot.slane %v1189, 1
        %v1340 = vrot.slane %v1190, 1
        %v1341 = vsel %vm1258, %v1339, %v1340
        %v1342 = vrot.slane %v1191, 1
        %v1343 = vrot.slane %v1192, 1
        %v1344 = vsel %vm1258, %v1342, %v1343
        %v1345 = vrot.slane %v1193, 1
        %v1346 = vrot.slane %v1194, 1
        %v1347 = vsel %vm1258, %v1345, %v1346
        %v1348 = vrot.slane %v1195, 1
        %v1349 = vrot.slane %v1196, 1
        %v1350 = vsel %vm1258, %v1348, %v1349
        %v1443 = vadd.f32 %v1070, %v1259
        %v1444 = vadd.f32 %v1070, %v1260
        %v1445 = vadd.f32 %v1070, %v1261
        %v1446 = vadd.f32 %v1071, %v1263
        %v1447 = vadd.f32 %v1072, %v1262
        %v1448 = vadd.f32 %v1070, %v1264
        %v1449 = vadd.f32 %v1073, %v1266
        %v1450 = vadd.f32 %v1074, %v1265
        %v1451 = vadd.f32 %v1070, %v1267
        %v1452 = vadd.f32 %v1075, %v1269
        %v1453 = vadd.f32 %v1076, %v1268
        %v1454 = vadd.f32 %v1070, %v1270
        %v1455 = vadd.f32 %v1077, %v1272
        %v1456 = vadd.f32 %v1078, %v1271
        %v1457 = vadd.f32 %v1070, %v1273
        %v1458 = vadd.f32 %v1079, %v1275
        %v1459 = vadd.f32 %v1080, %v1274
        %v1460 = vadd.f32 %v1070, %v1276
        %v1461 = vadd.f32 %v1081, %v1278
        %v1462 = vadd.f32 %v1082, %v1277
        %v1463 = vadd.f32 %v1070, %v1279
        %v1464 = vadd.f32 %v1083, %v1281
        %v1465 = vadd.f32 %v1084, %v1280
        %v1466 = vadd.f32 %v1070, %v1282
        %v1467 = vadd.f32 %v1085, %v1284
        %v1468 = vadd.f32 %v1086, %v1283
        %v1469 = vadd.f32 %v1070, %v1285
        %v1470 = vadd.f32 %v1087, %v1287
        %v1471 = vadd.f32 %v1088, %v1286
        %v1472 = vadd.f32 %v1070, %v1288
        %v1473 = vadd.f32 %v1089, %v1290
        %v1474 = vadd.f32 %v1090, %v1289
        %v1475 = vadd.f32 %v1070, %v1291
        %v1476 = vadd.f32 %v1091, %v1293
        %v1477 = vadd.f32 %v1092, %v1292
        %v1478 = vadd.f32 %v1070, %v1294
        %v1479 = vadd.f32 %v1093, %v1296
        %v1480 = vadd.f32 %v1094, %v1295
        %v1481 = vadd.f32 %v1070, %v1297
        %v1482 = vadd.f32 %v1095, %v1299
        %v1483 = vadd.f32 %v1096, %v1298
        %v1484 = vadd.f32 %v1070, %v1300
        %v1485 = vadd.f32 %v1097, %v1302
        %v1486 = vadd.f32 %v1098, %v1301
        %v1487 = vadd.f32 %v1070, %v1303
        %v1488 = vadd.f32 %v1099, %v1305
        %v1489 = vadd.f32 %v1100, %v1304
        %v1490 = vadd.f32 %v1070, %v1306
        %v1491 = vadd.f32 %v1101, %v1308
        %v1492 = vadd.f32 %v1102, %v1307
        %v1493 = vadd.f32 %v1070, %v1309
        %v1494 = vadd.f32 %v1103, %v1311
        %v1495 = vadd.f32 %v1104, %v1310
        %v1496 = vadd.f32 %v1070, %v1312
        %v1497 = vadd.f32 %v1105, %v1314
        %v1498 = vadd.f32 %v1106, %v1313
        %v1499 = vadd.f32 %v1070, %v1315
        %v1500 = vadd.f32 %v1107, %v1317
        %v1501 = vadd.f32 %v1108, %v1316
        %v1502 = vadd.f32 %v1070, %v1318
        %v1503 = vadd.f32 %v1109, %v1320
        %v1504 = vadd.f32 %v1110, %v1319
        %v1505 = vadd.f32 %v1070, %v1321
        %v1506 = vadd.f32 %v1111, %v1323
        %v1507 = vadd.f32 %v1112, %v1322
        %v1508 = vadd.f32 %v1070, %v1324
        %v1509 = vadd.f32 %v1113, %v1326
        %v1510 = vadd.f32 %v1114, %v1325
        %v1511 = vadd.f32 %v1070, %v1327
        %v1512 = vadd.f32 %v1115, %v1329
        %v1513 = vadd.f32 %v1116, %v1328
        %v1514 = vadd.f32 %v1070, %v1330
        %v1515 = vadd.f32 %v1117, %v1332
        %v1516 = vadd.f32 %v1118, %v1331
        %v1517 = vadd.f32 %v1070, %v1333
        %v1518 = vadd.f32 %v1119, %v1335
        %v1519 = vadd.f32 %v1120, %v1334
        %v1520 = vadd.f32 %v1070, %v1336
        %v1521 = vadd.f32 %v1121, %v1338
        %v1522 = vadd.f32 %v1122, %v1337
        %v1523 = vadd.f32 %v1070, %v1339
        %v1524 = vadd.f32 %v1123, %v1341
        %v1525 = vadd.f32 %v1124, %v1340
        %v1526 = vadd.f32 %v1070, %v1342
        %v1527 = vadd.f32 %v1125, %v1344
        %v1528 = vadd.f32 %v1126, %v1343
        %v1529 = vadd.f32 %v1070, %v1345
        %v1530 = vadd.f32 %v1127, %v1347
        %v1531 = vadd.f32 %v1128, %v1346
        %v1532 = vadd.f32 %v1070, %v1348
        %v1533 = vadd.f32 %v1129, %v1350
        %v1534 = vadd.f32 %v1130, %v1349
        %v1535 = vld [vmem:[%s2 + $0x2] sm:$0x1]
        %v1536 = vlaneseq
        %v1537 = vshrl.u32 %v1536, 7
        %v1538 = vsub.s32 0, %v1537
        %v1539 = vrot.slane %v1535, %v1538
        %v1540 = vmul.f32 %v1539, 0.0
        %v1541 = vmul.f32 %v940, %v1539
        %v1542 = vmul.f32 %v941, %v1539
        %v1543 = vmul.f32 %v942, %v1539
        %v1544 = vmul.f32 %v943, %v1539
        %v1545 = vmul.f32 %v944, %v1539
        %v1546 = vmul.f32 %v945, %v1539
        %v1547 = vmul.f32 %v946, %v1539
        %v1548 = vmul.f32 %v947, %v1539
        %v1549 = vmul.f32 %v948, %v1539
        %v1550 = vmul.f32 %v949, %v1539
        %v1551 = vmul.f32 %v950, %v1539
        %v1552 = vmul.f32 %v951, %v1539
        %v1553 = vmul.f32 %v952, %v1539
        %v1554 = vmul.f32 %v953, %v1539
        %v1555 = vmul.f32 %v954, %v1539
        %v1556 = vmul.f32 %v955, %v1539
        %v1557 = vmul.f32 %v956, %v1539
        %v1558 = vmul.f32 %v957, %v1539
        %v1559 = vmul.f32 %v958, %v1539
        %v1560 = vmul.f32 %v959, %v1539
        %v1561 = vmul.f32 %v960, %v1539
        %v1562 = vmul.f32 %v961, %v1539
        %v1563 = vmul.f32 %v962, %v1539
        %v1564 = vmul.f32 %v963, %v1539
        %v1565 = vmul.f32 %v964, %v1539
        %v1566 = vmul.f32 %v965, %v1539
        %v1567 = vmul.f32 %v966, %v1539
        %v1568 = vmul.f32 %v967, %v1539
        %v1569 = vmul.f32 %v968, %v1539
        %v1570 = vmul.f32 %v969, %v1539
        %v1571 = vmul.f32 %v972, %v1539
        %v1572 = vmul.f32 %v973, %v1539
        %v1573 = vmul.f32 %v974, %v1539
        %v1574 = vmul.f32 %v975, %v1539
        %v1575 = vmul.f32 %v976, %v1539
        %v1576 = vmul.f32 %v977, %v1539
        %v1577 = vmul.f32 %v978, %v1539
        %v1578 = vmul.f32 %v979, %v1539
        %v1579 = vmul.f32 %v980, %v1539
        %v1580 = vmul.f32 %v981, %v1539
        %v1581 = vmul.f32 %v982, %v1539
        %v1582 = vmul.f32 %v983, %v1539
        %v1583 = vmul.f32 %v984, %v1539
        %v1584 = vmul.f32 %v985, %v1539
        %v1585 = vmul.f32 %v986, %v1539
        %v1586 = vmul.f32 %v987, %v1539
        %v1587 = vmul.f32 %v988, %v1539
        %v1588 = vmul.f32 %v989, %v1539
        %v1589 = vmul.f32 %v990, %v1539
        %v1590 = vmul.f32 %v991, %v1539
        %v1591 = vmul.f32 %v992, %v1539
        %v1592 = vmul.f32 %v993, %v1539
        %v1593 = vmul.f32 %v994, %v1539
        %v1594 = vmul.f32 %v995, %v1539
        %v1595 = vmul.f32 %v996, %v1539
        %v1596 = vmul.f32 %v997, %v1539
        %v1597 = vmul.f32 %v998, %v1539
        %v1598 = vmul.f32 %v999, %v1539
        %v1599 = vmul.f32 %v1000, %v1539
        %v1600 = vmul.f32 %v1001, %v1539
        %vm1662 = vcmask 1045504
        %v1663 = vrot.slane %v1540, 2
        %v1664 = vsel %vm1662, %v1663, %v1663
        %v1665 = vrot.slane %v1541, 2
        %v1666 = vrot.slane %v1542, 2
        %v1667 = vsel %vm1662, %v1665, %v1666
        %v1668 = vsel %vm1662, %v1666, %v1663
        %v1669 = vrot.slane %v1543, 2
        %v1670 = vrot.slane %v1544, 2
        %v1671 = vsel %vm1662, %v1669, %v1670
        %v1672 = vsel %vm1662, %v1670, %v1663
        %v1673 = vrot.slane %v1545, 2
        %v1674 = vrot.slane %v1546, 2
        %v1675 = vsel %vm1662, %v1673, %v1674
        %v1676 = vsel %vm1662, %v1674, %v1663
        %v1677 = vrot.slane %v1547, 2
        %v1678 = vrot.slane %v1548, 2
        %v1679 = vsel %vm1662, %v1677, %v1678
        %v1680 = vsel %vm1662, %v1678, %v1663
        %v1681 = vrot.slane %v1549, 2
        %v1682 = vrot.slane %v1550, 2
        %v1683 = vsel %vm1662, %v1681, %v1682
        %v1684 = vsel %vm1662, %v1682, %v1663
        %v1685 = vrot.slane %v1551, 2
        %v1686 = vrot.slane %v1552, 2
        %v1687 = vsel %vm1662, %v1685, %v1686
        %v1688 = vsel %vm1662, %v1686, %v1663
        %v1689 = vrot.slane %v1553, 2
        %v1690 = vrot.slane %v1554, 2
        %v1691 = vsel %vm1662, %v1689, %v1690
        %v1692 = vsel %vm1662, %v1690, %v1663
        %v1693 = vrot.slane %v1555, 2
        %v1694 = vrot.slane %v1556, 2
        %v1695 = vsel %vm1662, %v1693, %v1694
        %v1696 = vsel %vm1662, %v1694, %v1663
        %v1697 = vrot.slane %v1557, 2
        %v1698 = vrot.slane %v1558, 2
        %v1699 = vsel %vm1662, %v1697, %v1698
        %v1700 = vsel %vm1662, %v1698, %v1663
        %v1701 = vrot.slane %v1559, 2
        %v1702 = vrot.slane %v1560, 2
        %v1703 = vsel %vm1662, %v1701, %v1702
        %v1704 = vsel %vm1662, %v1702, %v1663
        %v1705 = vrot.slane %v1561, 2
        %v1706 = vrot.slane %v1562, 2
        %v1707 = vsel %vm1662, %v1705, %v1706
        %v1708 = vsel %vm1662, %v1706, %v1663
        %v1709 = vrot.slane %v1563, 2
        %v1710 = vrot.slane %v1564, 2
        %v1711 = vsel %vm1662, %v1709, %v1710
        %v1712 = vsel %vm1662, %v1710, %v1663
        %v1713 = vrot.slane %v1565, 2
        %v1714 = vrot.slane %v1566, 2
        %v1715 = vsel %vm1662, %v1713, %v1714
        %v1716 = vsel %vm1662, %v1714, %v1663
        %v1717 = vrot.slane %v1567, 2
        %v1718 = vrot.slane %v1568, 2
        %v1719 = vsel %vm1662, %v1717, %v1718
        %v1720 = vsel %vm1662, %v1718, %v1663
        %v1721 = vrot.slane %v1569, 2
        %v1722 = vrot.slane %v1570, 2
        %v1723 = vsel %vm1662, %v1721, %v1722
        %v1724 = vsel %vm1662, %v1722, %v1663
        %v1725 = vrot.slane %v1571, 2
        %v1726 = vrot.slane %v1572, 2
        %v1727 = vsel %vm1662, %v1725, %v1726
        %v1728 = vsel %vm1662, %v1726, %v1663
        %v1729 = vrot.slane %v1573, 2
        %v1730 = vrot.slane %v1574, 2
        %v1731 = vsel %vm1662, %v1729, %v1730
        %v1732 = vsel %vm1662, %v1730, %v1663
        %v1733 = vrot.slane %v1575, 2
        %v1734 = vrot.slane %v1576, 2
        %v1735 = vsel %vm1662, %v1733, %v1734
        %v1736 = vsel %vm1662, %v1734, %v1663
        %v1737 = vrot.slane %v1577, 2
        %v1738 = vrot.slane %v1578, 2
        %v1739 = vsel %vm1662, %v1737, %v1738
        %v1740 = vsel %vm1662, %v1738, %v1663
        %v1741 = vrot.slane %v1579, 2
        %v1742 = vrot.slane %v1580, 2
        %v1743 = vsel %vm1662, %v1741, %v1742
        %v1744 = vsel %vm1662, %v1742, %v1663
        %v1745 = vrot.slane %v1581, 2
        %v1746 = vrot.slane %v1582, 2
        %v1747 = vsel %vm1662, %v1745, %v1746
        %v1748 = vsel %vm1662, %v1746, %v1663
        %v1749 = vrot.slane %v1583, 2
        %v1750 = vrot.slane %v1584, 2
        %v1751 = vsel %vm1662, %v1749, %v1750
        %v1752 = vsel %vm1662, %v1750, %v1663
        %v1753 = vrot.slane %v1585, 2
        %v1754 = vrot.slane %v1586, 2
        %v1755 = vsel %vm1662, %v1753, %v1754
        %v1756 = vsel %vm1662, %v1754, %v1663
        %v1757 = vrot.slane %v1587, 2
        %v1758 = vrot.slane %v1588, 2
        %v1759 = vsel %vm1662, %v1757, %v1758
        %v1760 = vsel %vm1662, %v1758, %v1663
        %v1761 = vrot.slane %v1589, 2
        %v1762 = vrot.slane %v1590, 2
        %v1763 = vsel %vm1662, %v1761, %v1762
        %v1764 = vsel %vm1662, %v1762, %v1663
        %v1765 = vrot.slane %v1591, 2
        %v1766 = vrot.slane %v1592, 2
        %v1767 = vsel %vm1662, %v1765, %v1766
        %v1768 = vsel %vm1662, %v1766, %v1663
        %v1769 = vrot.slane %v1593, 2
        %v1770 = vrot.slane %v1594, 2
        %v1771 = vsel %vm1662, %v1769, %v1770
        %v1772 = vsel %vm1662, %v1770, %v1663
        %v1773 = vrot.slane %v1595, 2
        %v1774 = vrot.slane %v1596, 2
        %v1775 = vsel %vm1662, %v1773, %v1774
        %v1776 = vsel %vm1662, %v1774, %v1663
        %v1777 = vrot.slane %v1597, 2
        %v1778 = vrot.slane %v1598, 2
        %v1779 = vsel %vm1662, %v1777, %v1778
        %v1780 = vsel %vm1662, %v1778, %v1663
        %v1781 = vrot.slane %v1599, 2
        %v1782 = vrot.slane %v1600, 2
        %v1783 = vsel %vm1662, %v1781, %v1782
        %v1784 = vsel %vm1662, %v1782, %v1663
        %v1877 = vadd.f32 %v1443, %v1663
        %v1878 = vadd.f32 %v1444, %v1664
        %v1879 = vadd.f32 %v1443, %v1664
        %v1880 = vadd.f32 %v1445, %v1665
        %v1881 = vadd.f32 %v1446, %v1667
        %v1882 = vadd.f32 %v1447, %v1668
        %v1883 = vadd.f32 %v1448, %v1669
        %v1884 = vadd.f32 %v1449, %v1671
        %v1885 = vadd.f32 %v1450, %v1672
        %v1886 = vadd.f32 %v1451, %v1673
        %v1887 = vadd.f32 %v1452, %v1675
        %v1888 = vadd.f32 %v1453, %v1676
        %v1889 = vadd.f32 %v1454, %v1677
        %v1890 = vadd.f32 %v1455, %v1679
        %v1891 = vadd.f32 %v1456, %v1680
        %v1892 = vadd.f32 %v1457, %v1681
        %v1893 = vadd.f32 %v1458, %v1683
        %v1894 = vadd.f32 %v1459, %v1684
        %v1895 = vadd.f32 %v1460, %v1685
        %v1896 = vadd.f32 %v1461, %v1687
        %v1897 = vadd.f32 %v1462, %v1688
        %v1898 = vadd.f32 %v1463, %v1689
        %v1899 = vadd.f32 %v1464, %v1691
        %v1900 = vadd.f32 %v1465, %v1692
        %v1901 = vadd.f32 %v1466, %v1693
        %v1902 = vadd.f32 %v1467, %v1695
        %v1903 = vadd.f32 %v1468, %v1696
        %v1904 = vadd.f32 %v1469, %v1697
        %v1905 = vadd.f32 %v1470, %v1699
        %v1906 = vadd.f32 %v1471, %v1700
        %v1907 = vadd.f32 %v1472, %v1701
        %v1908 = vadd.f32 %v1473, %v1703
        %v1909 = vadd.f32 %v1474, %v1704
        %v1910 = vadd.f32 %v1475, %v1705
        %v1911 = vadd.f32 %v1476, %v1707
        %v1912 = vadd.f32 %v1477, %v1708
        %v1913 = vadd.f32 %v1478, %v1709
        %v1914 = vadd.f32 %v1479, %v1711
        %v1915 = vadd.f32 %v1480, %v1712
        %v1916 = vadd.f32 %v1481, %v1713
        %v1917 = vadd.f32 %v1482, %v1715
        %v1918 = vadd.f32 %v1483, %v1716
        %v1919 = vadd.f32 %v1484, %v1717
        %v1920 = vadd.f32 %v1485, %v1719
        %v1921 = vadd.f32 %v1486, %v1720
        %v1922 = vadd.f32 %v1487, %v1721
        %v1923 = vadd.f32 %v1488, %v1723
        %v1924 = vadd.f32 %v1489, %v1724
        %v1925 = vadd.f32 %v1490, %v1725
        %v1926 = vadd.f32 %v1491, %v1727
        %v1927 = vadd.f32 %v1492, %v1728
        %v1928 = vadd.f32 %v1493, %v1729
        %v1929 = vadd.f32 %v1494, %v1731
        %v1930 = vadd.f32 %v1495, %v1732
        %v1931 = vadd.f32 %v1496, %v1733
        %v1932 = vadd.f32 %v1497, %v1735
        %v1933 = vadd.f32 %v1498, %v1736
        %v1934 = vadd.f32 %v1499, %v1737
        %v1935 = vadd.f32 %v1500, %v1739
        %v1936 = vadd.f32 %v1501, %v1740
        %v1937 = vadd.f32 %v1502, %v1741
        %v1938 = vadd.f32 %v1503, %v1743
        %v1939 = vadd.f32 %v1504, %v1744
        %v1940 = vadd.f32 %v1505, %v1745
        %v1941 = vadd.f32 %v1506, %v1747
        %v1942 = vadd.f32 %v1507, %v1748
        %v1943 = vadd.f32 %v1508, %v1749
        %v1944 = vadd.f32 %v1509, %v1751
        %v1945 = vadd.f32 %v1510, %v1752
        %v1946 = vadd.f32 %v1511, %v1753
        %v1947 = vadd.f32 %v1512, %v1755
        %v1948 = vadd.f32 %v1513, %v1756
        %v1949 = vadd.f32 %v1514, %v1757
        %v1950 = vadd.f32 %v1515, %v1759
        %v1951 = vadd.f32 %v1516, %v1760
        %v1952 = vadd.f32 %v1517, %v1761
        %v1953 = vadd.f32 %v1518, %v1763
        %v1954 = vadd.f32 %v1519, %v1764
        %v1955 = vadd.f32 %v1520, %v1765
        %v1956 = vadd.f32 %v1521, %v1767
        %v1957 = vadd.f32 %v1522, %v1768
        %v1958 = vadd.f32 %v1523, %v1769
        %v1959 = vadd.f32 %v1524, %v1771
        %v1960 = vadd.f32 %v1525, %v1772
        %v1961 = vadd.f32 %v1526, %v1773
        %v1962 = vadd.f32 %v1527, %v1775
        %v1963 = vadd.f32 %v1528, %v1776
        %v1964 = vadd.f32 %v1529, %v1777
        %v1965 = vadd.f32 %v1530, %v1779
        %v1966 = vadd.f32 %v1531, %v1780
        %v1967 = vadd.f32 %v1532, %v1781
        %v1968 = vadd.f32 %v1533, %v1783
        %v1969 = vadd.f32 %v1534, %v1784
        %v1970 = vld [vmem:[%s2 + $0x3] sm:$0x1]
        %v1971 = vlaneseq
        %v1972 = vshrl.u32 %v1971, 7
        %v1973 = vsub.s32 0, %v1972
        %v1974 = vrot.slane %v1970, %v1973
        %v1975 = vmul.f32 %v1974, 0.0
        %v1976 = vmul.f32 %v940, %v1974
        %v1977 = vmul.f32 %v941, %v1974
        %v1978 = vmul.f32 %v942, %v1974
        %v1979 = vmul.f32 %v943, %v1974
        %v1980 = vmul.f32 %v944, %v1974
        %v1981 = vmul.f32 %v945, %v1974
        %v1982 = vmul.f32 %v946, %v1974
        %v1983 = vmul.f32 %v947, %v1974
        %v1984 = vmul.f32 %v948, %v1974
        %v1985 = vmul.f32 %v949, %v1974
        %v1986 = vmul.f32 %v950, %v1974
        %v1987 = vmul.f32 %v951, %v1974
        %v1988 = vmul.f32 %v952, %v1974
        %v1989 = vmul.f32 %v953, %v1974
        %v1990 = vmul.f32 %v954, %v1974
        %v1991 = vmul.f32 %v955, %v1974
        %v1992 = vmul.f32 %v956, %v1974
        %v1993 = vmul.f32 %v957, %v1974
        %v1994 = vmul.f32 %v958, %v1974
        %v1995 = vmul.f32 %v959, %v1974
        %v1996 = vmul.f32 %v960, %v1974
        %v1997 = vmul.f32 %v961, %v1974
        %v1998 = vmul.f32 %v962, %v1974
        %v1999 = vmul.f32 %v963, %v1974
        %v2000 = vmul.f32 %v964, %v1974
        %v2001 = vmul.f32 %v965, %v1974
        %v2002 = vmul.f32 %v966, %v1974
        %v2003 = vmul.f32 %v967, %v1974
        %v2004 = vmul.f32 %v968, %v1974
        %v2005 = vmul.f32 %v969, %v1974
        %v2006 = vmul.f32 %v970, %v1974
        %v2007 = vmul.f32 %v971, %v1974
        %v2008 = vmul.f32 %v972, %v1974
        %v2009 = vmul.f32 %v973, %v1974
        %v2010 = vmul.f32 %v974, %v1974
        %v2011 = vmul.f32 %v975, %v1974
        %v2012 = vmul.f32 %v976, %v1974
        %v2013 = vmul.f32 %v977, %v1974
        %v2014 = vmul.f32 %v978, %v1974
        %v2015 = vmul.f32 %v979, %v1974
        %v2016 = vmul.f32 %v980, %v1974
        %v2017 = vmul.f32 %v981, %v1974
        %v2018 = vmul.f32 %v982, %v1974
        %v2019 = vmul.f32 %v983, %v1974
        %v2020 = vmul.f32 %v984, %v1974
        %v2021 = vmul.f32 %v985, %v1974
        %v2022 = vmul.f32 %v986, %v1974
        %v2023 = vmul.f32 %v987, %v1974
        %v2024 = vmul.f32 %v988, %v1974
        %v2025 = vmul.f32 %v989, %v1974
        %v2026 = vmul.f32 %v990, %v1974
        %v2027 = vmul.f32 %v991, %v1974
        %v2028 = vmul.f32 %v992, %v1974
        %v2029 = vmul.f32 %v993, %v1974
        %v2030 = vmul.f32 %v994, %v1974
        %v2031 = vmul.f32 %v995, %v1974
        %v2032 = vmul.f32 %v996, %v1974
        %v2033 = vmul.f32 %v997, %v1974
        %v2034 = vmul.f32 %v998, %v1974
        %v2035 = vmul.f32 %v999, %v1974
        %v2036 = vmul.f32 %v1000, %v1974
        %v2037 = vmul.f32 %v1001, %v1974
        %v2038 = vmul.f32 %v1002, %v1974
        %v2039 = vmul.f32 %v1003, %v1974
        %v2040 = vadd.f32 %v1877, %v1975
        %v2041 = vadd.f32 %v1878, %v1976
        %v2042 = vadd.f32 %v1879, %v1977
        %v2043 = vadd.f32 %v1880, %v1975
        %v2044 = vadd.f32 %v1881, %v1978
        %v2045 = vadd.f32 %v1882, %v1979
        %v2046 = vadd.f32 %v1883, %v1975
        %v2047 = vadd.f32 %v1884, %v1980
        %v2048 = vadd.f32 %v1885, %v1981
        %v2049 = vadd.f32 %v1886, %v1975
        %v2050 = vadd.f32 %v1887, %v1982
        %v2051 = vadd.f32 %v1888, %v1983
        %v2052 = vadd.f32 %v1889, %v1975
        %v2053 = vadd.f32 %v1890, %v1984
        %v2054 = vadd.f32 %v1891, %v1985
        %v2055 = vadd.f32 %v1892, %v1975
        %v2056 = vadd.f32 %v1893, %v1986
        %v2057 = vadd.f32 %v1894, %v1987
        %v2058 = vadd.f32 %v1895, %v1975
        %v2059 = vadd.f32 %v1896, %v1988
        %v2060 = vadd.f32 %v1897, %v1989
        %v2061 = vadd.f32 %v1898, %v1975
        %v2062 = vadd.f32 %v1899, %v1990
        %v2063 = vadd.f32 %v1900, %v1991
        %v2064 = vadd.f32 %v1901, %v1975
        %v2065 = vadd.f32 %v1902, %v1992
        %v2066 = vadd.f32 %v1903, %v1993
        %v2067 = vadd.f32 %v1904, %v1975
        %v2068 = vadd.f32 %v1905, %v1994
        %v2069 = vadd.f32 %v1906, %v1995
        %v2070 = vadd.f32 %v1907, %v1975
        %v2071 = vadd.f32 %v1908, %v1996
        %v2072 = vadd.f32 %v1909, %v1997
        %v2073 = vadd.f32 %v1910, %v1975
        %v2074 = vadd.f32 %v1911, %v1998
        %v2075 = vadd.f32 %v1912, %v1999
        %v2076 = vadd.f32 %v1913, %v1975
        %v2077 = vadd.f32 %v1914, %v2000
        %v2078 = vadd.f32 %v1915, %v2001
        %v2079 = vadd.f32 %v1916, %v1975
        %v2080 = vadd.f32 %v1917, %v2002
        %v2081 = vadd.f32 %v1918, %v2003
        %v2082 = vadd.f32 %v1919, %v1975
        %v2083 = vadd.f32 %v1920, %v2004
        %v2084 = vadd.f32 %v1921, %v2005
        %v2085 = vadd.f32 %v1922, %v1975
        %v2086 = vadd.f32 %v1923, %v2006
        %v2087 = vadd.f32 %v1924, %v2007
        %v2088 = vadd.f32 %v1878, %v2008
        %v2089 = vadd.f32 %v1879, %v2009
        %v2090 = vadd.f32 %v1925, %v1975
        %v2091 = vadd.f32 %v1926, %v2010
        %v2092 = vadd.f32 %v1927, %v2011
        %v2093 = vadd.f32 %v1928, %v1975
        %v2094 = vadd.f32 %v1929, %v2012
        %v2095 = vadd.f32 %v1930, %v2013
        %v2096 = vadd.f32 %v1931, %v1975
        %v2097 = vadd.f32 %v1932, %v2014
        %v2098 = vadd.f32 %v1933, %v2015
        %v2099 = vadd.f32 %v1934, %v1975
        %v2100 = vadd.f32 %v1935, %v2016
        %v2101 = vadd.f32 %v1936, %v2017
        %v2102 = vadd.f32 %v1937, %v1975
        %v2103 = vadd.f32 %v1938, %v2018
        %v2104 = vadd.f32 %v1939, %v2019
        %v2105 = vadd.f32 %v1940, %v1975
        %v2106 = vadd.f32 %v1941, %v2020
        %v2107 = vadd.f32 %v1942, %v2021
        %v2108 = vadd.f32 %v1943, %v1975
        %v2109 = vadd.f32 %v1944, %v2022
        %v2110 = vadd.f32 %v1945, %v2023
        %v2111 = vadd.f32 %v1946, %v1975
        %v2112 = vadd.f32 %v1947, %v2024
        %v2113 = vadd.f32 %v1948, %v2025
        %v2114 = vadd.f32 %v1949, %v1975
        %v2115 = vadd.f32 %v1950, %v2026
        %v2116 = vadd.f32 %v1951, %v2027
        %v2117 = vadd.f32 %v1952, %v1975
        %v2118 = vadd.f32 %v1953, %v2028
        %v2119 = vadd.f32 %v1954, %v2029
        %v2120 = vadd.f32 %v1955, %v1975
        %v2121 = vadd.f32 %v1956, %v2030
        %v2122 = vadd.f32 %v1957, %v2031
        %v2123 = vadd.f32 %v1958, %v1975
        %v2124 = vadd.f32 %v1959, %v2032
        %v2125 = vadd.f32 %v1960, %v2033
        %v2126 = vadd.f32 %v1961, %v1975
        %v2127 = vadd.f32 %v1962, %v2034
        %v2128 = vadd.f32 %v1963, %v2035
        %v2129 = vadd.f32 %v1964, %v1975
        %v2130 = vadd.f32 %v1965, %v2036
        %v2131 = vadd.f32 %v1966, %v2037
        %v2132 = vadd.f32 %v1967, %v1975
        %v2133 = vadd.f32 %v1968, %v2038
        %v2134 = vadd.f32 %v1969, %v2039
        %v2135 = vld [vmem:[%s2 + $0x4] sm:$0x1]
        %v2136 = vlaneseq
        %v2137 = vshrl.u32 %v2136, 7
        %v2138 = vsub.s32 0, %v2137
        %v2139 = vrot.slane %v2135, %v2138
        %v2140 = vmul.f32 %v940, %v2139
        %v2141 = vmul.f32 %v941, %v2139
        %v2142 = vmul.f32 %v942, %v2139
        %v2143 = vmul.f32 %v943, %v2139
        %v2144 = vmul.f32 %v944, %v2139
        %v2145 = vmul.f32 %v945, %v2139
        %v2146 = vmul.f32 %v946, %v2139
        %v2147 = vmul.f32 %v947, %v2139
        %v2148 = vmul.f32 %v948, %v2139
        %v2149 = vmul.f32 %v949, %v2139
        %v2150 = vmul.f32 %v950, %v2139
        %v2151 = vmul.f32 %v951, %v2139
        %v2152 = vmul.f32 %v952, %v2139
        %v2153 = vmul.f32 %v953, %v2139
        %v2154 = vmul.f32 %v954, %v2139
        %v2155 = vmul.f32 %v955, %v2139
        %v2156 = vmul.f32 %v956, %v2139
        %v2157 = vmul.f32 %v957, %v2139
        %v2158 = vmul.f32 %v958, %v2139
        %v2159 = vmul.f32 %v959, %v2139
        %v2160 = vmul.f32 %v960, %v2139
        %v2161 = vmul.f32 %v961, %v2139
        %v2162 = vmul.f32 %v962, %v2139
        %v2163 = vmul.f32 %v963, %v2139
        %v2164 = vmul.f32 %v964, %v2139
        %v2165 = vmul.f32 %v965, %v2139
        %v2166 = vmul.f32 %v966, %v2139
        %v2167 = vmul.f32 %v967, %v2139
        %v2168 = vmul.f32 %v968, %v2139
        %v2169 = vmul.f32 %v969, %v2139
        %v2170 = vmul.f32 %v970, %v2139
        %v2171 = vmul.f32 %v971, %v2139
        %v2172 = vmul.f32 %v972, %v2139
        %v2173 = vmul.f32 %v973, %v2139
        %v2174 = vmul.f32 %v974, %v2139
        %v2175 = vmul.f32 %v975, %v2139
        %v2176 = vmul.f32 %v976, %v2139
        %v2177 = vmul.f32 %v977, %v2139
        %v2178 = vmul.f32 %v978, %v2139
        %v2179 = vmul.f32 %v979, %v2139
        %v2180 = vmul.f32 %v980, %v2139
        %v2181 = vmul.f32 %v981, %v2139
        %v2182 = vmul.f32 %v982, %v2139
        %v2183 = vmul.f32 %v983, %v2139
        %v2184 = vmul.f32 %v984, %v2139
        %v2185 = vmul.f32 %v985, %v2139
        %v2186 = vmul.f32 %v986, %v2139
        %v2187 = vmul.f32 %v987, %v2139
        %v2188 = vmul.f32 %v988, %v2139
        %v2189 = vmul.f32 %v989, %v2139
        %v2190 = vmul.f32 %v990, %v2139
        %v2191 = vmul.f32 %v991, %v2139
        %v2192 = vmul.f32 %v992, %v2139
        %v2193 = vmul.f32 %v993, %v2139
        %v2194 = vmul.f32 %v994, %v2139
        %v2195 = vmul.f32 %v995, %v2139
        %v2196 = vmul.f32 %v996, %v2139
        %v2197 = vmul.f32 %v997, %v2139
        %v2198 = vmul.f32 %v998, %v2139
        %v2199 = vmul.f32 %v999, %v2139
        %v2200 = vmul.f32 %v1000, %v2139
        %v2201 = vmul.f32 %v1001, %v2139
        %v2202 = vmul.f32 %v1002, %v2139
        %v2203 = vmul.f32 %v1003, %v2139
        %v2268 = vrot.slane %v2140, 1
        %v2269 = vrot.slane %v2141, 1
        %v2270 = vsel %vm1258, %v2268, %v2269
        %v2271 = vrot.slane %v2142, 1
        %v2272 = vrot.slane %v2143, 1
        %v2273 = vsel %vm1258, %v2271, %v2272
        %v2274 = vrot.slane %v2144, 1
        %v2275 = vrot.slane %v2145, 1
        %v2276 = vsel %vm1258, %v2274, %v2275
        %v2277 = vrot.slane %v2146, 1
        %v2278 = vrot.slane %v2147, 1
        %v2279 = vsel %vm1258, %v2277, %v2278
        %v2280 = vrot.slane %v2148, 1
        %v2281 = vrot.slane %v2149, 1
        %v2282 = vsel %vm1258, %v2280, %v2281
        %v2283 = vrot.slane %v2150, 1
        %v2284 = vrot.slane %v2151, 1
        %v2285 = vsel %vm1258, %v2283, %v2284
        %v2286 = vrot.slane %v2152, 1
        %v2287 = vrot.slane %v2153, 1
        %v2288 = vsel %vm1258, %v2286, %v2287
        %v2289 = vrot.slane %v2154, 1
        %v2290 = vrot.slane %v2155, 1
        %v2291 = vsel %vm1258, %v2289, %v2290
        %v2292 = vrot.slane %v2156, 1
        %v2293 = vrot.slane %v2157, 1
        %v2294 = vsel %vm1258, %v2292, %v2293
        %v2295 = vrot.slane %v2158, 1
        %v2296 = vrot.slane %v2159, 1
        %v2297 = vsel %vm1258, %v2295, %v2296
        %v2298 = vrot.slane %v2160, 1
        %v2299 = vrot.slane %v2161, 1
        %v2300 = vsel %vm1258, %v2298, %v2299
        %v2301 = vrot.slane %v2162, 1
        %v2302 = vrot.slane %v2163, 1
        %v2303 = vsel %vm1258, %v2301, %v2302
        %v2304 = vrot.slane %v2164, 1
        %v2305 = vrot.slane %v2165, 1
        %v2306 = vsel %vm1258, %v2304, %v2305
        %v2307 = vrot.slane %v2166, 1
        %v2308 = vrot.slane %v2167, 1
        %v2309 = vsel %vm1258, %v2307, %v2308
        %v2310 = vrot.slane %v2168, 1
        %v2311 = vrot.slane %v2169, 1
        %v2312 = vsel %vm1258, %v2310, %v2311
        %v2313 = vrot.slane %v2170, 1
        %v2314 = vrot.slane %v2171, 1
        %v2315 = vsel %vm1258, %v2313, %v2314
        %v2316 = vrot.slane %v2172, 1
        %v2317 = vrot.slane %v2173, 1
        %v2318 = vsel %vm1258, %v2316, %v2317
        %v2319 = vrot.slane %v2174, 1
        %v2320 = vrot.slane %v2175, 1
        %v2321 = vsel %vm1258, %v2319, %v2320
        %v2322 = vrot.slane %v2176, 1
        %v2323 = vrot.slane %v2177, 1
        %v2324 = vsel %vm1258, %v2322, %v2323
        %v2325 = vrot.slane %v2178, 1
        %v2326 = vrot.slane %v2179, 1
        %v2327 = vsel %vm1258, %v2325, %v2326
        %v2328 = vrot.slane %v2180, 1
        %v2329 = vrot.slane %v2181, 1
        %v2330 = vsel %vm1258, %v2328, %v2329
        %v2331 = vrot.slane %v2182, 1
        %v2332 = vrot.slane %v2183, 1
        %v2333 = vsel %vm1258, %v2331, %v2332
        %v2334 = vrot.slane %v2184, 1
        %v2335 = vrot.slane %v2185, 1
        %v2336 = vsel %vm1258, %v2334, %v2335
        %v2337 = vrot.slane %v2186, 1
        %v2338 = vrot.slane %v2187, 1
        %v2339 = vsel %vm1258, %v2337, %v2338
        %v2340 = vrot.slane %v2188, 1
        %v2341 = vrot.slane %v2189, 1
        %v2342 = vsel %vm1258, %v2340, %v2341
        %v2343 = vrot.slane %v2190, 1
        %v2344 = vrot.slane %v2191, 1
        %v2345 = vsel %vm1258, %v2343, %v2344
        %v2346 = vrot.slane %v2192, 1
        %v2347 = vrot.slane %v2193, 1
        %v2348 = vsel %vm1258, %v2346, %v2347
        %v2349 = vrot.slane %v2194, 1
        %v2350 = vrot.slane %v2195, 1
        %v2351 = vsel %vm1258, %v2349, %v2350
        %v2352 = vrot.slane %v2196, 1
        %v2353 = vrot.slane %v2197, 1
        %v2354 = vsel %vm1258, %v2352, %v2353
        %v2355 = vrot.slane %v2198, 1
        %v2356 = vrot.slane %v2199, 1
        %v2357 = vsel %vm1258, %v2355, %v2356
        %v2358 = vrot.slane %v2200, 1
        %v2359 = vrot.slane %v2201, 1
        %v2360 = vsel %vm1258, %v2358, %v2359
        %v2361 = vrot.slane %v2202, 1
        %v2362 = vrot.slane %v2203, 1
        %v2363 = vsel %vm1258, %v2361, %v2362
        %v2460 = vadd.f32 %v2040, %v2268
        %v2461 = vadd.f32 %v2041, %v2270
        %v2462 = vadd.f32 %v2042, %v2269
        %v2463 = vadd.f32 %v2043, %v2271
        %v2464 = vadd.f32 %v2044, %v2273
        %v2465 = vadd.f32 %v2045, %v2272
        %v2466 = vadd.f32 %v2046, %v2274
        %v2467 = vadd.f32 %v2047, %v2276
        %v2468 = vadd.f32 %v2048, %v2275
        %v2469 = vadd.f32 %v2049, %v2277
        %v2470 = vadd.f32 %v2050, %v2279
        %v2471 = vadd.f32 %v2051, %v2278
        %v2472 = vadd.f32 %v2052, %v2280
        %v2473 = vadd.f32 %v2053, %v2282
        %v2474 = vadd.f32 %v2054, %v2281
        %v2475 = vadd.f32 %v2055, %v2283
        %v2476 = vadd.f32 %v2056, %v2285
        %v2477 = vadd.f32 %v2057, %v2284
        %v2478 = vadd.f32 %v2058, %v2286
        %v2479 = vadd.f32 %v2059, %v2288
        %v2480 = vadd.f32 %v2060, %v2287
        %v2481 = vadd.f32 %v2061, %v2289
        %v2482 = vadd.f32 %v2062, %v2291
        %v2483 = vadd.f32 %v2063, %v2290
        %v2484 = vadd.f32 %v2064, %v2292
        %v2485 = vadd.f32 %v2065, %v2294
        %v2486 = vadd.f32 %v2066, %v2293
        %v2487 = vadd.f32 %v2067, %v2295
        %v2488 = vadd.f32 %v2068, %v2297
        %v2489 = vadd.f32 %v2069, %v2296
        %v2490 = vadd.f32 %v2070, %v2298
        %v2491 = vadd.f32 %v2071, %v2300
        %v2492 = vadd.f32 %v2072, %v2299
        %v2493 = vadd.f32 %v2073, %v2301
        %v2494 = vadd.f32 %v2074, %v2303
        %v2495 = vadd.f32 %v2075, %v2302
        %v2496 = vadd.f32 %v2076, %v2304
        %v2497 = vadd.f32 %v2077, %v2306
        %v2498 = vadd.f32 %v2078, %v2305
        %v2499 = vadd.f32 %v2079, %v2307
        %v2500 = vadd.f32 %v2080, %v2309
        %v2501 = vadd.f32 %v2081, %v2308
        %v2502 = vadd.f32 %v2082, %v2310
        %v2503 = vadd.f32 %v2083, %v2312
        %v2504 = vadd.f32 %v2084, %v2311
        %v2505 = vadd.f32 %v2085, %v2313
        %v2506 = vadd.f32 %v2086, %v2315
        %v2507 = vadd.f32 %v2087, %v2314
        %v2508 = vadd.f32 %v2040, %v2316
        %v2509 = vadd.f32 %v2088, %v2318
        %v2510 = vadd.f32 %v2089, %v2317
        %v2511 = vadd.f32 %v2090, %v2319
        %v2512 = vadd.f32 %v2091, %v2321
        %v2513 = vadd.f32 %v2092, %v2320
        %v2514 = vadd.f32 %v2093, %v2322
        %v2515 = vadd.f32 %v2094, %v2324
        %v2516 = vadd.f32 %v2095, %v2323
        %v2517 = vadd.f32 %v2096, %v2325
        %v2518 = vadd.f32 %v2097, %v2327
        %v2519 = vadd.f32 %v2098, %v2326
        %v2520 = vadd.f32 %v2099, %v2328
        %v2521 = vadd.f32 %v2100, %v2330
        %v2522 = vadd.f32 %v2101, %v2329
        %v2523 = vadd.f32 %v2102, %v2331
        %v2524 = vadd.f32 %v2103, %v2333
        %v2525 = vadd.f32 %v2104, %v2332
        %v2526 = vadd.f32 %v2105, %v2334
        %v2527 = vadd.f32 %v2106, %v2336
        %v2528 = vadd.f32 %v2107, %v2335
        %v2529 = vadd.f32 %v2108, %v2337
        %v2530 = vadd.f32 %v2109, %v2339
        %v2531 = vadd.f32 %v2110, %v2338
        %v2532 = vadd.f32 %v2111, %v2340
        %v2533 = vadd.f32 %v2112, %v2342
        %v2534 = vadd.f32 %v2113, %v2341
        %v2535 = vadd.f32 %v2114, %v2343
        %v2536 = vadd.f32 %v2115, %v2345
        %v2537 = vadd.f32 %v2116, %v2344
        %v2538 = vadd.f32 %v2117, %v2346
        %v2539 = vadd.f32 %v2118, %v2348
        %v2540 = vadd.f32 %v2119, %v2347
        %v2541 = vadd.f32 %v2120, %v2349
        %v2542 = vadd.f32 %v2121, %v2351
        %v2543 = vadd.f32 %v2122, %v2350
        %v2544 = vadd.f32 %v2123, %v2352
        %v2545 = vadd.f32 %v2124, %v2354
        %v2546 = vadd.f32 %v2125, %v2353
        %v2547 = vadd.f32 %v2126, %v2355
        %v2548 = vadd.f32 %v2127, %v2357
        %v2549 = vadd.f32 %v2128, %v2356
        %v2550 = vadd.f32 %v2129, %v2358
        %v2551 = vadd.f32 %v2130, %v2360
        %v2552 = vadd.f32 %v2131, %v2359
        %v2553 = vadd.f32 %v2132, %v2361
        %v2554 = vadd.f32 %v2133, %v2363
        %v2555 = vadd.f32 %v2134, %v2362
        %v2556 = vld [vmem:[%s2 + $0x5] sm:$0x1]
        %v2557 = vlaneseq
        %v2558 = vshrl.u32 %v2557, 7
        %v2559 = vsub.s32 0, %v2558
        %v2560 = vrot.slane %v2556, %v2559
        %v2561 = vmul.f32 %v940, %v2560
        %v2562 = vmul.f32 %v941, %v2560
        %v2563 = vmul.f32 %v2560, 0.0
        %v2564 = vmul.f32 %v942, %v2560
        %v2565 = vmul.f32 %v943, %v2560
        %v2566 = vmul.f32 %v944, %v2560
        %v2567 = vmul.f32 %v945, %v2560
        %v2568 = vmul.f32 %v946, %v2560
        %v2569 = vmul.f32 %v947, %v2560
        %v2570 = vmul.f32 %v948, %v2560
        %v2571 = vmul.f32 %v949, %v2560
        %v2572 = vmul.f32 %v950, %v2560
        %v2573 = vmul.f32 %v951, %v2560
        %v2574 = vmul.f32 %v952, %v2560
        %v2575 = vmul.f32 %v953, %v2560
        %v2576 = vmul.f32 %v954, %v2560
        %v2577 = vmul.f32 %v955, %v2560
        %v2578 = vmul.f32 %v956, %v2560
        %v2579 = vmul.f32 %v957, %v2560
        %v2580 = vmul.f32 %v958, %v2560
        %v2581 = vmul.f32 %v959, %v2560
        %v2582 = vmul.f32 %v960, %v2560
        %v2583 = vmul.f32 %v961, %v2560
        %v2584 = vmul.f32 %v962, %v2560
        %v2585 = vmul.f32 %v963, %v2560
        %v2586 = vmul.f32 %v964, %v2560
        %v2587 = vmul.f32 %v965, %v2560
        %v2588 = vmul.f32 %v966, %v2560
        %v2589 = vmul.f32 %v967, %v2560
        %v2590 = vmul.f32 %v968, %v2560
        %v2591 = vmul.f32 %v969, %v2560
        %v2592 = vmul.f32 %v970, %v2560
        %v2593 = vmul.f32 %v971, %v2560
        %v2594 = vmul.f32 %v972, %v2560
        %v2595 = vmul.f32 %v973, %v2560
        %v2596 = vmul.f32 %v974, %v2560
        %v2597 = vmul.f32 %v975, %v2560
        %v2598 = vmul.f32 %v976, %v2560
        %v2599 = vmul.f32 %v977, %v2560
        %v2600 = vmul.f32 %v978, %v2560
        %v2601 = vmul.f32 %v979, %v2560
        %v2602 = vmul.f32 %v980, %v2560
        %v2603 = vmul.f32 %v981, %v2560
        %v2604 = vmul.f32 %v982, %v2560
        %v2605 = vmul.f32 %v983, %v2560
        %v2606 = vmul.f32 %v984, %v2560
        %v2607 = vmul.f32 %v985, %v2560
        %v2608 = vmul.f32 %v986, %v2560
        %v2609 = vmul.f32 %v987, %v2560
        %v2610 = vmul.f32 %v988, %v2560
        %v2611 = vmul.f32 %v989, %v2560
        %v2612 = vmul.f32 %v990, %v2560
        %v2613 = vmul.f32 %v991, %v2560
        %v2614 = vmul.f32 %v992, %v2560
        %v2615 = vmul.f32 %v993, %v2560
        %v2616 = vmul.f32 %v994, %v2560
        %v2617 = vmul.f32 %v995, %v2560
        %v2618 = vmul.f32 %v996, %v2560
        %v2619 = vmul.f32 %v997, %v2560
        %v2620 = vmul.f32 %v998, %v2560
        %v2621 = vmul.f32 %v999, %v2560
        %v2622 = vmul.f32 %v1000, %v2560
        %v2623 = vmul.f32 %v1001, %v2560
        %v2624 = vmul.f32 %v1002, %v2560
        %v2625 = vmul.f32 %v1003, %v2560
        %v2691 = vrot.slane %v2561, 2
        %v2692 = vrot.slane %v2562, 2
        %v2693 = vsel %vm1662, %v2691, %v2692
        %v2694 = vrot.slane %v2563, 2
        %v2695 = vsel %vm1662, %v2692, %v2694
        %v2696 = vrot.slane %v2564, 2
        %v2697 = vrot.slane %v2565, 2
        %v2698 = vsel %vm1662, %v2696, %v2697
        %v2699 = vsel %vm1662, %v2697, %v2694
        %v2700 = vrot.slane %v2566, 2
        %v2701 = vrot.slane %v2567, 2
        %v2702 = vsel %vm1662, %v2700, %v2701
        %v2703 = vsel %vm1662, %v2701, %v2694
        %v2704 = vrot.slane %v2568, 2
        %v2705 = vrot.slane %v2569, 2
        %v2706 = vsel %vm1662, %v2704, %v2705
        %v2707 = vsel %vm1662, %v2705, %v2694
        %v2708 = vrot.slane %v2570, 2
        %v2709 = vrot.slane %v2571, 2
        %v2710 = vsel %vm1662, %v2708, %v2709
        %v2711 = vsel %vm1662, %v2709, %v2694
        %v2712 = vrot.slane %v2572, 2
        %v2713 = vrot.slane %v2573, 2
        %v2714 = vsel %vm1662, %v2712, %v2713
        %v2715 = vsel %vm1662, %v2713, %v2694
        %v2716 = vrot.slane %v2574, 2
        %v2717 = vrot.slane %v2575, 2
        %v2718 = vsel %vm1662, %v2716, %v2717
        %v2719 = vsel %vm1662, %v2717, %v2694
        %v2720 = vrot.slane %v2576, 2
        %v2721 = vrot.slane %v2577, 2
        %v2722 = vsel %vm1662, %v2720, %v2721
        %v2723 = vsel %vm1662, %v2721, %v2694
        %v2724 = vrot.slane %v2578, 2
        %v2725 = vrot.slane %v2579, 2
        %v2726 = vsel %vm1662, %v2724, %v2725
        %v2727 = vsel %vm1662, %v2725, %v2694
        %v2728 = vrot.slane %v2580, 2
        %v2729 = vrot.slane %v2581, 2
        %v2730 = vsel %vm1662, %v2728, %v2729
        %v2731 = vsel %vm1662, %v2729, %v2694
        %v2732 = vrot.slane %v2582, 2
        %v2733 = vrot.slane %v2583, 2
        %v2734 = vsel %vm1662, %v2732, %v2733
        %v2735 = vsel %vm1662, %v2733, %v2694
        %v2736 = vrot.slane %v2584, 2
        %v2737 = vrot.slane %v2585, 2
        %v2738 = vsel %vm1662, %v2736, %v2737
        %v2739 = vsel %vm1662, %v2737, %v2694
        %v2740 = vrot.slane %v2586, 2
        %v2741 = vrot.slane %v2587, 2
        %v2742 = vsel %vm1662, %v2740, %v2741
        %v2743 = vsel %vm1662, %v2741, %v2694
        %v2744 = vrot.slane %v2588, 2
        %v2745 = vrot.slane %v2589, 2
        %v2746 = vsel %vm1662, %v2744, %v2745
        %v2747 = vsel %vm1662, %v2745, %v2694
        %v2748 = vrot.slane %v2590, 2
        %v2749 = vrot.slane %v2591, 2
        %v2750 = vsel %vm1662, %v2748, %v2749
        %v2751 = vsel %vm1662, %v2749, %v2694
        %v2752 = vrot.slane %v2592, 2
        %v2753 = vrot.slane %v2593, 2
        %v2754 = vsel %vm1662, %v2752, %v2753
        %v2755 = vsel %vm1662, %v2753, %v2694
        %v2756 = vrot.slane %v2594, 2
        %v2757 = vrot.slane %v2595, 2
        %v2758 = vsel %vm1662, %v2756, %v2757
        %v2759 = vsel %vm1662, %v2757, %v2694
        %v2760 = vrot.slane %v2596, 2
        %v2761 = vrot.slane %v2597, 2
        %v2762 = vsel %vm1662, %v2760, %v2761
        %v2763 = vsel %vm1662, %v2761, %v2694
        %v2764 = vrot.slane %v2598, 2
        %v2765 = vrot.slane %v2599, 2
        %v2766 = vsel %vm1662, %v2764, %v2765
        %v2767 = vsel %vm1662, %v2765, %v2694
        %v2768 = vrot.slane %v2600, 2
        %v2769 = vrot.slane %v2601, 2
        %v2770 = vsel %vm1662, %v2768, %v2769
        %v2771 = vsel %vm1662, %v2769, %v2694
        %v2772 = vrot.slane %v2602, 2
        %v2773 = vrot.slane %v2603, 2
        %v2774 = vsel %vm1662, %v2772, %v2773
        %v2775 = vsel %vm1662, %v2773, %v2694
        %v2776 = vrot.slane %v2604, 2
        %v2777 = vrot.slane %v2605, 2
        %v2778 = vsel %vm1662, %v2776, %v2777
        %v2779 = vsel %vm1662, %v2777, %v2694
        %v2780 = vrot.slane %v2606, 2
        %v2781 = vrot.slane %v2607, 2
        %v2782 = vsel %vm1662, %v2780, %v2781
        %v2783 = vsel %vm1662, %v2781, %v2694
        %v2784 = vrot.slane %v2608, 2
        %v2785 = vrot.slane %v2609, 2
        %v2786 = vsel %vm1662, %v2784, %v2785
        %v2787 = vsel %vm1662, %v2785, %v2694
        %v2788 = vrot.slane %v2610, 2
        %v2789 = vrot.slane %v2611, 2
        %v2790 = vsel %vm1662, %v2788, %v2789
        %v2791 = vsel %vm1662, %v2789, %v2694
        %v2792 = vrot.slane %v2612, 2
        %v2793 = vrot.slane %v2613, 2
        %v2794 = vsel %vm1662, %v2792, %v2793
        %v2795 = vsel %vm1662, %v2793, %v2694
        %v2796 = vrot.slane %v2614, 2
        %v2797 = vrot.slane %v2615, 2
        %v2798 = vsel %vm1662, %v2796, %v2797
        %v2799 = vsel %vm1662, %v2797, %v2694
        %v2800 = vrot.slane %v2616, 2
        %v2801 = vrot.slane %v2617, 2
        %v2802 = vsel %vm1662, %v2800, %v2801
        %v2803 = vsel %vm1662, %v2801, %v2694
        %v2804 = vrot.slane %v2618, 2
        %v2805 = vrot.slane %v2619, 2
        %v2806 = vsel %vm1662, %v2804, %v2805
        %v2807 = vsel %vm1662, %v2805, %v2694
        %v2808 = vrot.slane %v2620, 2
        %v2809 = vrot.slane %v2621, 2
        %v2810 = vsel %vm1662, %v2808, %v2809
        %v2811 = vsel %vm1662, %v2809, %v2694
        %v2812 = vrot.slane %v2622, 2
        %v2813 = vrot.slane %v2623, 2
        %v2814 = vsel %vm1662, %v2812, %v2813
        %v2815 = vsel %vm1662, %v2813, %v2694
        %v2816 = vrot.slane %v2624, 2
        %v2817 = vrot.slane %v2625, 2
        %v2818 = vsel %vm1662, %v2816, %v2817
        %v2819 = vsel %vm1662, %v2817, %v2694
        %v2916 = vadd.f32 %v2460, %v2691
        %v2917 = vadd.f32 %v2461, %v2693
        %v2918 = vadd.f32 %v2462, %v2695
        %v2919 = vadd.f32 %v2463, %v2696
        %v2920 = vadd.f32 %v2464, %v2698
        %v2921 = vadd.f32 %v2465, %v2699
        %v2922 = vadd.f32 %v2466, %v2700
        %v2923 = vadd.f32 %v2467, %v2702
        %v2924 = vadd.f32 %v2468, %v2703
        %v2925 = vadd.f32 %v2469, %v2704
        %v2926 = vadd.f32 %v2470, %v2706
        %v2927 = vadd.f32 %v2471, %v2707
        %v2928 = vadd.f32 %v2472, %v2708
        %v2929 = vadd.f32 %v2473, %v2710
        %v2930 = vadd.f32 %v2474, %v2711
        %v2931 = vadd.f32 %v2475, %v2712
        %v2932 = vadd.f32 %v2476, %v2714
        %v2933 = vadd.f32 %v2477, %v2715
        %v2934 = vadd.f32 %v2478, %v2716
        %v2935 = vadd.f32 %v2479, %v2718
        %v2936 = vadd.f32 %v2480, %v2719
        %v2937 = vadd.f32 %v2481, %v2720
        %v2938 = vadd.f32 %v2482, %v2722
        %v2939 = vadd.f32 %v2483, %v2723
        %v2940 = vadd.f32 %v2484, %v2724
        %v2941 = vadd.f32 %v2485, %v2726
        %v2942 = vadd.f32 %v2486, %v2727
        %v2943 = vadd.f32 %v2487, %v2728
        %v2944 = vadd.f32 %v2488, %v2730
        %v2945 = vadd.f32 %v2489, %v2731
        %v2946 = vadd.f32 %v2490, %v2732
        %v2947 = vadd.f32 %v2491, %v2734
        %v2948 = vadd.f32 %v2492, %v2735
        %v2949 = vadd.f32 %v2493, %v2736
        %v2950 = vadd.f32 %v2494, %v2738
        %v2951 = vadd.f32 %v2495, %v2739
        %v2952 = vadd.f32 %v2496, %v2740
        %v2953 = vadd.f32 %v2497, %v2742
        %v2954 = vadd.f32 %v2498, %v2743
        %v2955 = vadd.f32 %v2499, %v2744
        %v2956 = vadd.f32 %v2500, %v2746
        %v2957 = vadd.f32 %v2501, %v2747
        %v2958 = vadd.f32 %v2502, %v2748
        %v2959 = vadd.f32 %v2503, %v2750
        %v2960 = vadd.f32 %v2504, %v2751
        %v2961 = vadd.f32 %v2505, %v2752
        %v2962 = vadd.f32 %v2506, %v2754
        %v2963 = vadd.f32 %v2507, %v2755
        %v2964 = vadd.f32 %v2508, %v2756
        %v2965 = vadd.f32 %v2509, %v2758
        %v2966 = vadd.f32 %v2510, %v2759
        %v2967 = vadd.f32 %v2511, %v2760
        %v2968 = vadd.f32 %v2512, %v2762
        %v2969 = vadd.f32 %v2513, %v2763
        %v2970 = vadd.f32 %v2514, %v2764
        %v2971 = vadd.f32 %v2515, %v2766
        %v2972 = vadd.f32 %v2516, %v2767
        %v2973 = vadd.f32 %v2517, %v2768
        %v2974 = vadd.f32 %v2518, %v2770
        %v2975 = vadd.f32 %v2519, %v2771
        %v2976 = vadd.f32 %v2520, %v2772
        %v2977 = vadd.f32 %v2521, %v2774
        %v2978 = vadd.f32 %v2522, %v2775
        %v2979 = vadd.f32 %v2523, %v2776
        %v2980 = vadd.f32 %v2524, %v2778
        %v2981 = vadd.f32 %v2525, %v2779
        %v2982 = vadd.f32 %v2526, %v2780
        %v2983 = vadd.f32 %v2527, %v2782
        %v2984 = vadd.f32 %v2528, %v2783
        %v2985 = vadd.f32 %v2529, %v2784
        %v2986 = vadd.f32 %v2530, %v2786
        %v2987 = vadd.f32 %v2531, %v2787
        %v2988 = vadd.f32 %v2532, %v2788
        %v2989 = vadd.f32 %v2533, %v2790
        %v2990 = vadd.f32 %v2534, %v2791
        %v2991 = vadd.f32 %v2535, %v2792
        %v2992 = vadd.f32 %v2536, %v2794
        %v2993 = vadd.f32 %v2537, %v2795
        %v2994 = vadd.f32 %v2538, %v2796
        %v2995 = vadd.f32 %v2539, %v2798
        %v2996 = vadd.f32 %v2540, %v2799
        %v2997 = vadd.f32 %v2541, %v2800
        %v2998 = vadd.f32 %v2542, %v2802
        %v2999 = vadd.f32 %v2543, %v2803
        %v3000 = vadd.f32 %v2544, %v2804
        %v3001 = vadd.f32 %v2545, %v2806
        %v3002 = vadd.f32 %v2546, %v2807
        %v3003 = vadd.f32 %v2547, %v2808
        %v3004 = vadd.f32 %v2548, %v2810
        %v3005 = vadd.f32 %v2549, %v2811
        %v3006 = vadd.f32 %v2550, %v2812
        %v3007 = vadd.f32 %v2551, %v2814
        %v3008 = vadd.f32 %v2552, %v2815
        %v3009 = vadd.f32 %v2553, %v2816
        %v3010 = vadd.f32 %v2554, %v2818
        %v3011 = vadd.f32 %v2555, %v2819
        %v3012 = vld [vmem:[%s2 + $0x6] sm:$0x1]
        %v3013 = vlaneseq
        %v3014 = vshrl.u32 %v3013, 7
        %v3015 = vsub.s32 0, %v3014
        %v3016 = vrot.slane %v3012, %v3015
        %v3017 = vmul.f32 %v3016, 0.0
        %v3018 = vmul.f32 %v942, %v3016
        %v3019 = vmul.f32 %v943, %v3016
        %v3020 = vmul.f32 %v944, %v3016
        %v3021 = vmul.f32 %v945, %v3016
        %v3022 = vmul.f32 %v946, %v3016
        %v3023 = vmul.f32 %v947, %v3016
        %v3024 = vmul.f32 %v948, %v3016
        %v3025 = vmul.f32 %v949, %v3016
        %v3026 = vmul.f32 %v950, %v3016
        %v3027 = vmul.f32 %v951, %v3016
        %v3028 = vmul.f32 %v952, %v3016
        %v3029 = vmul.f32 %v953, %v3016
        %v3030 = vmul.f32 %v954, %v3016
        %v3031 = vmul.f32 %v955, %v3016
        %v3032 = vmul.f32 %v956, %v3016
        %v3033 = vmul.f32 %v957, %v3016
        %v3034 = vmul.f32 %v958, %v3016
        %v3035 = vmul.f32 %v959, %v3016
        %v3036 = vmul.f32 %v960, %v3016
        %v3037 = vmul.f32 %v961, %v3016
        %v3038 = vmul.f32 %v962, %v3016
        %v3039 = vmul.f32 %v963, %v3016
        %v3040 = vmul.f32 %v964, %v3016
        %v3041 = vmul.f32 %v965, %v3016
        %v3042 = vmul.f32 %v966, %v3016
        %v3043 = vmul.f32 %v967, %v3016
        %v3044 = vmul.f32 %v968, %v3016
        %v3045 = vmul.f32 %v969, %v3016
        %v3046 = vmul.f32 %v970, %v3016
        %v3047 = vmul.f32 %v971, %v3016
        %v3048 = vmul.f32 %v974, %v3016
        %v3049 = vmul.f32 %v975, %v3016
        %v3050 = vmul.f32 %v976, %v3016
        %v3051 = vmul.f32 %v977, %v3016
        %v3052 = vmul.f32 %v978, %v3016
        %v3053 = vmul.f32 %v979, %v3016
        %v3054 = vmul.f32 %v980, %v3016
        %v3055 = vmul.f32 %v981, %v3016
        %v3056 = vmul.f32 %v982, %v3016
        %v3057 = vmul.f32 %v983, %v3016
        %v3058 = vmul.f32 %v984, %v3016
        %v3059 = vmul.f32 %v985, %v3016
        %v3060 = vmul.f32 %v986, %v3016
        %v3061 = vmul.f32 %v987, %v3016
        %v3062 = vmul.f32 %v988, %v3016
        %v3063 = vmul.f32 %v989, %v3016
        %v3064 = vmul.f32 %v990, %v3016
        %v3065 = vmul.f32 %v991, %v3016
        %v3066 = vmul.f32 %v992, %v3016
        %v3067 = vmul.f32 %v993, %v3016
        %v3068 = vmul.f32 %v994, %v3016
        %v3069 = vmul.f32 %v995, %v3016
        %v3070 = vmul.f32 %v996, %v3016
        %v3071 = vmul.f32 %v997, %v3016
        %v3072 = vmul.f32 %v998, %v3016
        %v3073 = vmul.f32 %v999, %v3016
        %v3074 = vmul.f32 %v1000, %v3016
        %v3075 = vmul.f32 %v1001, %v3016
        %v3076 = vmul.f32 %v1002, %v3016
        %v3077 = vmul.f32 %v1003, %v3016
        %v3078 = vadd.f32 %v2916, %v3017
        %v3079 = vadd.f32 %v2917, %v3018
        %v3080 = vadd.f32 %v2918, %v3019
        %v3081 = vadd.f32 %v2919, %v3017
        %v3082 = vadd.f32 %v2920, %v3020
        %v3083 = vadd.f32 %v2921, %v3021
        %v3084 = vadd.f32 %v2922, %v3017
        %v3085 = vadd.f32 %v2923, %v3022
        %v3086 = vadd.f32 %v2924, %v3023
        %v3087 = vadd.f32 %v2925, %v3017
        %v3088 = vadd.f32 %v2926, %v3024
        %v3089 = vadd.f32 %v2927, %v3025
        %v3090 = vadd.f32 %v2928, %v3017
        %v3091 = vadd.f32 %v2929, %v3026
        %v3092 = vadd.f32 %v2930, %v3027
        %v3093 = vadd.f32 %v2931, %v3017
        %v3094 = vadd.f32 %v2932, %v3028
        %v3095 = vadd.f32 %v2933, %v3029
        %v3096 = vadd.f32 %v2934, %v3017
        %v3097 = vadd.f32 %v2935, %v3030
        %v3098 = vadd.f32 %v2936, %v3031
        %v3099 = vadd.f32 %v2937, %v3017
        %v3100 = vadd.f32 %v2938, %v3032
        %v3101 = vadd.f32 %v2939, %v3033
        %v3102 = vadd.f32 %v2940, %v3017
        %v3103 = vadd.f32 %v2941, %v3034
        %v3104 = vadd.f32 %v2942, %v3035
        %v3105 = vadd.f32 %v2943, %v3017
        %v3106 = vadd.f32 %v2944, %v3036
        %v3107 = vadd.f32 %v2945, %v3037
        %v3108 = vadd.f32 %v2946, %v3017
        %v3109 = vadd.f32 %v2947, %v3038
        %v3110 = vadd.f32 %v2948, %v3039
        %v3111 = vadd.f32 %v2949, %v3017
        %v3112 = vadd.f32 %v2950, %v3040
        %v3113 = vadd.f32 %v2951, %v3041
        %v3114 = vadd.f32 %v2952, %v3017
        %v3115 = vadd.f32 %v2953, %v3042
        %v3116 = vadd.f32 %v2954, %v3043
        %v3117 = vadd.f32 %v2955, %v3017
        %v3118 = vadd.f32 %v2956, %v3044
        %v3119 = vadd.f32 %v2957, %v3045
        %v3120 = vadd.f32 %v2958, %v3017
        %v3121 = vadd.f32 %v2959, %v3046
        %v3122 = vadd.f32 %v2960, %v3047
        %v3123 = vadd.f32 %v2961, %v3017
        %v3124 = vadd.f32 %v2962, %v3017
        %v3125 = vadd.f32 %v2963, %v3017
        %v3126 = vadd.f32 %v2964, %v3017
        %v3127 = vadd.f32 %v2965, %v3048
        %v3128 = vadd.f32 %v2966, %v3049
        %v3129 = vadd.f32 %v2967, %v3017
        %v3130 = vadd.f32 %v2968, %v3050
        %v3131 = vadd.f32 %v2969, %v3051
        %v3132 = vadd.f32 %v2970, %v3017
        %v3133 = vadd.f32 %v2971, %v3052
        %v3134 = vadd.f32 %v2972, %v3053
        %v3135 = vadd.f32 %v2973, %v3017
        %v3136 = vadd.f32 %v2974, %v3054
        %v3137 = vadd.f32 %v2975, %v3055
        %v3138 = vadd.f32 %v2976, %v3017
        %v3139 = vadd.f32 %v2977, %v3056
        %v3140 = vadd.f32 %v2978, %v3057
        %v3141 = vadd.f32 %v2979, %v3017
        %v3142 = vadd.f32 %v2980, %v3058
        %v3143 = vadd.f32 %v2981, %v3059
        %v3144 = vadd.f32 %v2982, %v3017
        %v3145 = vadd.f32 %v2983, %v3060
        %v3146 = vadd.f32 %v2984, %v3061
        %v3147 = vadd.f32 %v2985, %v3017
        %v3148 = vadd.f32 %v2986, %v3062
        %v3149 = vadd.f32 %v2987, %v3063
        %v3150 = vadd.f32 %v2988, %v3017
        %v3151 = vadd.f32 %v2989, %v3064
        %v3152 = vadd.f32 %v2990, %v3065
        %v3153 = vadd.f32 %v2991, %v3017
        %v3154 = vadd.f32 %v2992, %v3066
        %v3155 = vadd.f32 %v2993, %v3067
        %v3156 = vadd.f32 %v2994, %v3017
        %v3157 = vadd.f32 %v2995, %v3068
        %v3158 = vadd.f32 %v2996, %v3069
        %v3159 = vadd.f32 %v2997, %v3017
        %v3160 = vadd.f32 %v2998, %v3070
        %v3161 = vadd.f32 %v2999, %v3071
        %v3162 = vadd.f32 %v3000, %v3017
        %v3163 = vadd.f32 %v3001, %v3072
        %v3164 = vadd.f32 %v3002, %v3073
        %v3165 = vadd.f32 %v3003, %v3017
        %v3166 = vadd.f32 %v3004, %v3074
        %v3167 = vadd.f32 %v3005, %v3075
        %v3168 = vadd.f32 %v3006, %v3017
        %v3169 = vadd.f32 %v3007, %v3076
        %v3170 = vadd.f32 %v3008, %v3077
        %v3171 = vadd.f32 %v3009, %v3017
        %v3172 = vadd.f32 %v3010, %v3017
        %v3173 = vadd.f32 %v3011, %v3017
        %v3174 = vld [vmem:[%s2 + $0x7] sm:$0x1]
        %v3175 = vlaneseq
        %v3176 = vshrl.u32 %v3175, 7
        %v3177 = vsub.s32 0, %v3176
        %v3178 = vrot.slane %v3174, %v3177
        %v3179 = vmul.f32 %v942, %v3178
        %v3180 = vmul.f32 %v943, %v3178
        %v3181 = vmul.f32 %v944, %v3178
        %v3182 = vmul.f32 %v945, %v3178
        %v3183 = vmul.f32 %v946, %v3178
        %v3184 = vmul.f32 %v947, %v3178
        %v3185 = vmul.f32 %v948, %v3178
        %v3186 = vmul.f32 %v949, %v3178
        %v3187 = vmul.f32 %v950, %v3178
        %v3188 = vmul.f32 %v951, %v3178
        %v3189 = vmul.f32 %v952, %v3178
        %v3190 = vmul.f32 %v953, %v3178
        %v3191 = vmul.f32 %v954, %v3178
        %v3192 = vmul.f32 %v955, %v3178
        %v3193 = vmul.f32 %v956, %v3178
        %v3194 = vmul.f32 %v957, %v3178
        %v3195 = vmul.f32 %v958, %v3178
        %v3196 = vmul.f32 %v959, %v3178
        %v3197 = vmul.f32 %v960, %v3178
        %v3198 = vmul.f32 %v961, %v3178
        %v3199 = vmul.f32 %v962, %v3178
        %v3200 = vmul.f32 %v963, %v3178
        %v3201 = vmul.f32 %v964, %v3178
        %v3202 = vmul.f32 %v965, %v3178
        %v3203 = vmul.f32 %v966, %v3178
        %v3204 = vmul.f32 %v967, %v3178
        %v3205 = vmul.f32 %v968, %v3178
        %v3206 = vmul.f32 %v969, %v3178
        %v3207 = vmul.f32 %v970, %v3178
        %v3208 = vmul.f32 %v971, %v3178
        %v3209 = vmul.f32 %v3178, 0.0
        %v3210 = vmul.f32 %v974, %v3178
        %v3211 = vmul.f32 %v975, %v3178
        %v3212 = vmul.f32 %v976, %v3178
        %v3213 = vmul.f32 %v977, %v3178
        %v3214 = vmul.f32 %v978, %v3178
        %v3215 = vmul.f32 %v979, %v3178
        %v3216 = vmul.f32 %v980, %v3178
        %v3217 = vmul.f32 %v981, %v3178
        %v3218 = vmul.f32 %v982, %v3178
        %v3219 = vmul.f32 %v983, %v3178
        %v3220 = vmul.f32 %v984, %v3178
        %v3221 = vmul.f32 %v985, %v3178
        %v3222 = vmul.f32 %v986, %v3178
        %v3223 = vmul.f32 %v987, %v3178
        %v3224 = vmul.f32 %v988, %v3178
        %v3225 = vmul.f32 %v989, %v3178
        %v3226 = vmul.f32 %v990, %v3178
        %v3227 = vmul.f32 %v991, %v3178
        %v3228 = vmul.f32 %v992, %v3178
        %v3229 = vmul.f32 %v993, %v3178
        %v3230 = vmul.f32 %v994, %v3178
        %v3231 = vmul.f32 %v995, %v3178
        %v3232 = vmul.f32 %v996, %v3178
        %v3233 = vmul.f32 %v997, %v3178
        %v3234 = vmul.f32 %v998, %v3178
        %v3235 = vmul.f32 %v999, %v3178
        %v3236 = vmul.f32 %v1000, %v3178
        %v3237 = vmul.f32 %v1001, %v3178
        %v3238 = vmul.f32 %v1002, %v3178
        %v3239 = vmul.f32 %v1003, %v3178
        %v3301 = vrot.slane %v3179, 1
        %v3302 = vrot.slane %v3180, 1
        %v3303 = vsel %vm1258, %v3301, %v3302
        %v3304 = vrot.slane %v3181, 1
        %v3305 = vrot.slane %v3182, 1
        %v3306 = vsel %vm1258, %v3304, %v3305
        %v3307 = vrot.slane %v3183, 1
        %v3308 = vrot.slane %v3184, 1
        %v3309 = vsel %vm1258, %v3307, %v3308
        %v3310 = vrot.slane %v3185, 1
        %v3311 = vrot.slane %v3186, 1
        %v3312 = vsel %vm1258, %v3310, %v3311
        %v3313 = vrot.slane %v3187, 1
        %v3314 = vrot.slane %v3188, 1
        %v3315 = vsel %vm1258, %v3313, %v3314
        %v3316 = vrot.slane %v3189, 1
        %v3317 = vrot.slane %v3190, 1
        %v3318 = vsel %vm1258, %v3316, %v3317
        %v3319 = vrot.slane %v3191, 1
        %v3320 = vrot.slane %v3192, 1
        %v3321 = vsel %vm1258, %v3319, %v3320
        %v3322 = vrot.slane %v3193, 1
        %v3323 = vrot.slane %v3194, 1
        %v3324 = vsel %vm1258, %v3322, %v3323
        %v3325 = vrot.slane %v3195, 1
        %v3326 = vrot.slane %v3196, 1
        %v3327 = vsel %vm1258, %v3325, %v3326
        %v3328 = vrot.slane %v3197, 1
        %v3329 = vrot.slane %v3198, 1
        %v3330 = vsel %vm1258, %v3328, %v3329
        %v3331 = vrot.slane %v3199, 1
        %v3332 = vrot.slane %v3200, 1
        %v3333 = vsel %vm1258, %v3331, %v3332
        %v3334 = vrot.slane %v3201, 1
        %v3335 = vrot.slane %v3202, 1
        %v3336 = vsel %vm1258, %v3334, %v3335
        %v3337 = vrot.slane %v3203, 1
        %v3338 = vrot.slane %v3204, 1
        %v3339 = vsel %vm1258, %v3337, %v3338
        %v3340 = vrot.slane %v3205, 1
        %v3341 = vrot.slane %v3206, 1
        %v3342 = vsel %vm1258, %v3340, %v3341
        %v3343 = vrot.slane %v3207, 1
        %v3344 = vrot.slane %v3208, 1
        %v3345 = vsel %vm1258, %v3343, %v3344
        %v3346 = vrot.slane %v3209, 1
        %v3347 = vsel %vm1258, %v3346, %v3346
        %v3348 = vrot.slane %v3210, 1
        %v3349 = vrot.slane %v3211, 1
        %v3350 = vsel %vm1258, %v3348, %v3349
        %v3351 = vrot.slane %v3212, 1
        %v3352 = vrot.slane %v3213, 1
        %v3353 = vsel %vm1258, %v3351, %v3352
        %v3354 = vrot.slane %v3214, 1
        %v3355 = vrot.slane %v3215, 1
        %v3356 = vsel %vm1258, %v3354, %v3355
        %v3357 = vrot.slane %v3216, 1
        %v3358 = vrot.slane %v3217, 1
        %v3359 = vsel %vm1258, %v3357, %v3358
        %v3360 = vrot.slane %v3218, 1
        %v3361 = vrot.slane %v3219, 1
        %v3362 = vsel %vm1258, %v3360, %v3361
        %v3363 = vrot.slane %v3220, 1
        %v3364 = vrot.slane %v3221, 1
        %v3365 = vsel %vm1258, %v3363, %v3364
        %v3366 = vrot.slane %v3222, 1
        %v3367 = vrot.slane %v3223, 1
        %v3368 = vsel %vm1258, %v3366, %v3367
        %v3369 = vrot.slane %v3224, 1
        %v3370 = vrot.slane %v3225, 1
        %v3371 = vsel %vm1258, %v3369, %v3370
        %v3372 = vrot.slane %v3226, 1
        %v3373 = vrot.slane %v3227, 1
        %v3374 = vsel %vm1258, %v3372, %v3373
        %v3375 = vrot.slane %v3228, 1
        %v3376 = vrot.slane %v3229, 1
        %v3377 = vsel %vm1258, %v3375, %v3376
        %v3378 = vrot.slane %v3230, 1
        %v3379 = vrot.slane %v3231, 1
        %v3380 = vsel %vm1258, %v3378, %v3379
        %v3381 = vrot.slane %v3232, 1
        %v3382 = vrot.slane %v3233, 1
        %v3383 = vsel %vm1258, %v3381, %v3382
        %v3384 = vrot.slane %v3234, 1
        %v3385 = vrot.slane %v3235, 1
        %v3386 = vsel %vm1258, %v3384, %v3385
        %v3387 = vrot.slane %v3236, 1
        %v3388 = vrot.slane %v3237, 1
        %v3389 = vsel %vm1258, %v3387, %v3388
        %v3390 = vrot.slane %v3238, 1
        %v3391 = vrot.slane %v3239, 1
        %v3392 = vsel %vm1258, %v3390, %v3391
        %v3485 = vadd.f32 %v3078, %v3301
        %v3486 = vadd.f32 %v3079, %v3303
        %v3487 = vadd.f32 %v3080, %v3302
        %v3488 = vadd.f32 %v3081, %v3304
        %v3489 = vadd.f32 %v3082, %v3306
        %v3490 = vadd.f32 %v3083, %v3305
        %v3491 = vadd.f32 %v3084, %v3307
        %v3492 = vadd.f32 %v3085, %v3309
        %v3493 = vadd.f32 %v3086, %v3308
        %v3494 = vadd.f32 %v3087, %v3310
        %v3495 = vadd.f32 %v3088, %v3312
        %v3496 = vadd.f32 %v3089, %v3311
        %v3497 = vadd.f32 %v3090, %v3313
        %v3498 = vadd.f32 %v3091, %v3315
        %v3499 = vadd.f32 %v3092, %v3314
        %v3500 = vadd.f32 %v3093, %v3316
        %v3501 = vadd.f32 %v3094, %v3318
        %v3502 = vadd.f32 %v3095, %v3317
        %v3503 = vadd.f32 %v3096, %v3319
        %v3504 = vadd.f32 %v3097, %v3321
        %v3505 = vadd.f32 %v3098, %v3320
        %v3506 = vadd.f32 %v3099, %v3322
        %v3507 = vadd.f32 %v3100, %v3324
        %v3508 = vadd.f32 %v3101, %v3323
        %v3509 = vadd.f32 %v3102, %v3325
        %v3510 = vadd.f32 %v3103, %v3327
        %v3511 = vadd.f32 %v3104, %v3326
        %v3512 = vadd.f32 %v3105, %v3328
        %v3513 = vadd.f32 %v3106, %v3330
        %v3514 = vadd.f32 %v3107, %v3329
        %v3515 = vadd.f32 %v3108, %v3331
        %v3516 = vadd.f32 %v3109, %v3333
        %v3517 = vadd.f32 %v3110, %v3332
        %v3518 = vadd.f32 %v3111, %v3334
        %v3519 = vadd.f32 %v3112, %v3336
        %v3520 = vadd.f32 %v3113, %v3335
        %v3521 = vadd.f32 %v3114, %v3337
        %v3522 = vadd.f32 %v3115, %v3339
        %v3523 = vadd.f32 %v3116, %v3338
        %v3524 = vadd.f32 %v3117, %v3340
        %v3525 = vadd.f32 %v3118, %v3342
        %v3526 = vadd.f32 %v3119, %v3341
        %v3527 = vadd.f32 %v3120, %v3343
        %v3528 = vadd.f32 %v3121, %v3345
        %v3529 = vadd.f32 %v3122, %v3344
        %v3530 = vadd.f32 %v3123, %v3346
        %v3531 = vadd.f32 %v3124, %v3347
        %v3532 = vadd.f32 %v3125, %v3346
        %v3533 = vadd.f32 %v3126, %v3348
        %v3534 = vadd.f32 %v3127, %v3350
        %v3535 = vadd.f32 %v3128, %v3349
        %v3536 = vadd.f32 %v3129, %v3351
        %v3537 = vadd.f32 %v3130, %v3353
        %v3538 = vadd.f32 %v3131, %v3352
        %v3539 = vadd.f32 %v3132, %v3354
        %v3540 = vadd.f32 %v3133, %v3356
        %v3541 = vadd.f32 %v3134, %v3355
        %v3542 = vadd.f32 %v3135, %v3357
        %v3543 = vadd.f32 %v3136, %v3359
        %v3544 = vadd.f32 %v3137, %v3358
        %v3545 = vadd.f32 %v3138, %v3360
        %v3546 = vadd.f32 %v3139, %v3362
        %v3547 = vadd.f32 %v3140, %v3361
        %v3548 = vadd.f32 %v3141, %v3363
        %v3549 = vadd.f32 %v3142, %v3365
        %v3550 = vadd.f32 %v3143, %v3364
        %v3551 = vadd.f32 %v3144, %v3366
        %v3552 = vadd.f32 %v3145, %v3368
        %v3553 = vadd.f32 %v3146, %v3367
        %v3554 = vadd.f32 %v3147, %v3369
        %v3555 = vadd.f32 %v3148, %v3371
        %v3556 = vadd.f32 %v3149, %v3370
        %v3557 = vadd.f32 %v3150, %v3372
        %v3558 = vadd.f32 %v3151, %v3374
        %v3559 = vadd.f32 %v3152, %v3373
        %v3560 = vadd.f32 %v3153, %v3375
        %v3561 = vadd.f32 %v3154, %v3377
        %v3562 = vadd.f32 %v3155, %v3376
        %v3563 = vadd.f32 %v3156, %v3378
        %v3564 = vadd.f32 %v3157, %v3380
        %v3565 = vadd.f32 %v3158, %v3379
        %v3566 = vadd.f32 %v3159, %v3381
        %v3567 = vadd.f32 %v3160, %v3383
        %v3568 = vadd.f32 %v3161, %v3382
        %v3569 = vadd.f32 %v3162, %v3384
        %v3570 = vadd.f32 %v3163, %v3386
        %v3571 = vadd.f32 %v3164, %v3385
        %v3572 = vadd.f32 %v3165, %v3387
        %v3573 = vadd.f32 %v3166, %v3389
        %v3574 = vadd.f32 %v3167, %v3388
        %v3575 = vadd.f32 %v3168, %v3390
        %v3576 = vadd.f32 %v3169, %v3392
        %v3577 = vadd.f32 %v3170, %v3391
        %v3578 = vadd.f32 %v3171, %v3346
        %v3579 = vadd.f32 %v3172, %v3347
        %v3580 = vadd.f32 %v3173, %v3346
        %v3581 = vld [vmem:[%s2 + $0x8] sm:$0x1]
        %v3582 = vlaneseq
        %v3583 = vshrl.u32 %v3582, 7
        %v3584 = vsub.s32 0, %v3583
        %v3585 = vrot.slane %v3581, %v3584
        %v3586 = vmul.f32 %v942, %v3585
        %v3587 = vmul.f32 %v943, %v3585
        %v3588 = vmul.f32 %v3585, 0.0
        %v3589 = vmul.f32 %v944, %v3585
        %v3590 = vmul.f32 %v945, %v3585
        %v3591 = vmul.f32 %v946, %v3585
        %v3592 = vmul.f32 %v947, %v3585
        %v3593 = vmul.f32 %v948, %v3585
        %v3594 = vmul.f32 %v949, %v3585
        %v3595 = vmul.f32 %v950, %v3585
        %v3596 = vmul.f32 %v951, %v3585
        %v3597 = vmul.f32 %v952, %v3585
        %v3598 = vmul.f32 %v953, %v3585
        %v3599 = vmul.f32 %v954, %v3585
        %v3600 = vmul.f32 %v955, %v3585
        %v3601 = vmul.f32 %v956, %v3585
        %v3602 = vmul.f32 %v957, %v3585
        %v3603 = vmul.f32 %v958, %v3585
        %v3604 = vmul.f32 %v959, %v3585
        %v3605 = vmul.f32 %v960, %v3585
        %v3606 = vmul.f32 %v961, %v3585
        %v3607 = vmul.f32 %v962, %v3585
        %v3608 = vmul.f32 %v963, %v3585
        %v3609 = vmul.f32 %v964, %v3585
        %v3610 = vmul.f32 %v965, %v3585
        %v3611 = vmul.f32 %v966, %v3585
        %v3612 = vmul.f32 %v967, %v3585
        %v3613 = vmul.f32 %v968, %v3585
        %v3614 = vmul.f32 %v969, %v3585
        %v3615 = vmul.f32 %v970, %v3585
        %v3616 = vmul.f32 %v971, %v3585
        %v3617 = vmul.f32 %v974, %v3585
        %v3618 = vmul.f32 %v975, %v3585
        %v3619 = vmul.f32 %v976, %v3585
        %v3620 = vmul.f32 %v977, %v3585
        %v3621 = vmul.f32 %v978, %v3585
        %v3622 = vmul.f32 %v979, %v3585
        %v3623 = vmul.f32 %v980, %v3585
        %v3624 = vmul.f32 %v981, %v3585
        %v3625 = vmul.f32 %v982, %v3585
        %v3626 = vmul.f32 %v983, %v3585
        %v3627 = vmul.f32 %v984, %v3585
        %v3628 = vmul.f32 %v985, %v3585
        %v3629 = vmul.f32 %v986, %v3585
        %v3630 = vmul.f32 %v987, %v3585
        %v3631 = vmul.f32 %v988, %v3585
        %v3632 = vmul.f32 %v989, %v3585
        %v3633 = vmul.f32 %v990, %v3585
        %v3634 = vmul.f32 %v991, %v3585
        %v3635 = vmul.f32 %v992, %v3585
        %v3636 = vmul.f32 %v993, %v3585
        %v3637 = vmul.f32 %v994, %v3585
        %v3638 = vmul.f32 %v995, %v3585
        %v3639 = vmul.f32 %v996, %v3585
        %v3640 = vmul.f32 %v997, %v3585
        %v3641 = vmul.f32 %v998, %v3585
        %v3642 = vmul.f32 %v999, %v3585
        %v3643 = vmul.f32 %v1000, %v3585
        %v3644 = vmul.f32 %v1001, %v3585
        %v3645 = vmul.f32 %v1002, %v3585
        %v3646 = vmul.f32 %v1003, %v3585
        %v3708 = vrot.slane %v3586, 2
        %v3709 = vrot.slane %v3587, 2
        %v3710 = vsel %vm1662, %v3708, %v3709
        %v3711 = vrot.slane %v3588, 2
        %v3712 = vsel %vm1662, %v3709, %v3711
        %v3713 = vrot.slane %v3589, 2
        %v3714 = vrot.slane %v3590, 2
        %v3715 = vsel %vm1662, %v3713, %v3714
        %v3716 = vsel %vm1662, %v3714, %v3711
        %v3717 = vrot.slane %v3591, 2
        %v3718 = vrot.slane %v3592, 2
        %v3719 = vsel %vm1662, %v3717, %v3718
        %v3720 = vsel %vm1662, %v3718, %v3711
        %v3721 = vrot.slane %v3593, 2
        %v3722 = vrot.slane %v3594, 2
        %v3723 = vsel %vm1662, %v3721, %v3722
        %v3724 = vsel %vm1662, %v3722, %v3711
        %v3725 = vrot.slane %v3595, 2
        %v3726 = vrot.slane %v3596, 2
        %v3727 = vsel %vm1662, %v3725, %v3726
        %v3728 = vsel %vm1662, %v3726, %v3711
        %v3729 = vrot.slane %v3597, 2
        %v3730 = vrot.slane %v3598, 2
        %v3731 = vsel %vm1662, %v3729, %v3730
        %v3732 = vsel %vm1662, %v3730, %v3711
        %v3733 = vrot.slane %v3599, 2
        %v3734 = vrot.slane %v3600, 2
        %v3735 = vsel %vm1662, %v3733, %v3734
        %v3736 = vsel %vm1662, %v3734, %v3711
        %v3737 = vrot.slane %v3601, 2
        %v3738 = vrot.slane %v3602, 2
        %v3739 = vsel %vm1662, %v3737, %v3738
        %v3740 = vsel %vm1662, %v3738, %v3711
        %v3741 = vrot.slane %v3603, 2
        %v3742 = vrot.slane %v3604, 2
        %v3743 = vsel %vm1662, %v3741, %v3742
        %v3744 = vsel %vm1662, %v3742, %v3711
        %v3745 = vrot.slane %v3605, 2
        %v3746 = vrot.slane %v3606, 2
        %v3747 = vsel %vm1662, %v3745, %v3746
        %v3748 = vsel %vm1662, %v3746, %v3711
        %v3749 = vrot.slane %v3607, 2
        %v3750 = vrot.slane %v3608, 2
        %v3751 = vsel %vm1662, %v3749, %v3750
        %v3752 = vsel %vm1662, %v3750, %v3711
        %v3753 = vrot.slane %v3609, 2
        %v3754 = vrot.slane %v3610, 2
        %v3755 = vsel %vm1662, %v3753, %v3754
        %v3756 = vsel %vm1662, %v3754, %v3711
        %v3757 = vrot.slane %v3611, 2
        %v3758 = vrot.slane %v3612, 2
        %v3759 = vsel %vm1662, %v3757, %v3758
        %v3760 = vsel %vm1662, %v3758, %v3711
        %v3761 = vrot.slane %v3613, 2
        %v3762 = vrot.slane %v3614, 2
        %v3763 = vsel %vm1662, %v3761, %v3762
        %v3764 = vsel %vm1662, %v3762, %v3711
        %v3765 = vrot.slane %v3615, 2
        %v3766 = vrot.slane %v3616, 2
        %v3767 = vsel %vm1662, %v3765, %v3766
        %v3768 = vsel %vm1662, %v3766, %v3711
        %v3769 = vsel %vm1662, %v3711, %v3711
        %v3770 = vrot.slane %v3617, 2
        %v3771 = vrot.slane %v3618, 2
        %v3772 = vsel %vm1662, %v3770, %v3771
        %v3773 = vsel %vm1662, %v3771, %v3711
        %v3774 = vrot.slane %v3619, 2
        %v3775 = vrot.slane %v3620, 2
        %v3776 = vsel %vm1662, %v3774, %v3775
        %v3777 = vsel %vm1662, %v3775, %v3711
        %v3778 = vrot.slane %v3621, 2
        %v3779 = vrot.slane %v3622, 2
        %v3780 = vsel %vm1662, %v3778, %v3779
        %v3781 = vsel %vm1662, %v3779, %v3711
        %v3782 = vrot.slane %v3623, 2
        %v3783 = vrot.slane %v3624, 2
        %v3784 = vsel %vm1662, %v3782, %v3783
        %v3785 = vsel %vm1662, %v3783, %v3711
        %v3786 = vrot.slane %v3625, 2
        %v3787 = vrot.slane %v3626, 2
        %v3788 = vsel %vm1662, %v3786, %v3787
        %v3789 = vsel %vm1662, %v3787, %v3711
        %v3790 = vrot.slane %v3627, 2
        %v3791 = vrot.slane %v3628, 2
        %v3792 = vsel %vm1662, %v3790, %v3791
        %v3793 = vsel %vm1662, %v3791, %v3711
        %v3794 = vrot.slane %v3629, 2
        %v3795 = vrot.slane %v3630, 2
        %v3796 = vsel %vm1662, %v3794, %v3795
        %v3797 = vsel %vm1662, %v3795, %v3711
        %v3798 = vrot.slane %v3631, 2
        %v3799 = vrot.slane %v3632, 2
        %v3800 = vsel %vm1662, %v3798, %v3799
        %v3801 = vsel %vm1662, %v3799, %v3711
        %v3802 = vrot.slane %v3633, 2
        %v3803 = vrot.slane %v3634, 2
        %v3804 = vsel %vm1662, %v3802, %v3803
        %v3805 = vsel %vm1662, %v3803, %v3711
        %v3806 = vrot.slane %v3635, 2
        %v3807 = vrot.slane %v3636, 2
        %v3808 = vsel %vm1662, %v3806, %v3807
        %v3809 = vsel %vm1662, %v3807, %v3711
        %v3810 = vrot.slane %v3637, 2
        %v3811 = vrot.slane %v3638, 2
        %v3812 = vsel %vm1662, %v3810, %v3811
        %v3813 = vsel %vm1662, %v3811, %v3711
        %v3814 = vrot.slane %v3639, 2
        %v3815 = vrot.slane %v3640, 2
        %v3816 = vsel %vm1662, %v3814, %v3815
        %v3817 = vsel %vm1662, %v3815, %v3711
        %v3818 = vrot.slane %v3641, 2
        %v3819 = vrot.slane %v3642, 2
        %v3820 = vsel %vm1662, %v3818, %v3819
        %v3821 = vsel %vm1662, %v3819, %v3711
        %v3822 = vrot.slane %v3643, 2
        %v3823 = vrot.slane %v3644, 2
        %v3824 = vsel %vm1662, %v3822, %v3823
        %v3825 = vsel %vm1662, %v3823, %v3711
        %v3826 = vrot.slane %v3645, 2
        %v3827 = vrot.slane %v3646, 2
        %v3828 = vsel %vm1662, %v3826, %v3827
        %v3829 = vsel %vm1662, %v3827, %v3711
        %v3922 = vadd.f32 %v3485, %v3708
        %v3923 = vadd.f32 %v3486, %v3710
        %v3924 = vadd.f32 %v3487, %v3712
        %v3925 = vadd.f32 %v3488, %v3713
        %v3926 = vadd.f32 %v3489, %v3715
        %v3927 = vadd.f32 %v3490, %v3716
        %v3928 = vadd.f32 %v3491, %v3717
        %v3929 = vadd.f32 %v3492, %v3719
        %v3930 = vadd.f32 %v3493, %v3720
        %v3931 = vadd.f32 %v3494, %v3721
        %v3932 = vadd.f32 %v3495, %v3723
        %v3933 = vadd.f32 %v3496, %v3724
        %v3934 = vadd.f32 %v3497, %v3725
        %v3935 = vadd.f32 %v3498, %v3727
        %v3936 = vadd.f32 %v3499, %v3728
        %v3937 = vadd.f32 %v3500, %v3729
        %v3938 = vadd.f32 %v3501, %v3731
        %v3939 = vadd.f32 %v3502, %v3732
        %v3940 = vadd.f32 %v3503, %v3733
        %v3941 = vadd.f32 %v3504, %v3735
        %v3942 = vadd.f32 %v3505, %v3736
        %v3943 = vadd.f32 %v3506, %v3737
        %v3944 = vadd.f32 %v3507, %v3739
        %v3945 = vadd.f32 %v3508, %v3740
        %v3946 = vadd.f32 %v3509, %v3741
        %v3947 = vadd.f32 %v3510, %v3743
        %v3948 = vadd.f32 %v3511, %v3744
        %v3949 = vadd.f32 %v3512, %v3745
        %v3950 = vadd.f32 %v3513, %v3747
        %v3951 = vadd.f32 %v3514, %v3748
        %v3952 = vadd.f32 %v3515, %v3749
        %v3953 = vadd.f32 %v3516, %v3751
        %v3954 = vadd.f32 %v3517, %v3752
        %v3955 = vadd.f32 %v3518, %v3753
        %v3956 = vadd.f32 %v3519, %v3755
        %v3957 = vadd.f32 %v3520, %v3756
        %v3958 = vadd.f32 %v3521, %v3757
        %v3959 = vadd.f32 %v3522, %v3759
        %v3960 = vadd.f32 %v3523, %v3760
        %v3961 = vadd.f32 %v3524, %v3761
        %v3962 = vadd.f32 %v3525, %v3763
        %v3963 = vadd.f32 %v3526, %v3764
        %v3964 = vadd.f32 %v3527, %v3765
        %v3965 = vadd.f32 %v3528, %v3767
        %v3966 = vadd.f32 %v3529, %v3768
        %v3967 = vadd.f32 %v3530, %v3711
        %v3968 = vadd.f32 %v3531, %v3769
        %v3969 = vadd.f32 %v3532, %v3769
        %v3970 = vadd.f32 %v3533, %v3770
        %v3971 = vadd.f32 %v3534, %v3772
        %v3972 = vadd.f32 %v3535, %v3773
        %v3973 = vadd.f32 %v3536, %v3774
        %v3974 = vadd.f32 %v3537, %v3776
        %v3975 = vadd.f32 %v3538, %v3777
        %v3976 = vadd.f32 %v3539, %v3778
        %v3977 = vadd.f32 %v3540, %v3780
        %v3978 = vadd.f32 %v3541, %v3781
        %v3979 = vadd.f32 %v3542, %v3782
        %v3980 = vadd.f32 %v3543, %v3784
        %v3981 = vadd.f32 %v3544, %v3785
        %v3982 = vadd.f32 %v3545, %v3786
        %v3983 = vadd.f32 %v3546, %v3788
        %v3984 = vadd.f32 %v3547, %v3789
        %v3985 = vadd.f32 %v3548, %v3790
        %v3986 = vadd.f32 %v3549, %v3792
        %v3987 = vadd.f32 %v3550, %v3793
        %v3988 = vadd.f32 %v3551, %v3794
        %v3989 = vadd.f32 %v3552, %v3796
        %v3990 = vadd.f32 %v3553, %v3797
        %v3991 = vadd.f32 %v3554, %v3798
        %v3992 = vadd.f32 %v3555, %v3800
        %v3993 = vadd.f32 %v3556, %v3801
        %v3994 = vadd.f32 %v3557, %v3802
        %v3995 = vadd.f32 %v3558, %v3804
        %v3996 = vadd.f32 %v3559, %v3805
        %v3997 = vadd.f32 %v3560, %v3806
        %v3998 = vadd.f32 %v3561, %v3808
        %v3999 = vadd.f32 %v3562, %v3809
        %v4000 = vadd.f32 %v3563, %v3810
        %v4001 = vadd.f32 %v3564, %v3812
        %v4002 = vadd.f32 %v3565, %v3813
        %v4003 = vadd.f32 %v3566, %v3814
        %v4004 = vadd.f32 %v3567, %v3816
        %v4005 = vadd.f32 %v3568, %v3817
        %v4006 = vadd.f32 %v3569, %v3818
        %v4007 = vadd.f32 %v3570, %v3820
        %v4008 = vadd.f32 %v3571, %v3821
        %v4009 = vadd.f32 %v3572, %v3822
        %v4010 = vadd.f32 %v3573, %v3824
        %v4011 = vadd.f32 %v3574, %v3825
        %v4012 = vadd.f32 %v3575, %v3826
        %v4013 = vadd.f32 %v3576, %v3828
        %v4014 = vadd.f32 %v3577, %v3829
        %v4015 = vadd.f32 %v3578, %v3711
        %v4016 = vadd.f32 %v3579, %v3769
        %v4017 = vadd.f32 %v3580, %v3769
        %v4018 = vld [vmem:[%s8] sm:$0x1]
        %v4020 = vlaneseq
        %v4021 = vshrl.u32 %v4020, 7
        %v4022 = vsub.s32 0, %v4021
        %v4023 = vrot.slane %v4018, %v4022
        %v4025 = vadd.f32 %v3922, %v4023
        %v4026 = vadd.f32 %v3923, %v4023
        %v4027 = vadd.f32 %v3924, %v4023
        %v4028 = vadd.f32 %v3925, %v4023
        %v4029 = vadd.f32 %v3926, %v4023
        %v4030 = vadd.f32 %v3927, %v4023
        %v4031 = vadd.f32 %v3928, %v4023
        %v4032 = vadd.f32 %v3929, %v4023
        %v4033 = vadd.f32 %v3930, %v4023
        %v4034 = vadd.f32 %v3931, %v4023
        %v4035 = vadd.f32 %v3932, %v4023
        %v4036 = vadd.f32 %v3933, %v4023
        %v4037 = vadd.f32 %v3934, %v4023
        %v4038 = vadd.f32 %v3935, %v4023
        %v4039 = vadd.f32 %v3936, %v4023
        %v4040 = vadd.f32 %v3937, %v4023
        %v4041 = vadd.f32 %v3938, %v4023
        %v4042 = vadd.f32 %v3939, %v4023
        %v4043 = vadd.f32 %v3940, %v4023
        %v4044 = vadd.f32 %v3941, %v4023
        %v4045 = vadd.f32 %v3942, %v4023
        %v4046 = vadd.f32 %v3943, %v4023
        %v4047 = vadd.f32 %v3944, %v4023
        %v4048 = vadd.f32 %v3945, %v4023
        %v4049 = vadd.f32 %v3946, %v4023
        %v4050 = vadd.f32 %v3947, %v4023
        %v4051 = vadd.f32 %v3948, %v4023
        %v4052 = vadd.f32 %v3949, %v4023
        %v4053 = vadd.f32 %v3950, %v4023
        %v4054 = vadd.f32 %v3951, %v4023
        %v4055 = vadd.f32 %v3952, %v4023
        %v4056 = vadd.f32 %v3953, %v4023
        %v4057 = vadd.f32 %v3954, %v4023
        %v4058 = vadd.f32 %v3955, %v4023
        %v4059 = vadd.f32 %v3956, %v4023
        %v4060 = vadd.f32 %v3957, %v4023
        %v4061 = vadd.f32 %v3958, %v4023
        %v4062 = vadd.f32 %v3959, %v4023
        %v4063 = vadd.f32 %v3960, %v4023
        %v4064 = vadd.f32 %v3961, %v4023
        %v4065 = vadd.f32 %v3962, %v4023
        %v4066 = vadd.f32 %v3963, %v4023
        %v4067 = vadd.f32 %v3964, %v4023
        %v4068 = vadd.f32 %v3965, %v4023
        %v4069 = vadd.f32 %v3966, %v4023
        %v4070 = vadd.f32 %v3967, %v4023
        %v4071 = vadd.f32 %v3968, %v4023
        %v4072 = vadd.f32 %v3969, %v4023
        %v4073 = vadd.f32 %v3970, %v4023
        %v4074 = vadd.f32 %v3971, %v4023
        %v4075 = vadd.f32 %v3972, %v4023
        %v4076 = vadd.f32 %v3973, %v4023
        %v4077 = vadd.f32 %v3974, %v4023
        %v4078 = vadd.f32 %v3975, %v4023
        %v4079 = vadd.f32 %v3976, %v4023
        %v4080 = vadd.f32 %v3977, %v4023
        %v4081 = vadd.f32 %v3978, %v4023
        %v4082 = vadd.f32 %v3979, %v4023
        %v4083 = vadd.f32 %v3980, %v4023
        %v4084 = vadd.f32 %v3981, %v4023
        %v4085 = vadd.f32 %v3982, %v4023
        %v4086 = vadd.f32 %v3983, %v4023
        %v4087 = vadd.f32 %v3984, %v4023
        %v4088 = vadd.f32 %v3985, %v4023
        %v4089 = vadd.f32 %v3986, %v4023
        %v4090 = vadd.f32 %v3987, %v4023
        %v4091 = vadd.f32 %v3988, %v4023
        %v4092 = vadd.f32 %v3989, %v4023
        %v4093 = vadd.f32 %v3990, %v4023
        %v4094 = vadd.f32 %v3991, %v4023
        %v4095 = vadd.f32 %v3992, %v4023
        %v4096 = vadd.f32 %v3993, %v4023
        %v4097 = vadd.f32 %v3994, %v4023
        %v4098 = vadd.f32 %v3995, %v4023
        %v4099 = vadd.f32 %v3996, %v4023
        %v4100 = vadd.f32 %v3997, %v4023
        %v4101 = vadd.f32 %v3998, %v4023
        %v4102 = vadd.f32 %v3999, %v4023
        %v4103 = vadd.f32 %v4000, %v4023
        %v4104 = vadd.f32 %v4001, %v4023
        %v4105 = vadd.f32 %v4002, %v4023
        %v4106 = vadd.f32 %v4003, %v4023
        %v4107 = vadd.f32 %v4004, %v4023
        %v4108 = vadd.f32 %v4005, %v4023
        %v4109 = vadd.f32 %v4006, %v4023
        %v4110 = vadd.f32 %v4007, %v4023
        %v4111 = vadd.f32 %v4008, %v4023
        %v4112 = vadd.f32 %v4009, %v4023
        %v4113 = vadd.f32 %v4010, %v4023
        %v4114 = vadd.f32 %v4011, %v4023
        %v4115 = vadd.f32 %v4012, %v4023
        %v4116 = vadd.f32 %v4013, %v4023
        %v4117 = vadd.f32 %v4014, %v4023
        %v4118 = vadd.f32 %v4015, %v4023
        %v4119 = vadd.f32 %v4016, %v4023
        %v4120 = vadd.f32 %v4017, %v4023
        %v4121 = vmax.f32 %v4025, 0.0
        %v4122 = vmax.f32 %v4026, 0.0
        %v4123 = vmax.f32 %v4027, 0.0
        %v4124 = vmax.f32 %v4028, 0.0
        %v4125 = vmax.f32 %v4029, 0.0
        %v4126 = vmax.f32 %v4030, 0.0
        %v4127 = vmax.f32 %v4031, 0.0
        %v4128 = vmax.f32 %v4032, 0.0
        %v4129 = vmax.f32 %v4033, 0.0
        %v4130 = vmax.f32 %v4034, 0.0
        %v4131 = vmax.f32 %v4035, 0.0
        %v4132 = vmax.f32 %v4036, 0.0
        %v4133 = vmax.f32 %v4037, 0.0
        %v4134 = vmax.f32 %v4038, 0.0
        %v4135 = vmax.f32 %v4039, 0.0
        %v4136 = vmax.f32 %v4040, 0.0
        %v4137 = vmax.f32 %v4041, 0.0
        %v4138 = vmax.f32 %v4042, 0.0
        %v4139 = vmax.f32 %v4043, 0.0
        %v4140 = vmax.f32 %v4044, 0.0
        %v4141 = vmax.f32 %v4045, 0.0
        %v4142 = vmax.f32 %v4046, 0.0
        %v4143 = vmax.f32 %v4047, 0.0
        %v4144 = vmax.f32 %v4048, 0.0
        %v4145 = vmax.f32 %v4049, 0.0
        %v4146 = vmax.f32 %v4050, 0.0
        %v4147 = vmax.f32 %v4051, 0.0
        %v4148 = vmax.f32 %v4052, 0.0
        %v4149 = vmax.f32 %v4053, 0.0
        %v4150 = vmax.f32 %v4054, 0.0
        %v4151 = vmax.f32 %v4055, 0.0
        %v4152 = vmax.f32 %v4056, 0.0
        %v4153 = vmax.f32 %v4057, 0.0
        %v4154 = vmax.f32 %v4058, 0.0
        %v4155 = vmax.f32 %v4059, 0.0
        %v4156 = vmax.f32 %v4060, 0.0
        %v4157 = vmax.f32 %v4061, 0.0
        %v4158 = vmax.f32 %v4062, 0.0
        %v4159 = vmax.f32 %v4063, 0.0
        %v4160 = vmax.f32 %v4064, 0.0
        %v4161 = vmax.f32 %v4065, 0.0
        %v4162 = vmax.f32 %v4066, 0.0
        %v4163 = vmax.f32 %v4067, 0.0
        %v4164 = vmax.f32 %v4068, 0.0
        %v4165 = vmax.f32 %v4069, 0.0
        %v4166 = vmax.f32 %v4070, 0.0
        %v4167 = vmax.f32 %v4071, 0.0
        %v4168 = vmax.f32 %v4072, 0.0
        %v4169 = vmax.f32 %v4073, 0.0
        %v4170 = vmax.f32 %v4074, 0.0
        %v4171 = vmax.f32 %v4075, 0.0
        %v4172 = vmax.f32 %v4076, 0.0
        %v4173 = vmax.f32 %v4077, 0.0
        %v4174 = vmax.f32 %v4078, 0.0
        %v4175 = vmax.f32 %v4079, 0.0
        %v4176 = vmax.f32 %v4080, 0.0
        %v4177 = vmax.f32 %v4081, 0.0
        %v4178 = vmax.f32 %v4082, 0.0
        %v4179 = vmax.f32 %v4083, 0.0
        %v4180 = vmax.f32 %v4084, 0.0
        %v4181 = vmax.f32 %v4085, 0.0
        %v4182 = vmax.f32 %v4086, 0.0
        %v4183 = vmax.f32 %v4087, 0.0
        %v4184 = vmax.f32 %v4088, 0.0
        %v4185 = vmax.f32 %v4089, 0.0
        %v4186 = vmax.f32 %v4090, 0.0
        %v4187 = vmax.f32 %v4091, 0.0
        %v4188 = vmax.f32 %v4092, 0.0
        %v4189 = vmax.f32 %v4093, 0.0
        %v4190 = vmax.f32 %v4094, 0.0
        %v4191 = vmax.f32 %v4095, 0.0
        %v4192 = vmax.f32 %v4096, 0.0
        %v4193 = vmax.f32 %v4097, 0.0
        %v4194 = vmax.f32 %v4098, 0.0
        %v4195 = vmax.f32 %v4099, 0.0
        %v4196 = vmax.f32 %v4100, 0.0
        %v4197 = vmax.f32 %v4101, 0.0
        %v4198 = vmax.f32 %v4102, 0.0
        %v4199 = vmax.f32 %v4103, 0.0
        %v4200 = vmax.f32 %v4104, 0.0
        %v4201 = vmax.f32 %v4105, 0.0
        %v4202 = vmax.f32 %v4106, 0.0
        %v4203 = vmax.f32 %v4107, 0.0
        %v4204 = vmax.f32 %v4108, 0.0
        %v4205 = vmax.f32 %v4109, 0.0
        %v4206 = vmax.f32 %v4110, 0.0
        %v4207 = vmax.f32 %v4111, 0.0
        %v4208 = vmax.f32 %v4112, 0.0
        %v4209 = vmax.f32 %v4113, 0.0
        %v4210 = vmax.f32 %v4114, 0.0
        %v4211 = vmax.f32 %v4115, 0.0
        %v4212 = vmax.f32 %v4116, 0.0
        %v4213 = vmax.f32 %v4117, 0.0
        %v4214 = vmax.f32 %v4118, 0.0
        %v4215 = vmax.f32 %v4119, 0.0
        %v4216 = vmax.f32 %v4120, 0.0
        %vm4313 = vcmask 1040384
        %v4314 = vrot.slane %v4121, 7
        %v4315 = vrot.slane %v4122, 7
        %v4316 = vsel %vm4313, %v4314, %v4315
        %v4317 = vrot.slane %v4123, 7
        %v4318 = vsel %vm4313, %v4315, %v4317
        %v4319 = vrot.slane %v4124, 7
        %v4320 = vrot.slane %v4125, 7
        %v4321 = vsel %vm4313, %v4319, %v4320
        %v4322 = vrot.slane %v4126, 7
        %v4323 = vsel %vm4313, %v4320, %v4322
        %v4324 = vrot.slane %v4127, 7
        %v4325 = vrot.slane %v4128, 7
        %v4326 = vsel %vm4313, %v4324, %v4325
        %v4327 = vrot.slane %v4129, 7
        %v4328 = vsel %vm4313, %v4325, %v4327
        %v4329 = vrot.slane %v4130, 7
        %v4330 = vrot.slane %v4131, 7
        %v4331 = vsel %vm4313, %v4329, %v4330
        %v4332 = vrot.slane %v4132, 7
        %v4333 = vsel %vm4313, %v4330, %v4332
        %v4334 = vrot.slane %v4133, 7
        %v4335 = vrot.slane %v4134, 7
        %v4336 = vsel %vm4313, %v4334, %v4335
        %v4337 = vrot.slane %v4135, 7
        %v4338 = vsel %vm4313, %v4335, %v4337
        %v4339 = vrot.slane %v4136, 7
        %v4340 = vrot.slane %v4137, 7
        %v4341 = vsel %vm4313, %v4339, %v4340
        %v4342 = vrot.slane %v4138, 7
        %v4343 = vsel %vm4313, %v4340, %v4342
        %v4344 = vrot.slane %v4139, 7
        %v4345 = vrot.slane %v4140, 7
        %v4346 = vsel %vm4313, %v4344, %v4345
        %v4347 = vrot.slane %v4141, 7
        %v4348 = vsel %vm4313, %v4345, %v4347
        %v4349 = vrot.slane %v4142, 7
        %v4350 = vrot.slane %v4143, 7
        %v4351 = vsel %vm4313, %v4349, %v4350
        %v4352 = vrot.slane %v4144, 7
        %v4353 = vsel %vm4313, %v4350, %v4352
        %v4354 = vrot.slane %v4145, 7
        %v4355 = vrot.slane %v4146, 7
        %v4356 = vsel %vm4313, %v4354, %v4355
        %v4357 = vrot.slane %v4147, 7
        %v4358 = vsel %vm4313, %v4355, %v4357
        %v4359 = vrot.slane %v4148, 7
        %v4360 = vrot.slane %v4149, 7
        %v4361 = vsel %vm4313, %v4359, %v4360
        %v4362 = vrot.slane %v4150, 7
        %v4363 = vsel %vm4313, %v4360, %v4362
        %v4364 = vrot.slane %v4151, 7
        %v4365 = vrot.slane %v4152, 7
        %v4366 = vsel %vm4313, %v4364, %v4365
        %v4367 = vrot.slane %v4153, 7
        %v4368 = vsel %vm4313, %v4365, %v4367
        %v4369 = vrot.slane %v4154, 7
        %v4370 = vrot.slane %v4155, 7
        %v4371 = vsel %vm4313, %v4369, %v4370
        %v4372 = vrot.slane %v4156, 7
        %v4373 = vsel %vm4313, %v4370, %v4372
        %v4374 = vrot.slane %v4157, 7
        %v4375 = vrot.slane %v4158, 7
        %v4376 = vsel %vm4313, %v4374, %v4375
        %v4377 = vrot.slane %v4159, 7
        %v4378 = vsel %vm4313, %v4375, %v4377
        %v4379 = vrot.slane %v4160, 7
        %v4380 = vrot.slane %v4161, 7
        %v4381 = vsel %vm4313, %v4379, %v4380
        %v4382 = vrot.slane %v4162, 7
        %v4383 = vsel %vm4313, %v4380, %v4382
        %v4384 = vrot.slane %v4163, 7
        %v4385 = vrot.slane %v4164, 7
        %v4386 = vsel %vm4313, %v4384, %v4385
        %v4387 = vrot.slane %v4165, 7
        %v4388 = vsel %vm4313, %v4385, %v4387
        %v4389 = vrot.slane %v4166, 7
        %v4390 = vrot.slane %v4167, 7
        %v4391 = vsel %vm4313, %v4389, %v4390
        %v4392 = vrot.slane %v4168, 7
        %v4393 = vsel %vm4313, %v4390, %v4392
        %v4394 = vrot.slane %v4169, 7
        %v4395 = vrot.slane %v4170, 7
        %v4396 = vsel %vm4313, %v4394, %v4395
        %v4397 = vrot.slane %v4171, 7
        %v4398 = vsel %vm4313, %v4395, %v4397
        %v4399 = vrot.slane %v4172, 7
        %v4400 = vrot.slane %v4173, 7
        %v4401 = vsel %vm4313, %v4399, %v4400
        %v4402 = vrot.slane %v4174, 7
        %v4403 = vsel %vm4313, %v4400, %v4402
        %v4404 = vrot.slane %v4175, 7
        %v4405 = vrot.slane %v4176, 7
        %v4406 = vsel %vm4313, %v4404, %v4405
        %v4407 = vrot.slane %v4177, 7
        %v4408 = vsel %vm4313, %v4405, %v4407
        %v4409 = vrot.slane %v4178, 7
        %v4410 = vrot.slane %v4179, 7
        %v4411 = vsel %vm4313, %v4409, %v4410
        %v4412 = vrot.slane %v4180, 7
        %v4413 = vsel %vm4313, %v4410, %v4412
        %v4414 = vrot.slane %v4181, 7
        %v4415 = vrot.slane %v4182, 7
        %v4416 = vsel %vm4313, %v4414, %v4415
        %v4417 = vrot.slane %v4183, 7
        %v4418 = vsel %vm4313, %v4415, %v4417
        %v4419 = vrot.slane %v4184, 7
        %v4420 = vrot.slane %v4185, 7
        %v4421 = vsel %vm4313, %v4419, %v4420
        %v4422 = vrot.slane %v4186, 7
        %v4423 = vsel %vm4313, %v4420, %v4422
        %v4424 = vrot.slane %v4187, 7
        %v4425 = vrot.slane %v4188, 7
        %v4426 = vsel %vm4313, %v4424, %v4425
        %v4427 = vrot.slane %v4189, 7
        %v4428 = vsel %vm4313, %v4425, %v4427
        %v4429 = vrot.slane %v4190, 7
        %v4430 = vrot.slane %v4191, 7
        %v4431 = vsel %vm4313, %v4429, %v4430
        %v4432 = vrot.slane %v4192, 7
        %v4433 = vsel %vm4313, %v4430, %v4432
        %v4434 = vrot.slane %v4193, 7
        %v4435 = vrot.slane %v4194, 7
        %v4436 = vsel %vm4313, %v4434, %v4435
        %v4437 = vrot.slane %v4195, 7
        %v4438 = vsel %vm4313, %v4435, %v4437
        %v4439 = vrot.slane %v4196, 7
        %v4440 = vrot.slane %v4197, 7
        %v4441 = vsel %vm4313, %v4439, %v4440
        %v4442 = vrot.slane %v4198, 7
        %v4443 = vsel %vm4313, %v4440, %v4442
        %v4444 = vrot.slane %v4199, 7
        %v4445 = vrot.slane %v4200, 7
        %v4446 = vsel %vm4313, %v4444, %v4445
        %v4447 = vrot.slane %v4201, 7
        %v4448 = vsel %vm4313, %v4445, %v4447
        %v4449 = vrot.slane %v4202, 7
        %v4450 = vrot.slane %v4203, 7
        %v4451 = vsel %vm4313, %v4449, %v4450
        %v4452 = vrot.slane %v4204, 7
        %v4453 = vsel %vm4313, %v4450, %v4452
        %v4454 = vrot.slane %v4205, 7
        %v4455 = vrot.slane %v4206, 7
        %v4456 = vsel %vm4313, %v4454, %v4455
        %v4457 = vrot.slane %v4207, 7
        %v4458 = vsel %vm4313, %v4455, %v4457
        %v4459 = vrot.slane %v4208, 7
        %v4460 = vrot.slane %v4209, 7
        %v4461 = vsel %vm4313, %v4459, %v4460
        %v4462 = vrot.slane %v4210, 7
        %v4463 = vsel %vm4313, %v4460, %v4462
        %v4464 = vrot.slane %v4211, 7
        %v4465 = vrot.slane %v4212, 7
        %v4466 = vsel %vm4313, %v4464, %v4465
        %v4467 = vrot.slane %v4213, 7
        %v4468 = vsel %vm4313, %v4465, %v4467
        %v4469 = vrot.slane %v4214, 7
        %v4470 = vrot.slane %v4215, 7
        %v4471 = vsel %vm4313, %v4469, %v4470
        %v4472 = vrot.slane %v4216, 7
        %v4473 = vsel %vm4313, %v4470, %v4472
        %v4538 = vpack.c.bf16 %v4318, %v4316
        %v4539 = vpack.c.bf16 %v4323, %v4321
        %v4540 = vpack.c.bf16 %v4328, %v4326
        %v4541 = vpack.c.bf16 %v4333, %v4331
        %v4542 = vpack.c.bf16 %v4338, %v4336
        %v4543 = vpack.c.bf16 %v4343, %v4341
        %v4544 = vpack.c.bf16 %v4348, %v4346
        %v4545 = vpack.c.bf16 %v4353, %v4351
        %v4546 = vpack.c.bf16 %v4358, %v4356
        %v4547 = vpack.c.bf16 %v4363, %v4361
        %v4548 = vpack.c.bf16 %v4368, %v4366
        %v4549 = vpack.c.bf16 %v4373, %v4371
        %v4550 = vpack.c.bf16 %v4378, %v4376
        %v4551 = vpack.c.bf16 %v4383, %v4381
        %v4552 = vpack.c.bf16 %v4388, %v4386
        %v4553 = vpack.c.bf16 %v4393, %v4391
        %v4554 = vpack.c.bf16 %v4398, %v4396
        %v4555 = vpack.c.bf16 %v4403, %v4401
        %v4556 = vpack.c.bf16 %v4408, %v4406
        %v4557 = vpack.c.bf16 %v4413, %v4411
        %v4558 = vpack.c.bf16 %v4418, %v4416
        %v4559 = vpack.c.bf16 %v4423, %v4421
        %v4560 = vpack.c.bf16 %v4428, %v4426
        %v4561 = vpack.c.bf16 %v4433, %v4431
        %v4562 = vpack.c.bf16 %v4438, %v4436
        %v4563 = vpack.c.bf16 %v4443, %v4441
        %v4564 = vpack.c.bf16 %v4448, %v4446
        %v4565 = vpack.c.bf16 %v4453, %v4451
        %v4566 = vpack.c.bf16 %v4458, %v4456
        %v4567 = vpack.c.bf16 %v4463, %v4461
        %v4568 = vpack.c.bf16 %v4468, %v4466
        %v4569 = vpack.c.bf16 %v4473, %v4471
        %v4570 = vld [vmem:[%s3] sm:$0xf]
        %v4571 = vld [vmem:[%s3 + $0x4] sm:$0xf]
        %v4572 = vld [vmem:[%s10] sm:$0x1]
        %v4574 = vlaneseq
        %v4575 = vshrl.u32 %v4574, 7
        %v4576 = vsub.s32 0, %v4575
        %v4577 = vrot.slane %v4572, %v4576
        %v4581 = vunpack.c.l.b16 %v4570
        %v4582 = vunpack.c.l.b16 %v4571
        %v4583 = vpack.c.b16 %v4582, %v4581
        %vm4585 = vcmask 130048
        %v4587 = vsel %vm4585, %v4538, 0
        %v4590 = vsel %vm4585, %v4539, 0
        %v4593 = vsel %vm4585, %v4540, 0
        %v4596 = vsel %vm4585, %v4541, 0
        %v4599 = vsel %vm4585, %v4542, 0
        %v4602 = vsel %vm4585, %v4543, 0
        %v4605 = vsel %vm4585, %v4544, 0
        %v4608 = vsel %vm4585, %v4545, 0
        %v4611 = vsel %vm4585, %v4546, 0
        %v4614 = vsel %vm4585, %v4547, 0
        %v4617 = vsel %vm4585, %v4548, 0
        %v4620 = vsel %vm4585, %v4549, 0
        %v4623 = vsel %vm4585, %v4550, 0
        %v4626 = vsel %vm4585, %v4551, 0
        %v4629 = vsel %vm4585, %v4552, 0
        %v4632 = vsel %vm4585, %v4553, 0
        %v4635 = vsel %vm4585, %v4554, 0
        %v4638 = vsel %vm4585, %v4555, 0
        %v4641 = vsel %vm4585, %v4556, 0
        %v4644 = vsel %vm4585, %v4557, 0
        %v4647 = vsel %vm4585, %v4558, 0
        %v4650 = vsel %vm4585, %v4559, 0
        %v4653 = vsel %vm4585, %v4560, 0
        %v4656 = vsel %vm4585, %v4561, 0
        %v4659 = vsel %vm4585, %v4562, 0
        %v4662 = vsel %vm4585, %v4563, 0
        %v4665 = vsel %vm4585, %v4564, 0
        %v4668 = vsel %vm4585, %v4565, 0
        %v4671 = vsel %vm4585, %v4566, 0
        %v4674 = vsel %vm4585, %v4567, 0
        %v4677 = vsel %vm4585, %v4568, 0
        %v4680 = vsel %vm4585, %v4569, 0
        %4682 = vmatprep.subr.bf16.mxu0 0
        %4683 = vmatpush1.bf16.msra.mxu0 %v4583
        %4684 = vmatprep.subr.bf16.mxu0 0
        %4685 = vmatpush1.bf16.msra.mxu0 0
        %4686 = vmatprep.subr.bf16.mxu0 0
        %4687 = vmatpush1.bf16.msra.mxu0 0
        %4688 = vmatprep.subr.bf16.mxu0 0
        %4689 = vmatpush1.bf16.msra.mxu0 0
        %4690 = vmatprep.subr.bf16.mxu0 0
        %4691 = vmatpush1.bf16.msra.mxu0 0
        %4692 = vmatprep.subr.bf16.mxu0 0
        %4693 = vmatpush1.bf16.msra.mxu0 0
        %4694 = vmatprep.subr.bf16.mxu0 0
        %4695 = vmatpush1.bf16.msra.mxu0 0
        %4696 = vmatprep.subr.bf16.mxu0 0
        %4697 = vmatpush1.bf16.msra.mxu0 0
        %4698 = vmatprep.subr.bf16.mxu0 0
        %4699 = vmatpush1.bf16.msra.mxu0 0
        %4700 = vmatprep.subr.bf16.mxu0 0
        %4701 = vmatpush1.bf16.msra.mxu0 0
        %4702 = vmatprep.subr.bf16.mxu0 0
        %4703 = vmatpush1.bf16.msra.mxu0 0
        %4704 = vmatprep.subr.bf16.mxu0 0
        %4705 = vmatpush1.bf16.msra.mxu0 0
        %4706 = vmatprep.subr.bf16.mxu0 0
        %4707 = vmatpush1.bf16.msra.mxu0 0
        %4708 = vmatprep.subr.bf16.mxu0 0
        %4709 = vmatpush1.bf16.msra.mxu0 0
        %4710 = vmatprep.subr.bf16.mxu0 0
        %4711 = vmatpush1.bf16.msra.mxu0 0
        %4712 = vmatprep.subr.bf16.mxu0 0
        %4713 = vmatpush1.bf16.msra.mxu0 0
        %4714 = vmatprep.mubr.bf16.mxu0 0
        %4715 = vmatmul.mubr.bf16.gmra.mrb[0].mxu0 %v4587
        %v4716 = vpop.f32.mrb[0].mxu0
        %v4717 = vadd.f32 %v4577, %v4716
        %v4718 = vpop.f32.mrb[0].mxu0
        %v4719 = vpop.f32.mrb[0].mxu0
        %v4720 = vadd.f32 %v4577, %v4719
        %v4721 = vpop.f32.mrb[0].mxu0
        %4722 = vmatprep.mubr.bf16.mxu0 0
        %4723 = vmatmul.mubr.bf16.gmra.mrb[0].mxu0 %v4590
        %v4724 = vpop.f32.mrb[0].mxu0
        %v4725 = vadd.f32 %v4577, %v4724
        %v4726 = vpop.f32.mrb[0].mxu0
        %v4727 = vpop.f32.mrb[0].mxu0
        %v4728 = vadd.f32 %v4577, %v4727
        %v4729 = vpop.f32.mrb[0].mxu0
        %4730 = vmatprep.mubr.bf16.mxu0 0
        %4731 = vmatmul.mubr.bf16.gmra.mrb[0].mxu0 %v4593
        %v4732 = vpop.f32.mrb[0].mxu0
        %v4733 = vadd.f32 %v4577, %v4732
        %v4734 = vpop.f32.mrb[0].mxu0
        %v4735 = vpop.f32.mrb[0].mxu0
        %v4736 = vadd.f32 %v4577, %v4735
        %v4737 = vpop.f32.mrb[0].mxu0
        %4738 = vmatprep.mubr.bf16.mxu0 0
        %4739 = vmatmul.mubr.bf16.gmra.mrb[0].mxu0 %v4596
        %v4740 = vpop.f32.mrb[0].mxu0
        %v4741 = vadd.f32 %v4577, %v4740
        %v4742 = vpop.f32.mrb[0].mxu0
        %v4743 = vpop.f32.mrb[0].mxu0
        %v4744 = vadd.f32 %v4577, %v4743
        %v4745 = vpop.f32.mrb[0].mxu0
        %4746 = vmatprep.mubr.bf16.mxu0 0
        %4747 = vmatmul.mubr.bf16.gmra.mrb[0].mxu0 %v4599
        %v4748 = vpop.f32.mrb[0].mxu0
        %v4749 = vadd.f32 %v4577, %v4748
        %v4750 = vpop.f32.mrb[0].mxu0
        %v4751 = vpop.f32.mrb[0].mxu0
        %v4752 = vadd.f32 %v4577, %v4751
        %v4753 = vpop.f32.mrb[0].mxu0
        %4754 = vmatprep.mubr.bf16.mxu0 0
        %4755 = vmatmul.mubr.bf16.gmra.mrb[0].mxu0 %v4602
        %v4756 = vpop.f32.mrb[0].mxu0
        %v4757 = vadd.f32 %v4577, %v4756
        %v4758 = vpop.f32.mrb[0].mxu0
        %v4759 = vpop.f32.mrb[0].mxu0
        %v4760 = vadd.f32 %v4577, %v4759
        %v4761 = vpop.f32.mrb[0].mxu0
        %4762 = vmatprep.mubr.bf16.mxu0 0
        %4763 = vmatmul.mubr.bf16.gmra.mrb[0].mxu0 %v4605
        %v4764 = vpop.f32.mrb[0].mxu0
        %v4765 = vadd.f32 %v4577, %v4764
        %v4766 = vpop.f32.mrb[0].mxu0
        %v4767 = vpop.f32.mrb[0].mxu0
        %v4768 = vadd.f32 %v4577, %v4767
        %v4769 = vpop.f32.mrb[0].mxu0
        %4770 = vmatprep.mubr.bf16.mxu0 0
        %4771 = vmatmul.mubr.bf16.gmra.mrb[0].mxu0 %v4608
        %v4772 = vpop.f32.mrb[0].mxu0
        %v4773 = vadd.f32 %v4577, %v4772
        %v4774 = vpop.f32.mrb[0].mxu0
        %v4775 = vpop.f32.mrb[0].mxu0
        %v4776 = vadd.f32 %v4577, %v4775
        %v4777 = vpop.f32.mrb[0].mxu0
        %4778 = vmatprep.mubr.bf16.mxu0 0
        %4779 = vmatmul.mubr.bf16.gmra.mrb[0].mxu0 %v4611
        %v4780 = vpop.f32.mrb[0].mxu0
        %v4781 = vadd.f32 %v4577, %v4780
        %v4782 = vpop.f32.mrb[0].mxu0
        %v4783 = vpop.f32.mrb[0].mxu0
        %v4784 = vadd.f32 %v4577, %v4783
        %v4785 = vpop.f32.mrb[0].mxu0
        %4786 = vmatprep.mubr.bf16.mxu0 0
        %4787 = vmatmul.mubr.bf16.gmra.mrb[0].mxu0 %v4614
        %v4788 = vpop.f32.mrb[0].mxu0
        %v4789 = vadd.f32 %v4577, %v4788
        %v4790 = vpop.f32.mrb[0].mxu0
        %v4791 = vpop.f32.mrb[0].mxu0
        %v4792 = vadd.f32 %v4577, %v4791
        %v4793 = vpop.f32.mrb[0].mxu0
        %4794 = vmatprep.mubr.bf16.mxu0 0
        %4795 = vmatmul.mubr.bf16.gmra.mrb[0].mxu0 %v4617
        %v4796 = vpop.f32.mrb[0].mxu0
        %v4797 = vadd.f32 %v4577, %v4796
        %v4798 = vpop.f32.mrb[0].mxu0
        %v4799 = vpop.f32.mrb[0].mxu0
        %v4800 = vadd.f32 %v4577, %v4799
        %v4801 = vpop.f32.mrb[0].mxu0
        %4802 = vmatprep.mubr.bf16.mxu0 0
        %4803 = vmatmul.mubr.bf16.gmra.mrb[0].mxu0 %v4620
        %v4804 = vpop.f32.mrb[0].mxu0
        %v4805 = vadd.f32 %v4577, %v4804
        %v4806 = vpop.f32.mrb[0].mxu0
        %v4807 = vpop.f32.mrb[0].mxu0
        %v4808 = vadd.f32 %v4577, %v4807
        %v4809 = vpop.f32.mrb[0].mxu0
        %4810 = vmatprep.mubr.bf16.mxu0 0
        %4811 = vmatmul.mubr.bf16.gmra.mrb[0].mxu0 %v4623
        %v4812 = vpop.f32.mrb[0].mxu0
        %v4813 = vadd.f32 %v4577, %v4812
        %v4814 = vpop.f32.mrb[0].mxu0
        %v4815 = vpop.f32.mrb[0].mxu0
        %v4816 = vadd.f32 %v4577, %v4815
        %v4817 = vpop.f32.mrb[0].mxu0
        %4818 = vmatprep.mubr.bf16.mxu0 0
        %4819 = vmatmul.mubr.bf16.gmra.mrb[0].mxu0 %v4626
        %v4820 = vpop.f32.mrb[0].mxu0
        %v4821 = vadd.f32 %v4577, %v4820
        %v4822 = vpop.f32.mrb[0].mxu0
        %v4823 = vpop.f32.mrb[0].mxu0
        %v4824 = vadd.f32 %v4577, %v4823
        %v4825 = vpop.f32.mrb[0].mxu0
        %4826 = vmatprep.mubr.bf16.mxu0 0
        %4827 = vmatmul.mubr.bf16.gmra.mrb[0].mxu0 %v4629
        %v4828 = vpop.f32.mrb[0].mxu0
        %v4829 = vadd.f32 %v4577, %v4828
        %v4830 = vpop.f32.mrb[0].mxu0
        %v4831 = vpop.f32.mrb[0].mxu0
        %v4832 = vadd.f32 %v4577, %v4831
        %v4833 = vpop.f32.mrb[0].mxu0
        %4834 = vmatprep.mubr.bf16.mxu0 0
        %4835 = vmatmul.mubr.bf16.gmra.mrb[0].mxu0 %v4632
        %v4836 = vpop.f32.mrb[0].mxu0
        %v4837 = vadd.f32 %v4577, %v4836
        %v4838 = vpop.f32.mrb[0].mxu0
        %v4839 = vpop.f32.mrb[0].mxu0
        %v4840 = vadd.f32 %v4577, %v4839
        %v4841 = vpop.f32.mrb[0].mxu0
        %4842 = vmatprep.mubr.bf16.mxu0 0
        %4843 = vmatmul.mubr.bf16.gmra.mrb[0].mxu0 %v4635
        %v4844 = vpop.f32.mrb[0].mxu0
        %v4845 = vadd.f32 %v4577, %v4844
        %v4846 = vpop.f32.mrb[0].mxu0
        %v4847 = vpop.f32.mrb[0].mxu0
        %v4848 = vadd.f32 %v4577, %v4847
        %v4849 = vpop.f32.mrb[0].mxu0
        %4850 = vmatprep.mubr.bf16.mxu0 0
        %4851 = vmatmul.mubr.bf16.gmra.mrb[0].mxu0 %v4638
        %v4852 = vpop.f32.mrb[0].mxu0
        %v4853 = vadd.f32 %v4577, %v4852
        %v4854 = vpop.f32.mrb[0].mxu0
        %v4855 = vpop.f32.mrb[0].mxu0
        %v4856 = vadd.f32 %v4577, %v4855
        %v4857 = vpop.f32.mrb[0].mxu0
        %4858 = vmatprep.mubr.bf16.mxu0 0
        %4859 = vmatmul.mubr.bf16.gmra.mrb[0].mxu0 %v4641
        %v4860 = vpop.f32.mrb[0].mxu0
        %v4861 = vadd.f32 %v4577, %v4860
        %v4862 = vpop.f32.mrb[0].mxu0
        %v4863 = vpop.f32.mrb[0].mxu0
        %v4864 = vadd.f32 %v4577, %v4863
        %v4865 = vpop.f32.mrb[0].mxu0
        %4866 = vmatprep.mubr.bf16.mxu0 0
        %4867 = vmatmul.mubr.bf16.gmra.mrb[0].mxu0 %v4644
        %v4868 = vpop.f32.mrb[0].mxu0
        %v4869 = vadd.f32 %v4577, %v4868
        %v4870 = vpop.f32.mrb[0].mxu0
        %v4871 = vpop.f32.mrb[0].mxu0
        %v4872 = vadd.f32 %v4577, %v4871
        %v4873 = vpop.f32.mrb[0].mxu0
        %4874 = vmatprep.mubr.bf16.mxu0 0
        %4875 = vmatmul.mubr.bf16.gmra.mrb[0].mxu0 %v4647
        %v4876 = vpop.f32.mrb[0].mxu0
        %v4877 = vadd.f32 %v4577, %v4876
        %v4878 = vpop.f32.mrb[0].mxu0
        %v4879 = vpop.f32.mrb[0].mxu0
        %v4880 = vadd.f32 %v4577, %v4879
        %v4881 = vpop.f32.mrb[0].mxu0
        %4882 = vmatprep.mubr.bf16.mxu0 0
        %4883 = vmatmul.mubr.bf16.gmra.mrb[0].mxu0 %v4650
        %v4884 = vpop.f32.mrb[0].mxu0
        %v4885 = vadd.f32 %v4577, %v4884
        %v4886 = vpop.f32.mrb[0].mxu0
        %v4887 = vpop.f32.mrb[0].mxu0
        %v4888 = vadd.f32 %v4577, %v4887
        %v4889 = vpop.f32.mrb[0].mxu0
        %4890 = vmatprep.mubr.bf16.mxu0 0
        %4891 = vmatmul.mubr.bf16.gmra.mrb[0].mxu0 %v4653
        %v4892 = vpop.f32.mrb[0].mxu0
        %v4893 = vadd.f32 %v4577, %v4892
        %v4894 = vpop.f32.mrb[0].mxu0
        %v4895 = vpop.f32.mrb[0].mxu0
        %v4896 = vadd.f32 %v4577, %v4895
        %v4897 = vpop.f32.mrb[0].mxu0
        %4898 = vmatprep.mubr.bf16.mxu0 0
        %4899 = vmatmul.mubr.bf16.gmra.mrb[0].mxu0 %v4656
        %v4900 = vpop.f32.mrb[0].mxu0
        %v4901 = vadd.f32 %v4577, %v4900
        %v4902 = vpop.f32.mrb[0].mxu0
        %v4903 = vpop.f32.mrb[0].mxu0
        %v4904 = vadd.f32 %v4577, %v4903
        %v4905 = vpop.f32.mrb[0].mxu0
        %4906 = vmatprep.mubr.bf16.mxu0 0
        %4907 = vmatmul.mubr.bf16.gmra.mrb[0].mxu0 %v4659
        %v4908 = vpop.f32.mrb[0].mxu0
        %v4909 = vadd.f32 %v4577, %v4908
        %v4910 = vpop.f32.mrb[0].mxu0
        %v4911 = vpop.f32.mrb[0].mxu0
        %v4912 = vadd.f32 %v4577, %v4911
        %v4913 = vpop.f32.mrb[0].mxu0
        %4914 = vmatprep.mubr.bf16.mxu0 0
        %4915 = vmatmul.mubr.bf16.gmra.mrb[0].mxu0 %v4662
        %v4916 = vpop.f32.mrb[0].mxu0
        %v4917 = vadd.f32 %v4577, %v4916
        %v4918 = vpop.f32.mrb[0].mxu0
        %v4919 = vpop.f32.mrb[0].mxu0
        %v4920 = vadd.f32 %v4577, %v4919
        %v4921 = vpop.f32.mrb[0].mxu0
        %4922 = vmatprep.mubr.bf16.mxu0 0
        %4923 = vmatmul.mubr.bf16.gmra.mrb[0].mxu0 %v4665
        %v4924 = vpop.f32.mrb[0].mxu0
        %v4925 = vadd.f32 %v4577, %v4924
        %v4926 = vpop.f32.mrb[0].mxu0
        %v4927 = vpop.f32.mrb[0].mxu0
        %v4928 = vadd.f32 %v4577, %v4927
        %v4929 = vpop.f32.mrb[0].mxu0
        %4930 = vmatprep.mubr.bf16.mxu0 0
        %4931 = vmatmul.mubr.bf16.gmra.mrb[0].mxu0 %v4668
        %v4932 = vpop.f32.mrb[0].mxu0
        %v4933 = vadd.f32 %v4577, %v4932
        %v4934 = vpop.f32.mrb[0].mxu0
        %v4935 = vpop.f32.mrb[0].mxu0
        %v4936 = vadd.f32 %v4577, %v4935
        %v4937 = vpop.f32.mrb[0].mxu0
        %4938 = vmatprep.mubr.bf16.mxu0 0
        %4939 = vmatmul.mubr.bf16.gmra.mrb[0].mxu0 %v4671
        %v4940 = vpop.f32.mrb[0].mxu0
        %v4941 = vadd.f32 %v4577, %v4940
        %v4942 = vpop.f32.mrb[0].mxu0
        %v4943 = vpop.f32.mrb[0].mxu0
        %v4944 = vadd.f32 %v4577, %v4943
        %v4945 = vpop.f32.mrb[0].mxu0
        %4946 = vmatprep.mubr.bf16.mxu0 0
        %4947 = vmatmul.mubr.bf16.gmra.mrb[0].mxu0 %v4674
        %v4948 = vpop.f32.mrb[0].mxu0
        %v4949 = vadd.f32 %v4577, %v4948
        %v4950 = vpop.f32.mrb[0].mxu0
        %v4951 = vpop.f32.mrb[0].mxu0
        %v4952 = vadd.f32 %v4577, %v4951
        %v4953 = vpop.f32.mrb[0].mxu0
        %4954 = vmatprep.mubr.bf16.mxu0 0
        %4955 = vmatmul.mubr.bf16.gmra.mrb[0].mxu0 %v4677
        %v4956 = vpop.f32.mrb[0].mxu0
        %v4957 = vadd.f32 %v4577, %v4956
        %v4958 = vpop.f32.mrb[0].mxu0
        %v4959 = vpop.f32.mrb[0].mxu0
        %v4960 = vadd.f32 %v4577, %v4959
        %v4961 = vpop.f32.mrb[0].mxu0
        %4962 = vmatprep.mubr.bf16.mxu0 0
        %4963 = vmatmul.mubr.bf16.gmra.mrb[0].mxu0 %v4680
        %v4964 = vpop.f32.mrb[0].mxu0
        %v4965 = vadd.f32 %v4577, %v4964
        %v4966 = vpop.f32.mrb[0].mxu0
        %v4967 = vpop.f32.mrb[0].mxu0
        %v4968 = vadd.f32 %v4577, %v4967
        %v4969 = vpop.f32.mrb[0].mxu0
        %4970 = vdwg.mxu0
        %v4971 = vld [vmem:[%s4] sm:$0xf]
        %v4972 = vld [vmem:[%s12] sm:$0x1]
        %v4974 = vlaneseq
        %v4975 = vshrl.u32 %v4974, 7
        %v4976 = vsub.s32 0, %v4975
        %v4977 = vrot.slane %v4972, %v4976
        %v4980 = vsel %vm647, %v4971, 0
        %4982 = vmatprep.subr.bf16.mxu0 0
        %4983 = vmatpush1.bf16.msra.mxu0 %v4980
        %4984 = vmatprep.subr.bf16.mxu0 0
        %4985 = vmatpush1.bf16.msra.mxu0 0
        %4986 = vmatprep.subr.bf16.mxu0 0
        %4987 = vmatpush1.bf16.msra.mxu0 0
        %4988 = vmatprep.subr.bf16.mxu0 0
        %4989 = vmatpush1.bf16.msra.mxu0 0
        %4990 = vmatprep.subr.bf16.mxu0 0
        %4991 = vmatpush1.bf16.msra.mxu0 0
        %4992 = vmatprep.subr.bf16.mxu0 0
        %4993 = vmatpush1.bf16.msra.mxu0 0
        %4994 = vmatprep.subr.bf16.mxu0 0
        %4995 = vmatpush1.bf16.msra.mxu0 0
        %4996 = vmatprep.subr.bf16.mxu0 0
        %4997 = vmatpush1.bf16.msra.mxu0 0
        %4998 = vmatprep.subr.bf16.mxu0 0
        %4999 = vmatpush1.bf16.msra.mxu0 0
        %5000 = vmatprep.subr.bf16.mxu0 0
        %5001 = vmatpush1.bf16.msra.mxu0 0
        %5002 = vmatprep.subr.bf16.mxu0 0
        %5003 = vmatpush1.bf16.msra.mxu0 0
        %5004 = vmatprep.subr.bf16.mxu0 0
        %5005 = vmatpush1.bf16.msra.mxu0 0
        %5006 = vmatprep.subr.bf16.mxu0 0
        %5007 = vmatpush1.bf16.msra.mxu0 0
        %5008 = vmatprep.subr.bf16.mxu0 0
        %5009 = vmatpush1.bf16.msra.mxu0 0
        %5010 = vmatprep.subr.bf16.mxu0 0
        %5011 = vmatpush1.bf16.msra.mxu0 0
        %5012 = vmatprep.subr.bf16.mxu0 0
        %5013 = vmatpush1.bf16.msra.mxu0 0
        %5014 = vmatprep.mubr.bf16.mxu0 0
        %5015 = vmatmul.mubr.bf16.gmra.mrb[0].mxu0 %v552
        %v5016 = vpop.f32.mrb[0].mxu0
        %v5017 = vadd.f32 %v4977, %v5016
        %v5018 = vpop.f32.mrb[0].mxu0
        %v5019 = vpop.f32.mrb[0].mxu0
        %v5020 = vadd.f32 %v4977, %v5019
        %v5021 = vpop.f32.mrb[0].mxu0
        %5022 = vmatprep.mubr.bf16.mxu0 0
        %5023 = vmatmul.mubr.bf16.gmra.mrb[0].mxu0 %v555
        %v5024 = vpop.f32.mrb[0].mxu0
        %v5025 = vadd.f32 %v4977, %v5024
        %v5026 = vpop.f32.mrb[0].mxu0
        %v5027 = vpop.f32.mrb[0].mxu0
        %v5028 = vadd.f32 %v4977, %v5027
        %v5029 = vpop.f32.mrb[0].mxu0
        %5030 = vmatprep.mubr.bf16.mxu0 0
        %5031 = vmatmul.mubr.bf16.gmra.mrb[0].mxu0 %v558
        %v5032 = vpop.f32.mrb[0].mxu0
        %v5033 = vadd.f32 %v4977, %v5032
        %v5034 = vpop.f32.mrb[0].mxu0
        %v5035 = vpop.f32.mrb[0].mxu0
        %v5036 = vadd.f32 %v4977, %v5035
        %v5037 = vpop.f32.mrb[0].mxu0
        %5038 = vmatprep.mubr.bf16.mxu0 0
        %5039 = vmatmul.mubr.bf16.gmra.mrb[0].mxu0 %v561
        %v5040 = vpop.f32.mrb[0].mxu0
        %v5041 = vadd.f32 %v4977, %v5040
        %v5042 = vpop.f32.mrb[0].mxu0
        %v5043 = vpop.f32.mrb[0].mxu0
        %v5044 = vadd.f32 %v4977, %v5043
        %v5045 = vpop.f32.mrb[0].mxu0
        %5046 = vmatprep.mubr.bf16.mxu0 0
        %5047 = vmatmul.mubr.bf16.gmra.mrb[0].mxu0 %v564
        %v5048 = vpop.f32.mrb[0].mxu0
        %v5049 = vadd.f32 %v4977, %v5048
        %v5050 = vpop.f32.mrb[0].mxu0
        %v5051 = vpop.f32.mrb[0].mxu0
        %v5052 = vadd.f32 %v4977, %v5051
        %v5053 = vpop.f32.mrb[0].mxu0
        %5054 = vmatprep.mubr.bf16.mxu0 0
        %5055 = vmatmul.mubr.bf16.gmra.mrb[0].mxu0 %v567
        %v5056 = vpop.f32.mrb[0].mxu0
        %v5057 = vadd.f32 %v4977, %v5056
        %v5058 = vpop.f32.mrb[0].mxu0
        %v5059 = vpop.f32.mrb[0].mxu0
        %v5060 = vadd.f32 %v4977, %v5059
        %v5061 = vpop.f32.mrb[0].mxu0
        %5062 = vmatprep.mubr.bf16.mxu0 0
        %5063 = vmatmul.mubr.bf16.gmra.mrb[0].mxu0 %v570
        %v5064 = vpop.f32.mrb[0].mxu0
        %v5065 = vadd.f32 %v4977, %v5064
        %v5066 = vpop.f32.mrb[0].mxu0
        %v5067 = vpop.f32.mrb[0].mxu0
        %v5068 = vadd.f32 %v4977, %v5067
        %v5069 = vpop.f32.mrb[0].mxu0
        %5070 = vmatprep.mubr.bf16.mxu0 0
        %5071 = vmatmul.mubr.bf16.gmra.mrb[0].mxu0 %v573
        %v5072 = vpop.f32.mrb[0].mxu0
        %v5073 = vadd.f32 %v4977, %v5072
        %v5074 = vpop.f32.mrb[0].mxu0
        %v5075 = vpop.f32.mrb[0].mxu0
        %v5076 = vadd.f32 %v4977, %v5075
        %v5077 = vpop.f32.mrb[0].mxu0
        %5078 = vmatprep.mubr.bf16.mxu0 0
        %5079 = vmatmul.mubr.bf16.gmra.mrb[0].mxu0 %v576
        %v5080 = vpop.f32.mrb[0].mxu0
        %v5081 = vadd.f32 %v4977, %v5080
        %v5082 = vpop.f32.mrb[0].mxu0
        %v5083 = vpop.f32.mrb[0].mxu0
        %v5084 = vadd.f32 %v4977, %v5083
        %v5085 = vpop.f32.mrb[0].mxu0
        %5086 = vmatprep.mubr.bf16.mxu0 0
        %5087 = vmatmul.mubr.bf16.gmra.mrb[0].mxu0 %v579
        %v5088 = vpop.f32.mrb[0].mxu0
        %v5089 = vadd.f32 %v4977, %v5088
        %v5090 = vpop.f32.mrb[0].mxu0
        %v5091 = vpop.f32.mrb[0].mxu0
        %v5092 = vadd.f32 %v4977, %v5091
        %v5093 = vpop.f32.mrb[0].mxu0
        %5094 = vmatprep.mubr.bf16.mxu0 0
        %5095 = vmatmul.mubr.bf16.gmra.mrb[0].mxu0 %v582
        %v5096 = vpop.f32.mrb[0].mxu0
        %v5097 = vadd.f32 %v4977, %v5096
        %v5098 = vpop.f32.mrb[0].mxu0
        %v5099 = vpop.f32.mrb[0].mxu0
        %v5100 = vadd.f32 %v4977, %v5099
        %v5101 = vpop.f32.mrb[0].mxu0
        %5102 = vmatprep.mubr.bf16.mxu0 0
        %5103 = vmatmul.mubr.bf16.gmra.mrb[0].mxu0 %v585
        %v5104 = vpop.f32.mrb[0].mxu0
        %v5105 = vadd.f32 %v4977, %v5104
        %v5106 = vpop.f32.mrb[0].mxu0
        %v5107 = vpop.f32.mrb[0].mxu0
        %v5108 = vadd.f32 %v4977, %v5107
        %v5109 = vpop.f32.mrb[0].mxu0
        %5110 = vmatprep.mubr.bf16.mxu0 0
        %5111 = vmatmul.mubr.bf16.gmra.mrb[0].mxu0 %v588
        %v5112 = vpop.f32.mrb[0].mxu0
        %v5113 = vadd.f32 %v4977, %v5112
        %v5114 = vpop.f32.mrb[0].mxu0
        %v5115 = vpop.f32.mrb[0].mxu0
        %v5116 = vadd.f32 %v4977, %v5115
        %v5117 = vpop.f32.mrb[0].mxu0
        %5118 = vmatprep.mubr.bf16.mxu0 0
        %5119 = vmatmul.mubr.bf16.gmra.mrb[0].mxu0 %v591
        %v5120 = vpop.f32.mrb[0].mxu0
        %v5121 = vadd.f32 %v4977, %v5120
        %v5122 = vpop.f32.mrb[0].mxu0
        %v5123 = vpop.f32.mrb[0].mxu0
        %v5124 = vadd.f32 %v4977, %v5123
        %v5125 = vpop.f32.mrb[0].mxu0
        %5126 = vmatprep.mubr.bf16.mxu0 0
        %5127 = vmatmul.mubr.bf16.gmra.mrb[0].mxu0 %v594
        %v5128 = vpop.f32.mrb[0].mxu0
        %v5129 = vadd.f32 %v4977, %v5128
        %v5130 = vpop.f32.mrb[0].mxu0
        %v5131 = vpop.f32.mrb[0].mxu0
        %v5132 = vadd.f32 %v4977, %v5131
        %v5133 = vpop.f32.mrb[0].mxu0
        %5134 = vmatprep.mubr.bf16.mxu0 0
        %5135 = vmatmul.mubr.bf16.gmra.mrb[0].mxu0 %v597
        %v5136 = vpop.f32.mrb[0].mxu0
        %v5137 = vadd.f32 %v4977, %v5136
        %v5138 = vpop.f32.mrb[0].mxu0
        %v5139 = vpop.f32.mrb[0].mxu0
        %v5140 = vadd.f32 %v4977, %v5139
        %v5141 = vpop.f32.mrb[0].mxu0
        %5142 = vmatprep.mubr.bf16.mxu0 0
        %5143 = vmatmul.mubr.bf16.gmra.mrb[0].mxu0 %v600
        %v5144 = vpop.f32.mrb[0].mxu0
        %v5145 = vadd.f32 %v4977, %v5144
        %v5146 = vpop.f32.mrb[0].mxu0
        %v5147 = vpop.f32.mrb[0].mxu0
        %v5148 = vadd.f32 %v4977, %v5147
        %v5149 = vpop.f32.mrb[0].mxu0
        %5150 = vmatprep.mubr.bf16.mxu0 0
        %5151 = vmatmul.mubr.bf16.gmra.mrb[0].mxu0 %v603
        %v5152 = vpop.f32.mrb[0].mxu0
        %v5153 = vadd.f32 %v4977, %v5152
        %v5154 = vpop.f32.mrb[0].mxu0
        %v5155 = vpop.f32.mrb[0].mxu0
        %v5156 = vadd.f32 %v4977, %v5155
        %v5157 = vpop.f32.mrb[0].mxu0
        %5158 = vmatprep.mubr.bf16.mxu0 0
        %5159 = vmatmul.mubr.bf16.gmra.mrb[0].mxu0 %v606
        %v5160 = vpop.f32.mrb[0].mxu0
        %v5161 = vadd.f32 %v4977, %v5160
        %v5162 = vpop.f32.mrb[0].mxu0
        %v5163 = vpop.f32.mrb[0].mxu0
        %v5164 = vadd.f32 %v4977, %v5163
        %v5165 = vpop.f32.mrb[0].mxu0
        %5166 = vmatprep.mubr.bf16.mxu0 0
        %5167 = vmatmul.mubr.bf16.gmra.mrb[0].mxu0 %v609
        %v5168 = vpop.f32.mrb[0].mxu0
        %v5169 = vadd.f32 %v4977, %v5168
        %v5170 = vpop.f32.mrb[0].mxu0
        %v5171 = vpop.f32.mrb[0].mxu0
        %v5172 = vadd.f32 %v4977, %v5171
        %v5173 = vpop.f32.mrb[0].mxu0
        %5174 = vmatprep.mubr.bf16.mxu0 0
        %5175 = vmatmul.mubr.bf16.gmra.mrb[0].mxu0 %v612
        %v5176 = vpop.f32.mrb[0].mxu0
        %v5177 = vadd.f32 %v4977, %v5176
        %v5178 = vpop.f32.mrb[0].mxu0
        %v5179 = vpop.f32.mrb[0].mxu0
        %v5180 = vadd.f32 %v4977, %v5179
        %v5181 = vpop.f32.mrb[0].mxu0
        %5182 = vmatprep.mubr.bf16.mxu0 0
        %5183 = vmatmul.mubr.bf16.gmra.mrb[0].mxu0 %v615
        %v5184 = vpop.f32.mrb[0].mxu0
        %v5185 = vadd.f32 %v4977, %v5184
        %v5186 = vpop.f32.mrb[0].mxu0
        %v5187 = vpop.f32.mrb[0].mxu0
        %v5188 = vadd.f32 %v4977, %v5187
        %v5189 = vpop.f32.mrb[0].mxu0
        %5190 = vmatprep.mubr.bf16.mxu0 0
        %5191 = vmatmul.mubr.bf16.gmra.mrb[0].mxu0 %v618
        %v5192 = vpop.f32.mrb[0].mxu0
        %v5193 = vadd.f32 %v4977, %v5192
        %v5194 = vpop.f32.mrb[0].mxu0
        %v5195 = vpop.f32.mrb[0].mxu0
        %v5196 = vadd.f32 %v4977, %v5195
        %v5197 = vpop.f32.mrb[0].mxu0
        %5198 = vmatprep.mubr.bf16.mxu0 0
        %5199 = vmatmul.mubr.bf16.gmra.mrb[0].mxu0 %v621
        %v5200 = vpop.f32.mrb[0].mxu0
        %v5201 = vadd.f32 %v4977, %v5200
        %v5202 = vpop.f32.mrb[0].mxu0
        %v5203 = vpop.f32.mrb[0].mxu0
        %v5204 = vadd.f32 %v4977, %v5203
        %v5205 = vpop.f32.mrb[0].mxu0
        %5206 = vmatprep.mubr.bf16.mxu0 0
        %5207 = vmatmul.mubr.bf16.gmra.mrb[0].mxu0 %v624
        %v5208 = vpop.f32.mrb[0].mxu0
        %v5209 = vadd.f32 %v4977, %v5208
        %v5210 = vpop.f32.mrb[0].mxu0
        %v5211 = vpop.f32.mrb[0].mxu0
        %v5212 = vadd.f32 %v4977, %v5211
        %v5213 = vpop.f32.mrb[0].mxu0
        %5214 = vmatprep.mubr.bf16.mxu0 0
        %5215 = vmatmul.mubr.bf16.gmra.mrb[0].mxu0 %v627
        %v5216 = vpop.f32.mrb[0].mxu0
        %v5217 = vadd.f32 %v4977, %v5216
        %v5218 = vpop.f32.mrb[0].mxu0
        %v5219 = vpop.f32.mrb[0].mxu0
        %v5220 = vadd.f32 %v4977, %v5219
        %v5221 = vpop.f32.mrb[0].mxu0
        %5222 = vmatprep.mubr.bf16.mxu0 0
        %5223 = vmatmul.mubr.bf16.gmra.mrb[0].mxu0 %v630
        %v5224 = vpop.f32.mrb[0].mxu0
        %v5225 = vadd.f32 %v4977, %v5224
        %v5226 = vpop.f32.mrb[0].mxu0
        %v5227 = vpop.f32.mrb[0].mxu0
        %v5228 = vadd.f32 %v4977, %v5227
        %v5229 = vpop.f32.mrb[0].mxu0
        %5230 = vmatprep.mubr.bf16.mxu0 0
        %5231 = vmatmul.mubr.bf16.gmra.mrb[0].mxu0 %v633
        %v5232 = vpop.f32.mrb[0].mxu0
        %v5233 = vadd.f32 %v4977, %v5232
        %v5234 = vpop.f32.mrb[0].mxu0
        %v5235 = vpop.f32.mrb[0].mxu0
        %v5236 = vadd.f32 %v4977, %v5235
        %v5237 = vpop.f32.mrb[0].mxu0
        %5238 = vmatprep.mubr.bf16.mxu0 0
        %5239 = vmatmul.mubr.bf16.gmra.mrb[0].mxu0 %v636
        %v5240 = vpop.f32.mrb[0].mxu0
        %v5241 = vadd.f32 %v4977, %v5240
        %v5242 = vpop.f32.mrb[0].mxu0
        %v5243 = vpop.f32.mrb[0].mxu0
        %v5244 = vadd.f32 %v4977, %v5243
        %v5245 = vpop.f32.mrb[0].mxu0
        %5246 = vmatprep.mubr.bf16.mxu0 0
        %5247 = vmatmul.mubr.bf16.gmra.mrb[0].mxu0 %v639
        %v5248 = vpop.f32.mrb[0].mxu0
        %v5249 = vadd.f32 %v4977, %v5248
        %v5250 = vpop.f32.mrb[0].mxu0
        %v5251 = vpop.f32.mrb[0].mxu0
        %v5252 = vadd.f32 %v4977, %v5251
        %v5253 = vpop.f32.mrb[0].mxu0
        %5254 = vmatprep.mubr.bf16.mxu0 0
        %5255 = vmatmul.mubr.bf16.gmra.mrb[0].mxu0 %v642
        %v5256 = vpop.f32.mrb[0].mxu0
        %v5257 = vadd.f32 %v4977, %v5256
        %v5258 = vpop.f32.mrb[0].mxu0
        %v5259 = vpop.f32.mrb[0].mxu0
        %v5260 = vadd.f32 %v4977, %v5259
        %v5261 = vpop.f32.mrb[0].mxu0
        %5262 = vmatprep.mubr.bf16.mxu0 0
        %5263 = vmatmul.mubr.bf16.gmra.mrb[0].mxu0 %v645
        %v5264 = vpop.f32.mrb[0].mxu0
        %v5265 = vadd.f32 %v4977, %v5264
        %v5266 = vpop.f32.mrb[0].mxu0
        %v5267 = vpop.f32.mrb[0].mxu0
        %v5268 = vadd.f32 %v4977, %v5267
        %v5269 = vpop.f32.mrb[0].mxu0
        %5270 = vdwg.mxu0
        %v5271 = vadd.f32 %v4717, %v5017
        %v5272 = vadd.f32 %v4720, %v5020
        %v5273 = vadd.f32 %v4725, %v5025
        %v5274 = vadd.f32 %v4728, %v5028
        %v5275 = vadd.f32 %v4733, %v5033
        %v5276 = vadd.f32 %v4736, %v5036
        %v5277 = vadd.f32 %v4741, %v5041
        %v5278 = vadd.f32 %v4744, %v5044
        %v5279 = vadd.f32 %v4749, %v5049
        %v5280 = vadd.f32 %v4752, %v5052
        %v5281 = vadd.f32 %v4757, %v5057
        %v5282 = vadd.f32 %v4760, %v5060
        %v5283 = vadd.f32 %v4765, %v5065
        %v5284 = vadd.f32 %v4768, %v5068
        %v5285 = vadd.f32 %v4773, %v5073
        %v5286 = vadd.f32 %v4776, %v5076
        %v5287 = vadd.f32 %v4781, %v5081
        %v5288 = vadd.f32 %v4784, %v5084
        %v5289 = vadd.f32 %v4789, %v5089
        %v5290 = vadd.f32 %v4792, %v5092
        %v5291 = vadd.f32 %v4797, %v5097
        %v5292 = vadd.f32 %v4800, %v5100
        %v5293 = vadd.f32 %v4805, %v5105
        %v5294 = vadd.f32 %v4808, %v5108
        %v5295 = vadd.f32 %v4813, %v5113
        %v5296 = vadd.f32 %v4816, %v5116
        %v5297 = vadd.f32 %v4821, %v5121
        %v5298 = vadd.f32 %v4824, %v5124
        %v5299 = vadd.f32 %v4829, %v5129
        %v5300 = vadd.f32 %v4832, %v5132
        %v5301 = vadd.f32 %v4837, %v5137
        %v5302 = vadd.f32 %v4840, %v5140
        %v5303 = vadd.f32 %v4845, %v5145
        %v5304 = vadd.f32 %v4848, %v5148
        %v5305 = vadd.f32 %v4853, %v5153
        %v5306 = vadd.f32 %v4856, %v5156
        %v5307 = vadd.f32 %v4861, %v5161
        %v5308 = vadd.f32 %v4864, %v5164
        %v5309 = vadd.f32 %v4869, %v5169
        %v5310 = vadd.f32 %v4872, %v5172
        %v5311 = vadd.f32 %v4877, %v5177
        %v5312 = vadd.f32 %v4880, %v5180
        %v5313 = vadd.f32 %v4885, %v5185
        %v5314 = vadd.f32 %v4888, %v5188
        %v5315 = vadd.f32 %v4893, %v5193
        %v5316 = vadd.f32 %v4896, %v5196
        %v5317 = vadd.f32 %v4901, %v5201
        %v5318 = vadd.f32 %v4904, %v5204
        %v5319 = vadd.f32 %v4909, %v5209
        %v5320 = vadd.f32 %v4912, %v5212
        %v5321 = vadd.f32 %v4917, %v5217
        %v5322 = vadd.f32 %v4920, %v5220
        %v5323 = vadd.f32 %v4925, %v5225
        %v5324 = vadd.f32 %v4928, %v5228
        %v5325 = vadd.f32 %v4933, %v5233
        %v5326 = vadd.f32 %v4936, %v5236
        %v5327 = vadd.f32 %v4941, %v5241
        %v5328 = vadd.f32 %v4944, %v5244
        %v5329 = vadd.f32 %v4949, %v5249
        %v5330 = vadd.f32 %v4952, %v5252
        %v5331 = vadd.f32 %v4957, %v5257
        %v5332 = vadd.f32 %v4960, %v5260
        %v5333 = vadd.f32 %v4965, %v5265
        %v5334 = vadd.f32 %v4968, %v5268
        %5335 = vst [vmem:[%s436] sm:$0xff] %v5271
        %5336 = vst [vmem:[%s436 + $0x8] sm:$0xff] %v5272
        %5337 = vst [vmem:[%s436 + $0x10] sm:$0xff] %v5273
        %5338 = vst [vmem:[%s436 + $0x18] sm:$0xff] %v5274
        %5339 = vst [vmem:[%s436 + $0x20] sm:$0xff] %v5275
        %5340 = vst [vmem:[%s436 + $0x28] sm:$0xff] %v5276
        %5341 = vst [vmem:[%s436 + $0x30] sm:$0xff] %v5277
        %5342 = vst [vmem:[%s436 + $0x38] sm:$0xff] %v5278
        %5343 = vst [vmem:[%s436 + $0x40] sm:$0xff] %v5279
        %5344 = vst [vmem:[%s436 + $0x48] sm:$0xff] %v5280
        %5345 = vst [vmem:[%s436 + $0x50] sm:$0xff] %v5281
        %5346 = vst [vmem:[%s436 + $0x58] sm:$0xff] %v5282
        %5347 = vst [vmem:[%s436 + $0x60] sm:$0xff] %v5283
        %5348 = vst [vmem:[%s436 + $0x68] sm:$0xff] %v5284
        %5349 = vst [vmem:[%s436 + $0x70] sm:$0xff] %v5285
        %5350 = vst [vmem:[%s436 + $0x78] sm:$0xff] %v5286
        %5351 = vst [vmem:[%s436 + $0x80] sm:$0xff] %v5287
        %5352 = vst [vmem:[%s436 + $0x88] sm:$0xff] %v5288
        %5353 = vst [vmem:[%s436 + $0x90] sm:$0xff] %v5289
        %5354 = vst [vmem:[%s436 + $0x98] sm:$0xff] %v5290
        %5355 = vst [vmem:[%s436 + $0xa0] sm:$0xff] %v5291
        %5356 = vst [vmem:[%s436 + $0xa8] sm:$0xff] %v5292
        %5357 = vst [vmem:[%s436 + $0xb0] sm:$0xff] %v5293
        %5358 = vst [vmem:[%s436 + $0xb8] sm:$0xff] %v5294
        %5359 = vst [vmem:[%s436 + $0xc0] sm:$0xff] %v5295
        %5360 = vst [vmem:[%s436 + $0xc8] sm:$0xff] %v5296
        %5361 = vst [vmem:[%s436 + $0xd0] sm:$0xff] %v5297
        %5362 = vst [vmem:[%s436 + $0xd8] sm:$0xff] %v5298
        %5363 = vst [vmem:[%s436 + $0xe0] sm:$0xff] %v5299
        %5364 = vst [vmem:[%s436 + $0xe8] sm:$0xff] %v5300
        %5365 = vst [vmem:[%s436 + $0xf0] sm:$0xff] %v5301
        %5366 = vst [vmem:[%s436 + $0xf8] sm:$0xff] %v5302
        %5367 = vst [vmem:[%s436 + $0x100] sm:$0xff] %v5303
        %5368 = vst [vmem:[%s436 + $0x108] sm:$0xff] %v5304
        %5369 = vst [vmem:[%s436 + $0x110] sm:$0xff] %v5305
        %5370 = vst [vmem:[%s436 + $0x118] sm:$0xff] %v5306
        %5371 = vst [vmem:[%s436 + $0x120] sm:$0xff] %v5307
        %5372 = vst [vmem:[%s436 + $0x128] sm:$0xff] %v5308
        %5373 = vst [vmem:[%s436 + $0x130] sm:$0xff] %v5309
        %5374 = vst [vmem:[%s436 + $0x138] sm:$0xff] %v5310
        %5375 = vst [vmem:[%s436 + $0x140] sm:$0xff] %v5311
        %5376 = vst [vmem:[%s436 + $0x148] sm:$0xff] %v5312
        %5377 = vst [vmem:[%s436 + $0x150] sm:$0xff] %v5313
        %5378 = vst [vmem:[%s436 + $0x158] sm:$0xff] %v5314
        %5379 = vst [vmem:[%s436 + $0x160] sm:$0xff] %v5315
        %5380 = vst [vmem:[%s436 + $0x168] sm:$0xff] %v5316
        %5381 = vst [vmem:[%s436 + $0x170] sm:$0xff] %v5317
        %5382 = vst [vmem:[%s436 + $0x178] sm:$0xff] %v5318
        %5383 = vst [vmem:[%s436 + $0x180] sm:$0xff] %v5319
        %5384 = vst [vmem:[%s436 + $0x188] sm:$0xff] %v5320
        %5385 = vst [vmem:[%s436 + $0x190] sm:$0xff] %v5321
        %5386 = vst [vmem:[%s436 + $0x198] sm:$0xff] %v5322
        %5387 = vst [vmem:[%s436 + $0x1a0] sm:$0xff] %v5323
        %5388 = vst [vmem:[%s436 + $0x1a8] sm:$0xff] %v5324
        %5389 = vst [vmem:[%s436 + $0x1b0] sm:$0xff] %v5325
        %5390 = vst [vmem:[%s436 + $0x1b8] sm:$0xff] %v5326
        %5391 = vst [vmem:[%s436 + $0x1c0] sm:$0xff] %v5327
        %5392 = vst [vmem:[%s436 + $0x1c8] sm:$0xff] %v5328
        %5393 = vst [vmem:[%s436 + $0x1d0] sm:$0xff] %v5329
        %5394 = vst [vmem:[%s436 + $0x1d8] sm:$0xff] %v5330
        %5395 = vst [vmem:[%s436 + $0x1e0] sm:$0xff] %v5331
        %5396 = vst [vmem:[%s436 + $0x1e8] sm:$0xff] %v5332
        %5397 = vst [vmem:[%s436 + $0x1f0] sm:$0xff] %v5333
        %5398 = vst [vmem:[%s436 + $0x1f8] sm:$0xff] %v5334
        %s5399 = sand.u32 %s313, 1
        %s5400 = scalar_lea.sflag [#allocation3], %s5399
        %s5401 = sand.u32 %s313, 1
        %s5402 = smul.addr %s5401, 512
        %s5403 = scalar_lea.vmem [#allocation2], %s5402
        // Predicated region
        $region73: #{tpu_custom_call.1} parent=71 // pred_check
          %p5404 = pneg %p323
        $region74: #{tpu_custom_call.1} parent=71 // pred_check_branch
          %5406 = sbr.rel (%p5404) target = $region76
        $region75: #{tpu_custom_call.1} parent=71 // pred_region
          %s5407 = smul.u32 2, %s27
          %s5409 = ssub.s32 8192, 8192
          %5410 = vsyncadd %s5400, %s5409
          %s5411 = smul.addr %s5407, 32
          %s5412 = smul.addr %s5411, 128
          %s5413 = scalar_lea.hbm %s13, %s5412
          %s5414 = sshll.u32 %s5403, 4
          %s5415 = int_to_ptr.vmem [resolvable:$true] %s5414
          %5420 = dma.vmem_to_hbm [thread:$0]  %s5415, 8192, %s5413, %s5400, 128, 128, 8
        $region76: #{tpu_custom_call.1} parent=71 // pred_fallthru
          _
      $region72: #{tpu_custom_call.1} parent=5 // pred_fallthru
        _
      %p5421 = scmp.le.s32.totalorder 2, %s22
      // Predicated region
      $region77: #{tpu_custom_call.1} parent=5 // pred_check
        %p5422 = pneg %p5421
      $region78: #{tpu_custom_call.1} parent=5 // pred_check_branch
        %5424 = sbr.rel (%p5422) target = $region80
      $region79: #{tpu_custom_call.1} parent=5 // pred_region
        %s5425 = ssub.s32 %s22, 2
        // Predicated region
        $region81: #{tpu_custom_call.1} parent=79 // pred_check
          %p5426 = pneg %p329
        $region82: #{tpu_custom_call.1} parent=79 // pred_check_branch
          %5428 = sbr.rel (%p5426) target = $region84
        $region83: #{tpu_custom_call.1} parent=79 // pred_region
          %s5429 = sand.u32 %s314, 1
          %s5430 = scalar_lea.sflag [#allocation3], %s5429
          %s5431 = sand.u32 %s314, 1
          %s5432 = smul.addr %s5431, 512
          %s5433 = scalar_lea.vmem [#allocation2], %s5432
          %5434 = dma.done %s5430, 8192
        $region84: #{tpu_custom_call.1} parent=79 // pred_fallthru
          _
      $region80: #{tpu_custom_call.1} parent=5 // pred_fallthru
        _
    $region6: #{tpu_custom_call.1} parent=1 // loop_footer
      %s26 = sadd.s32 1, %s22
    $region7: #{tpu_custom_call.1} parent=1 // loop_footer_branch
      %21 = sbr.rel target = $region3
    $region8: #{tpu_custom_call.1} parent=1 // loop_exit
      _
    %5435 = vsyncpa [#allocation3], 1
    %s5436 = scalar_lea.sflag [#allocation3], 1
    %5437 = vsyncpa %s5436, 1

</llo_original>
